<compile_context>
chip_gen: v7x
topology: tpu7x:2x2x1
jax: 0.10.0
libtpu: 0.0.40
codegen_flags: <defaults>
</compile_context>

<pallas_src>
import numpy as np
import jax
import jax.numpy as jnp
from jax.experimental import pallas as pl
from jax.experimental.pallas import tpu as pltpu

NOISE_SIZE = 100
BN_EPS = 1e-5

# (C_in, C_out, K, stride, padding, has_bn_relu)  -- final layer uses tanh.
LAYERS = [
    (100, 512, 1, 1, 0, True),
    (512, 256, 4, 2, 1, True),
    (256, 128, 4, 2, 1, True),
    (128, 128, 4, 2, 1, True),
    (128, 100, 4, 2, 1, False),
]


def _rup(x, m):
    return (x + m - 1) // m * m


def _layer_geoms():
    """Static geometry per layer: sequence lengths, used taps, per-output-time contributions."""
    geoms, L = [], 1   # x.view(-1, 100, 1) -> L starts at 1
    for (cin, cout, K, s, p, has_bn) in LAYERS:
        L_out = (L - 1) * s - 2 * p + K
        used = sorted({k for li in range(L) for k in range(K)
                       if 0 <= li * s - p + k < L_out})
        col = {k: i for i, k in enumerate(used)}
        contrib = []                      # contrib[lo] = [(li, tap_column_index), ...]
        for lo in range(L_out):
            lst = []
            for li in range(L):
                k = lo - li * s + p
                if 0 <= k < K:
                    lst.append((li, col[k]))
            contrib.append(lst)
        geoms.append(dict(cin=cin, cout=cout, K=K, stride=s, pad=p, has_bn=has_bn,
                          L_in=L, L_out=L_out,
                          cin_pad=_rup(cin, 128), cout_pad=_rup(cout, 128),
                          used_taps=used, contrib=contrib))
        L = L_out
    return geoms          # L chain: 1 -> 1 -> 2 -> 4 -> 8 -> 16


# ------------------------------- Pallas kernel --------------------------------------- #

def _bn_relu(v, gamma, beta):
    """Training-mode BatchNorm1d (batch stats, biased var) + ReLU.

    v:     (L*N, C) f32 activation (time blocks on sublanes, channels on lanes).
    gamma/beta: (1, C) affine params.
    Stats are a plain axis-0 reduce (XLU) -- no pooling matmuls.  Two-pass centered
    variance for robustness (no E[x^2] - mean^2 cancellation).
    """
    count = v.shape[0]
    mean = jnp.sum(v, axis=0, keepdims=True) * (1.0 / count)      # (1, C)
    c = v - mean
    var = jnp.sum(c * c, axis=0, keepdims=True) * (1.0 / count)   # (1, C)
    inv = jax.lax.rsqrt(var + BN_EPS)
    return jnp.maximum(c * inv * gamma + beta, 0.0)


def _make_kernel(n, geoms):
    """Build the fused generator kernel (closure over static layer geometry)."""

    def kernel(*refs):
        # ---- unpack refs: x, per-layer (w, b[, gamma, beta]), out, scratch ----------
        it = iter(refs)
        x_ref = next(it)
        layer_refs = []
        for g in geoms:
            w_ref = next(it)
            b_ref = next(it)
            if g["has_bn"]:
                g_ref = next(it)
                be_ref = next(it)
            else:
                g_ref = be_ref = None
            layer_refs.append((w_ref, b_ref, g_ref, be_ref))
        out_ref = next(it)
        scratch_refs = list(it)

        # ---- forward chain -----------------------------------------------------------
        a = x_ref[...]                                   # (1*n, cin_pad0) f32
        si = 0
        for g, (w_ref, b_ref, g_ref, be_ref) in zip(geoms, layer_refs):
            cp = g["cout_pad"]
            # one matmul per layer: (L_in*n, C_in) @ (C_in, T*C_out) on the MXU (bf16 in,
            # f32 accumulate); overlap-add of the taps is done below with static slices.
            y = jnp.dot(a.astype(jnp.bfloat16), w_ref[...],
                        preferred_element_type=jnp.float32)       # (L_in*n, T*cp)
            bias = b_ref[...]                                     # (1, cp)
            dst = scratch_refs[si] if g["has_bn"] else out_ref    # (L_out*n, cp)

            for lo in range(g["L_out"]):                 # static, fully unrolled
                blk = None
                for (li, tc) in g["contrib"][lo]:        # <= 2 contributions per lo
                    piece = y[li * n:(li + 1) * n, tc * cp:(tc + 1) * cp]
                    blk = piece if blk is None else blk + piece
                blk = blk + bias
                if not g["has_bn"]:
                    blk = jnp.tanh(blk)                  # final layer
                dst[lo * n:(lo + 1) * n, :] = blk

            if g["has_bn"]:
                a = _bn_relu(dst[...], g_ref[...], be_ref[...])
                si += 1

    return kernel


# ------------------------------- glue: params & operands ----------------------------- #

def init_params(key):
    """Deterministic init mirroring the module: xavier_uniform(gain=sqrt(2)) conv weights,
    uniform biases, BatchNorm gamma=1 / beta=0."""
    params = []
    for (cin, cout, K, s, p, has_bn) in LAYERS:
        key, kw, kb = jax.random.split(key, 3)
        gain = 2.0 ** 0.5
        fan_in, fan_out = cout * K, cin * K   # PyTorch fan convention for ConvTranspose1d
        bound = gain * (6.0 / (fan_in + fan_out)) ** 0.5
        w = jax.random.uniform(kw, (cin, cout, K), jnp.float32, -bound, bound)
        b = jax.random.uniform(kb, (cout,), jnp.float32,
                               -1.0 / fan_in ** 0.5, 1.0 / fan_in ** 0.5)
        gamma = jnp.ones((cout,), jnp.float32) if has_bn else None
        beta = jnp.zeros((cout,), jnp.float32) if has_bn else None
        params.append(dict(w=w, b=b, gamma=gamma, beta=beta, stride=s, padding=p))
    return params


def prepare_operands(params):
    """One-time host-side lowering: factored bf16 tap weights + padded f32 bias/BN params.

    Weight layout: (cin_pad, T*cout_pad) where T = number of taps that ever reach a valid
    output position; no densification -> no structural zeros in HBM traffic.
    """
    geoms = _layer_geoms()
    ops = []
    for p, g in zip(params, geoms):
        w = np.asarray(p["w"], np.float32)               # (cin, cout, K)
        cin, cout, _ = w.shape
        cip, cop = g["cin_pad"], g["cout_pad"]
        w_fact = np.zeros((cip, len(g["used_taps"]) * cop), np.float32)
        for i, k in enumerate(g["used_taps"]):
            w_fact[:cin, i * cop:i * cop + cout] = w[:, :, k]
        b = np.zeros((1, cop), np.float32)
        b[0, :cout] = np.asarray(p["b"], np.float32)
        entry = [jnp.asarray(w_fact, dtype=jnp.bfloat16), jnp.asarray(b)]
        if g["has_bn"]:
            entry.append(jnp.asarray(np.asarray(p["gamma"], np.float32)[None, :]))
            entry.append(jnp.asarray(np.asarray(p["beta"], np.float32)[None, :]))
        ops.append(tuple(entry))
    return ops


def _nbytes(a):
    return int(np.prod(a.shape)) * np.dtype(a.dtype).itemsize


def temporal_generator_forward(x, ops):
    """x: (N, NOISE_SIZE), ops: prepare_operands(params) -> (N, 16, NOISE_SIZE)."""
    geoms = _layer_geoms()
    x2d = x.reshape(-1, NOISE_SIZE).astype(jnp.float32)     # == x.view(-1, 100, 1)
    n = x2d.shape[0]
    # pad the noise/contracting dim 100 -> 128 (lane-aligned layer-1 matmul)
    x2d = jnp.pad(x2d, ((0, 0), (0, geoms[0]["cin_pad"] - NOISE_SIZE)))

    inputs = [x2d]
    for entry in ops:
        inputs.extend(entry)

    L_f = geoms[-1]["L_out"]
    c_f = LAYERS[-1][1]
    c_f_pad = geoms[-1]["cout_pad"]

    scratch_shapes = [pltpu.VMEM((g["L_out"] * n, g["cout_pad"]), jnp.float32)
                      for g in geoms if g["has_bn"]]

    # VMEM limit from the actual footprint (operands + output + scratch) plus headroom,
    # instead of blanket 64 MiB (v7x has only 64 MiB physical per TensorCore).
    operand_bytes = sum(_nbytes(a) for a in inputs)
    out_bytes = L_f * n * c_f_pad * 4
    scr_bytes = sum(g["L_out"] * n * g["cout_pad"] * 4 for g in geoms if g["has_bn"])
    vmem_limit = int(min(32 * 1024 * 1024,
                         2 * (operand_bytes + out_bytes + scr_bytes) + 8 * 1024 * 1024))

    out2d = pl.pallas_call(
        _make_kernel(n, geoms),
        out_shape=jax.ShapeDtypeStruct((L_f * n, c_f_pad), jnp.float32),
        in_specs=[pl.BlockSpec(memory_space=pltpu.MemorySpace.VMEM)] * len(inputs),
        out_specs=pl.BlockSpec(memory_space=pltpu.MemorySpace.VMEM),
        scratch_shapes=scratch_shapes,
        compiler_params=pltpu.CompilerParams(vmem_limit_bytes=vmem_limit),
    )(*inputs)

    # (L*N, C_pad) time-major rows -> (N, L, C), drop channel padding.
    out = out2d.reshape(L_f, n, c_f_pad).transpose(1, 0, 2)[:, :, :c_f]
    return out


# ------------------------------- numpy reference ------------------------------------- #

def reference_forward(x_np, params):
    a = np.asarray(x_np, np.float64).reshape(-1, NOISE_SIZE, 1)    # NCL
    for p in params:
        w = np.asarray(p["w"], np.float64)
        b = np.asarray(p["b"], np.float64)
        s, pad = p["stride"], p["padding"]
        cin, cout, K = w.shape
        N, _, L_in = a.shape
        L_full = (L_in - 1) * s + K
        y = np.zeros((N, cout, L_full), np.float64)
        for li in range(L_in):
            xs = a[:, :, li]
            for k in range(K):
                y[:, :, li * s + k] += xs @ w[:, :, k]
        y = y[:, :, pad:L_full - pad] + b[None, :, None]
        if p["gamma"] is not None:
            g = np.asarray(p["gamma"], np.float64)[None, :, None]
            be = np.asarray(p["beta"], np.float64)[None, :, None]
            mean = y.mean(axis=(0, 2), keepdims=True)
            var = y.var(axis=(0, 2), keepdims=True)      # biased, like torch training BN
            y = (y - mean) / np.sqrt(var + BN_EPS) * g + be
            y = np.maximum(y, 0.0)
        else:
            y = np.tanh(y)
        a = y
    return np.transpose(a, (0, 2, 1))    # (N, L, C)


# ------------------------------- main ------------------------------------------------ #

if __name__ == "__main__":
    key = jax.random.PRNGKey(0)
    k_params, k_x = jax.random.split(key)
    params = init_params(k_params)

    # Hoisted, one-time lowering of the weights (done outside the jitted forward).
    ops = prepare_operands(params)

    N = 8
    x = jax.random.normal(k_x, (N, NOISE_SIZE), jnp.float32)

    forward = jax.jit(temporal_generator_forward)
    out = jax.block_until_ready(forward(x, ops))

    assert out.shape == (N, 16, NOISE_SIZE)
    ref = reference_forward(np.asarray(x), params)
    np.testing.assert_allclose(np.asarray(out), ref, rtol=1e-1, atol=1e-1)

    print("KERNEL_OK")
</pallas_src>

<mosaic_0001>
module attributes {stable_mosaic.version = 11 : i64} {
  func.func @kernel(%arg0: memref<8x128xf32, #tpu.memory_space<vmem>>, %arg1: memref<128x512xbf16, #tpu.memory_space<vmem>>, %arg2: memref<1x512xf32, #tpu.memory_space<vmem>>, %arg3: memref<1x512xf32, #tpu.memory_space<vmem>>, %arg4: memref<1x512xf32, #tpu.memory_space<vmem>>, %arg5: memref<512x512xbf16, #tpu.memory_space<vmem>>, %arg6: memref<1x256xf32, #tpu.memory_space<vmem>>, %arg7: memref<1x256xf32, #tpu.memory_space<vmem>>, %arg8: memref<1x256xf32, #tpu.memory_space<vmem>>, %arg9: memref<256x512xbf16, #tpu.memory_space<vmem>>, %arg10: memref<1x128xf32, #tpu.memory_space<vmem>>, %arg11: memref<1x128xf32, #tpu.memory_space<vmem>>, %arg12: memref<1x128xf32, #tpu.memory_space<vmem>>, %arg13: memref<128x512xbf16, #tpu.memory_space<vmem>>, %arg14: memref<1x128xf32, #tpu.memory_space<vmem>>, %arg15: memref<1x128xf32, #tpu.memory_space<vmem>>, %arg16: memref<1x128xf32, #tpu.memory_space<vmem>>, %arg17: memref<128x512xbf16, #tpu.memory_space<vmem>>, %arg18: memref<1x128xf32, #tpu.memory_space<vmem>>, %arg19: memref<128x128xf32, #tpu.memory_space<vmem>>, %arg20: memref<8x512xf32, #tpu.memory_space<vmem>>, %arg21: memref<16x256xf32, #tpu.memory_space<vmem>>, %arg22: memref<32x128xf32, #tpu.memory_space<vmem>>, %arg23: memref<64x128xf32, #tpu.memory_space<vmem>>) attributes {dimension_semantics = [], scalar_prefetch = 0 : i64, scratch_operands = 4 : i64, tpu.core_type = #tpu.core_type<tc>} {
    %c0 = arith.constant 0 : index
    %c0_0 = arith.constant 0 : index
    %0 = vector.load %arg0[%c0, %c0_0] : memref<8x128xf32, #tpu.memory_space<vmem>>, vector<8x128xf32>
    %1 = arith.truncf %0 : vector<8x128xf32> to vector<8x128xbf16>
    %c0_1 = arith.constant 0 : index
    %c0_2 = arith.constant 0 : index
    %2 = vector.load %arg1[%c0_1, %c0_2] : memref<128x512xbf16, #tpu.memory_space<vmem>>, vector<128x512xbf16>
    %cst = arith.constant dense<0.000000e+00> : vector<8x512xf32>
    %3 = tpu.matmul %1, %2, %cst {dimension_numbers = #tpu.dot_dimension_numbers<[1], [0], [0], [1], [0, 0, 1, 1], [], []>} : vector<8x128xbf16>, vector<128x512xbf16>, vector<8x512xf32> -> vector<8x512xf32>
    %c0_3 = arith.constant 0 : index
    %c0_4 = arith.constant 0 : index
    %4 = vector.load %arg2[%c0_3, %c0_4] : memref<1x512xf32, #tpu.memory_space<vmem>>, vector<1x512xf32>
    %5 = vector.broadcast %4 : vector<1x512xf32> to vector<8x512xf32>
    %6 = arith.addf %3, %5 : vector<8x512xf32>
    %c0_5 = arith.constant 0 : index
    %c0_6 = arith.constant 0 : index
    %7 = vector.load %arg20[%c0_5, %c0_6] : memref<8x512xf32, #tpu.memory_space<vmem>>, vector<8x512xf32>
    tpu.vector_store %arg20[%c0_5, %c0_6], %6 {strides = array<i32>} : memref<8x512xf32, #tpu.memory_space<vmem>>, vector<8x512xf32>,
    %c0_7 = arith.constant 0 : index
    %c0_8 = arith.constant 0 : index
    %8 = vector.load %arg20[%c0_7, %c0_8] : memref<8x512xf32, #tpu.memory_space<vmem>>, vector<8x512xf32>
    %c0_9 = arith.constant 0 : index
    %c0_10 = arith.constant 0 : index
    %9 = vector.load %arg3[%c0_9, %c0_10] : memref<1x512xf32, #tpu.memory_space<vmem>>, vector<1x512xf32>
    %c0_11 = arith.constant 0 : index
    %c0_12 = arith.constant 0 : index
    %10 = vector.load %arg4[%c0_11, %c0_12] : memref<1x512xf32, #tpu.memory_space<vmem>>, vector<1x512xf32>
    %cst_13 = arith.constant dense<0.000000e+00> : vector<512xf32>
    %11 = vector.multi_reduction <add>, %8, %cst_13 [0] : vector<8x512xf32> to vector<512xf32>
    %12 = vector.shape_cast %11 : vector<512xf32> to vector<1x512xf32>
    %cst_14 = arith.constant 1.250000e-01 : f32
    %13 = vector.broadcast %cst_14 : f32 to vector<1x512xf32>
    %14 = arith.mulf %12, %13 : vector<1x512xf32>
    %15 = vector.broadcast %14 : vector<1x512xf32> to vector<8x512xf32>
    %16 = arith.subf %8, %15 : vector<8x512xf32>
    %17 = arith.mulf %16, %16 : vector<8x512xf32>
    %cst_15 = arith.constant dense<0.000000e+00> : vector<512xf32>
    %18 = vector.multi_reduction <add>, %17, %cst_15 [0] : vector<8x512xf32> to vector<512xf32>
    %19 = vector.shape_cast %18 : vector<512xf32> to vector<1x512xf32>
    %cst_16 = arith.constant 1.250000e-01 : f32
    %20 = vector.broadcast %cst_16 : f32 to vector<1x512xf32>
    %21 = arith.mulf %19, %20 : vector<1x512xf32>
    %cst_17 = arith.constant 9.99999974E-6 : f32
    %22 = vector.broadcast %cst_17 : f32 to vector<1x512xf32>
    %23 = arith.addf %21, %22 : vector<1x512xf32>
    %24 = math.rsqrt %23 : vector<1x512xf32>
    %25 = vector.broadcast %24 : vector<1x512xf32> to vector<8x512xf32>
    %26 = arith.mulf %16, %25 : vector<8x512xf32>
    %27 = vector.broadcast %9 : vector<1x512xf32> to vector<8x512xf32>
    %28 = arith.mulf %26, %27 : vector<8x512xf32>
    %29 = vector.broadcast %10 : vector<1x512xf32> to vector<8x512xf32>
    %30 = arith.addf %28, %29 : vector<8x512xf32>
    %cst_18 = arith.constant 0.000000e+00 : f32
    %31 = vector.broadcast %cst_18 : f32 to vector<8x512xf32>
    %32 = arith.maximumf %30, %31 : vector<8x512xf32>
    %33 = arith.truncf %32 : vector<8x512xf32> to vector<8x512xbf16>
    %c0_19 = arith.constant 0 : index
    %c0_20 = arith.constant 0 : index
    %34 = vector.load %arg5[%c0_19, %c0_20] : memref<512x512xbf16, #tpu.memory_space<vmem>>, vector<512x512xbf16>
    %cst_21 = arith.constant dense<0.000000e+00> : vector<8x512xf32>
    %35 = tpu.matmul %33, %34, %cst_21 {dimension_numbers = #tpu.dot_dimension_numbers<[1], [0], [0], [1], [0, 0, 1, 1], [], []>} : vector<8x512xbf16>, vector<512x512xbf16>, vector<8x512xf32> -> vector<8x512xf32>
    %c0_22 = arith.constant 0 : index
    %c0_23 = arith.constant 0 : index
    %36 = vector.load %arg6[%c0_22, %c0_23] : memref<1x256xf32, #tpu.memory_space<vmem>>, vector<1x256xf32>
    %37 = vector.extract_strided_slice %35 {offsets = [0, 0], sizes = [8, 256], strides = [1, 1]} : vector<8x512xf32> to vector<8x256xf32>
    %38 = vector.broadcast %36 : vector<1x256xf32> to vector<8x256xf32>
    %39 = arith.addf %37, %38 : vector<8x256xf32>
    %c0_24 = arith.constant 0 : index
    %c0_25 = arith.constant 0 : index
    %40 = vector.load %arg21[%c0_24, %c0_25] : memref<16x256xf32, #tpu.memory_space<vmem>>, vector<8x256xf32>
    tpu.vector_store %arg21[%c0_24, %c0_25], %39 {strides = array<i32>} : memref<16x256xf32, #tpu.memory_space<vmem>>, vector<8x256xf32>,
    %41 = vector.extract_strided_slice %35 {offsets = [0, 256], sizes = [8, 256], strides = [1, 1]} : vector<8x512xf32> to vector<8x256xf32>
    %42 = vector.broadcast %36 : vector<1x256xf32> to vector<8x256xf32>
    %43 = arith.addf %41, %42 : vector<8x256xf32>
    %c8 = arith.constant 8 : index
    %c0_26 = arith.constant 0 : index
    %44 = vector.load %arg21[%c8, %c0_26] : memref<16x256xf32, #tpu.memory_space<vmem>>, vector<8x256xf32>
    tpu.vector_store %arg21[%c8, %c0_26], %43 {strides = array<i32>} : memref<16x256xf32, #tpu.memory_space<vmem>>, vector<8x256xf32>,
    %c0_27 = arith.constant 0 : index
    %c0_28 = arith.constant 0 : index
    %45 = vector.load %arg21[%c0_27, %c0_28] : memref<16x256xf32, #tpu.memory_space<vmem>>, vector<16x256xf32>
    %c0_29 = arith.constant 0 : index
    %c0_30 = arith.constant 0 : index
    %46 = vector.load %arg7[%c0_29, %c0_30] : memref<1x256xf32, #tpu.memory_space<vmem>>, vector<1x256xf32>
    %c0_31 = arith.constant 0 : index
    %c0_32 = arith.constant 0 : index
    %47 = vector.load %arg8[%c0_31, %c0_32] : memref<1x256xf32, #tpu.memory_space<vmem>>, vector<1x256xf32>
    %cst_33 = arith.constant dense<0.000000e+00> : vector<256xf32>
    %48 = vector.multi_reduction <add>, %45, %cst_33 [0] : vector<16x256xf32> to vector<256xf32>
    %49 = vector.shape_cast %48 : vector<256xf32> to vector<1x256xf32>
    %cst_34 = arith.constant 6.250000e-02 : f32
    %50 = vector.broadcast %cst_34 : f32 to vector<1x256xf32>
    %51 = arith.mulf %49, %50 : vector<1x256xf32>
    %52 = vector.broadcast %51 : vector<1x256xf32> to vector<16x256xf32>
    %53 = arith.subf %45, %52 : vector<16x256xf32>
    %54 = arith.mulf %53, %53 : vector<16x256xf32>
    %cst_35 = arith.constant dense<0.000000e+00> : vector<256xf32>
    %55 = vector.multi_reduction <add>, %54, %cst_35 [0] : vector<16x256xf32> to vector<256xf32>
    %56 = vector.shape_cast %55 : vector<256xf32> to vector<1x256xf32>
    %cst_36 = arith.constant 6.250000e-02 : f32
    %57 = vector.broadcast %cst_36 : f32 to vector<1x256xf32>
    %58 = arith.mulf %56, %57 : vector<1x256xf32>
    %cst_37 = arith.constant 9.99999974E-6 : f32
    %59 = vector.broadcast %cst_37 : f32 to vector<1x256xf32>
    %60 = arith.addf %58, %59 : vector<1x256xf32>
    %61 = math.rsqrt %60 : vector<1x256xf32>
    %62 = vector.broadcast %61 : vector<1x256xf32> to vector<16x256xf32>
    %63 = arith.mulf %53, %62 : vector<16x256xf32>
    %64 = vector.broadcast %46 : vector<1x256xf32> to vector<16x256xf32>
    %65 = arith.mulf %63, %64 : vector<16x256xf32>
    %66 = vector.broadcast %47 : vector<1x256xf32> to vector<16x256xf32>
    %67 = arith.addf %65, %66 : vector<16x256xf32>
    %cst_38 = arith.constant 0.000000e+00 : f32
    %68 = vector.broadcast %cst_38 : f32 to vector<16x256xf32>
    %69 = arith.maximumf %67, %68 : vector<16x256xf32>
    %70 = arith.truncf %69 : vector<16x256xf32> to vector<16x256xbf16>
    %c0_39 = arith.constant 0 : index
    %c0_40 = arith.constant 0 : index
    %71 = vector.load %arg9[%c0_39, %c0_40] : memref<256x512xbf16, #tpu.memory_space<vmem>>, vector<256x512xbf16>
    %cst_41 = arith.constant dense<0.000000e+00> : vector<16x512xf32>
    %72 = tpu.matmul %70, %71, %cst_41 {dimension_numbers = #tpu.dot_dimension_numbers<[1], [0], [0], [1], [0, 0, 1, 1], [], []>} : vector<16x256xbf16>, vector<256x512xbf16>, vector<16x512xf32> -> vector<16x512xf32>
    %c0_42 = arith.constant 0 : index
    %c0_43 = arith.constant 0 : index
    %73 = vector.load %arg10[%c0_42, %c0_43] : memref<1x128xf32, #tpu.memory_space<vmem>>, vector<1x128xf32>
    %74 = vector.extract_strided_slice %72 {offsets = [0, 128], sizes = [8, 128], strides = [1, 1]} : vector<16x512xf32> to vector<8x128xf32>
    %75 = vector.broadcast %73 : vector<1x128xf32> to vector<8x128xf32>
    %76 = arith.addf %74, %75 : vector<8x128xf32>
    %c0_44 = arith.constant 0 : index
    %c0_45 = arith.constant 0 : index
    %77 = vector.load %arg22[%c0_44, %c0_45] : memref<32x128xf32, #tpu.memory_space<vmem>>, vector<8x128xf32>
    tpu.vector_store %arg22[%c0_44, %c0_45], %76 {strides = array<i32>} : memref<32x128xf32, #tpu.memory_space<vmem>>, vector<8x128xf32>,
    %78 = vector.extract_strided_slice %72 {offsets = [0, 256], sizes = [8, 128], strides = [1, 1]} : vector<16x512xf32> to vector<8x128xf32>
    %79 = vector.extract_strided_slice %72 {offsets = [8, 0], sizes = [8, 128], strides = [1, 1]} : vector<16x512xf32> to vector<8x128xf32>
    %80 = arith.addf %78, %79 : vector<8x128xf32>
    %81 = vector.broadcast %73 : vector<1x128xf32> to vector<8x128xf32>
    %82 = arith.addf %80, %81 : vector<8x128xf32>
    %c8_46 = arith.constant 8 : index
    %c0_47 = arith.constant 0 : index
    %83 = vector.load %arg22[%c8_46, %c0_47] : memref<32x128xf32, #tpu.memory_space<vmem>>, vector<8x128xf32>
    tpu.vector_store %arg22[%c8_46, %c0_47], %82 {strides = array<i32>} : memref<32x128xf32, #tpu.memory_space<vmem>>, vector<8x128xf32>,
    %84 = vector.extract_strided_slice %72 {offsets = [0, 384], sizes = [8, 128], strides = [1, 1]} : vector<16x512xf32> to vector<8x128xf32>
    %85 = vector.extract_strided_slice %72 {offsets = [8, 128], sizes = [8, 128], strides = [1, 1]} : vector<16x512xf32> to vector<8x128xf32>
    %86 = arith.addf %84, %85 : vector<8x128xf32>
    %87 = vector.broadcast %73 : vector<1x128xf32> to vector<8x128xf32>
    %88 = arith.addf %86, %87 : vector<8x128xf32>
    %c16 = arith.constant 16 : index
    %c0_48 = arith.constant 0 : index
    %89 = vector.load %arg22[%c16, %c0_48] : memref<32x128xf32, #tpu.memory_space<vmem>>, vector<8x128xf32>
    tpu.vector_store %arg22[%c16, %c0_48], %88 {strides = array<i32>} : memref<32x128xf32, #tpu.memory_space<vmem>>, vector<8x128xf32>,
    %90 = vector.extract_strided_slice %72 {offsets = [8, 256], sizes = [8, 128], strides = [1, 1]} : vector<16x512xf32> to vector<8x128xf32>
    %91 = vector.broadcast %73 : vector<1x128xf32> to vector<8x128xf32>
    %92 = arith.addf %90, %91 : vector<8x128xf32>
    %c24 = arith.constant 24 : index
    %c0_49 = arith.constant 0 : index
    %93 = vector.load %arg22[%c24, %c0_49] : memref<32x128xf32, #tpu.memory_space<vmem>>, vector<8x128xf32>
    tpu.vector_store %arg22[%c24, %c0_49], %92 {strides = array<i32>} : memref<32x128xf32, #tpu.memory_space<vmem>>, vector<8x128xf32>,
    %c0_50 = arith.constant 0 : index
    %c0_51 = arith.constant 0 : index
    %94 = vector.load %arg22[%c0_50, %c0_51] : memref<32x128xf32, #tpu.memory_space<vmem>>, vector<32x128xf32>
    %c0_52 = arith.constant 0 : index
    %c0_53 = arith.constant 0 : index
    %95 = vector.load %arg11[%c0_52, %c0_53] : memref<1x128xf32, #tpu.memory_space<vmem>>, vector<1x128xf32>
    %c0_54 = arith.constant 0 : index
    %c0_55 = arith.constant 0 : index
    %96 = vector.load %arg12[%c0_54, %c0_55] : memref<1x128xf32, #tpu.memory_space<vmem>>, vector<1x128xf32>
    %cst_56 = arith.constant dense<0.000000e+00> : vector<128xf32>
    %97 = vector.multi_reduction <add>, %94, %cst_56 [0] : vector<32x128xf32> to vector<128xf32>
    %98 = vector.shape_cast %97 : vector<128xf32> to vector<1x128xf32>
    %cst_57 = arith.constant 3.125000e-02 : f32
    %99 = vector.broadcast %cst_57 : f32 to vector<1x128xf32>
    %100 = arith.mulf %98, %99 : vector<1x128xf32>
    %101 = vector.broadcast %100 : vector<1x128xf32> to vector<32x128xf32>
    %102 = arith.subf %94, %101 : vector<32x128xf32>
    %103 = arith.mulf %102, %102 : vector<32x128xf32>
    %cst_58 = arith.constant dense<0.000000e+00> : vector<128xf32>
    %104 = vector.multi_reduction <add>, %103, %cst_58 [0] : vector<32x128xf32> to vector<128xf32>
    %105 = vector.shape_cast %104 : vector<128xf32> to vector<1x128xf32>
    %cst_59 = arith.constant 3.125000e-02 : f32
    %106 = vector.broadcast %cst_59 : f32 to vector<1x128xf32>
    %107 = arith.mulf %105, %106 : vector<1x128xf32>
    %cst_60 = arith.constant 9.99999974E-6 : f32
    %108 = vector.broadcast %cst_60 : f32 to vector<1x128xf32>
    %109 = arith.addf %107, %108 : vector<1x128xf32>
    %110 = math.rsqrt %109 : vector<1x128xf32>
    %111 = vector.broadcast %110 : vector<1x128xf32> to vector<32x128xf32>
    %112 = arith.mulf %102, %111 : vector<32x128xf32>
    %113 = vector.broadcast %95 : vector<1x128xf32> to vector<32x128xf32>
    %114 = arith.mulf %112, %113 : vector<32x128xf32>
    %115 = vector.broadcast %96 : vector<1x128xf32> to vector<32x128xf32>
    %116 = arith.addf %114, %115 : vector<32x128xf32>
    %cst_61 = arith.constant 0.000000e+00 : f32
    %117 = vector.broadcast %cst_61 : f32 to vector<32x128xf32>
    %118 = arith.maximumf %116, %117 : vector<32x128xf32>
    %119 = arith.truncf %118 : vector<32x128xf32> to vector<32x128xbf16>
    %c0_62 = arith.constant 0 : index
    %c0_63 = arith.constant 0 : index
    %120 = vector.load %arg13[%c0_62, %c0_63] : memref<128x512xbf16, #tpu.memory_space<vmem>>, vector<128x512xbf16>
    %cst_64 = arith.constant dense<0.000000e+00> : vector<32x512xf32>
    %121 = tpu.matmul %119, %120, %cst_64 {dimension_numbers = #tpu.dot_dimension_numbers<[1], [0], [0], [1], [0, 0, 1, 1], [], []>} : vector<32x128xbf16>, vector<128x512xbf16>, vector<32x512xf32> -> vector<32x512xf32>
    %c0_65 = arith.constant 0 : index
    %c0_66 = arith.constant 0 : index
    %122 = vector.load %arg14[%c0_65, %c0_66] : memref<1x128xf32, #tpu.memory_space<vmem>>, vector<1x128xf32>
    %123 = vector.extract_strided_slice %121 {offsets = [0, 128], sizes = [8, 128], strides = [1, 1]} : vector<32x512xf32> to vector<8x128xf32>
    %124 = vector.broadcast %122 : vector<1x128xf32> to vector<8x128xf32>
    %125 = arith.addf %123, %124 : vector<8x128xf32>
    %c0_67 = arith.constant 0 : index
    %c0_68 = arith.constant 0 : index
    %126 = vector.load %arg23[%c0_67, %c0_68] : memref<64x128xf32, #tpu.memory_space<vmem>>, vector<8x128xf32>
    tpu.vector_store %arg23[%c0_67, %c0_68], %125 {strides = array<i32>} : memref<64x128xf32, #tpu.memory_space<vmem>>, vector<8x128xf32>,
    %127 = vector.extract_strided_slice %121 {offsets = [0, 256], sizes = [8, 128], strides = [1, 1]} : vector<32x512xf32> to vector<8x128xf32>
    %128 = vector.extract_strided_slice %121 {offsets = [8, 0], sizes = [8, 128], strides = [1, 1]} : vector<32x512xf32> to vector<8x128xf32>
    %129 = arith.addf %127, %128 : vector<8x128xf32>
    %130 = vector.broadcast %122 : vector<1x128xf32> to vector<8x128xf32>
    %131 = arith.addf %129, %130 : vector<8x128xf32>
    %c8_69 = arith.constant 8 : index
    %c0_70 = arith.constant 0 : index
    %132 = vector.load %arg23[%c8_69, %c0_70] : memref<64x128xf32, #tpu.memory_space<vmem>>, vector<8x128xf32>
    tpu.vector_store %arg23[%c8_69, %c0_70], %131 {strides = array<i32>} : memref<64x128xf32, #tpu.memory_space<vmem>>, vector<8x128xf32>,
    %133 = vector.extract_strided_slice %121 {offsets = [0, 384], sizes = [8, 128], strides = [1, 1]} : vector<32x512xf32> to vector<8x128xf32>
    %134 = vector.extract_strided_slice %121 {offsets = [8, 128], sizes = [8, 128], strides = [1, 1]} : vector<32x512xf32> to vector<8x128xf32>
    %135 = arith.addf %133, %134 : vector<8x128xf32>
    %136 = vector.broadcast %122 : vector<1x128xf32> to vector<8x128xf32>
    %137 = arith.addf %135, %136 : vector<8x128xf32>
    %c16_71 = arith.constant 16 : index
    %c0_72 = arith.constant 0 : index
    %138 = vector.load %arg23[%c16_71, %c0_72] : memref<64x128xf32, #tpu.memory_space<vmem>>, vector<8x128xf32>
    tpu.vector_store %arg23[%c16_71, %c0_72], %137 {strides = array<i32>} : memref<64x128xf32, #tpu.memory_space<vmem>>, vector<8x128xf32>,
    %139 = vector.extract_strided_slice %121 {offsets = [8, 256], sizes = [8, 128], strides = [1, 1]} : vector<32x512xf32> to vector<8x128xf32>
    %140 = vector.extract_strided_slice %121 {offsets = [16, 0], sizes = [8, 128], strides = [1, 1]} : vector<32x512xf32> to vector<8x128xf32>
    %141 = arith.addf %139, %140 : vector<8x128xf32>
    %142 = vector.broadcast %122 : vector<1x128xf32> to vector<8x128xf32>
    %143 = arith.addf %141, %142 : vector<8x128xf32>
    %c24_73 = arith.constant 24 : index
    %c0_74 = arith.constant 0 : index
    %144 = vector.load %arg23[%c24_73, %c0_74] : memref<64x128xf32, #tpu.memory_space<vmem>>, vector<8x128xf32>
    tpu.vector_store %arg23[%c24_73, %c0_74], %143 {strides = array<i32>} : memref<64x128xf32, #tpu.memory_space<vmem>>, vector<8x128xf32>,
    %145 = vector.extract_strided_slice %121 {offsets = [8, 384], sizes = [8, 128], strides = [1, 1]} : vector<32x512xf32> to vector<8x128xf32>
    %146 = vector.extract_strided_slice %121 {offsets = [16, 128], sizes = [8, 128], strides = [1, 1]} : vector<32x512xf32> to vector<8x128xf32>
    %147 = arith.addf %145, %146 : vector<8x128xf32>
    %148 = vector.broadcast %122 : vector<1x128xf32> to vector<8x128xf32>
    %149 = arith.addf %147, %148 : vector<8x128xf32>
    %c32 = arith.constant 32 : index
    %c0_75 = arith.constant 0 : index
    %150 = vector.load %arg23[%c32, %c0_75] : memref<64x128xf32, #tpu.memory_space<vmem>>, vector<8x128xf32>
    tpu.vector_store %arg23[%c32, %c0_75], %149 {strides = array<i32>} : memref<64x128xf32, #tpu.memory_space<vmem>>, vector<8x128xf32>,
    %151 = vector.extract_strided_slice %121 {offsets = [16, 256], sizes = [8, 128], strides = [1, 1]} : vector<32x512xf32> to vector<8x128xf32>
    %152 = vector.extract_strided_slice %121 {offsets = [24, 0], sizes = [8, 128], strides = [1, 1]} : vector<32x512xf32> to vector<8x128xf32>
    %153 = arith.addf %151, %152 : vector<8x128xf32>
    %154 = vector.broadcast %122 : vector<1x128xf32> to vector<8x128xf32>
    %155 = arith.addf %153, %154 : vector<8x128xf32>
    %c40 = arith.constant 40 : index
    %c0_76 = arith.constant 0 : index
    %156 = vector.load %arg23[%c40, %c0_76] : memref<64x128xf32, #tpu.memory_space<vmem>>, vector<8x128xf32>
    tpu.vector_store %arg23[%c40, %c0_76], %155 {strides = array<i32>} : memref<64x128xf32, #tpu.memory_space<vmem>>, vector<8x128xf32>,
    %157 = vector.extract_strided_slice %121 {offsets = [16, 384], sizes = [8, 128], strides = [1, 1]} : vector<32x512xf32> to vector<8x128xf32>
    %158 = vector.extract_strided_slice %121 {offsets = [24, 128], sizes = [8, 128], strides = [1, 1]} : vector<32x512xf32> to vector<8x128xf32>
    %159 = arith.addf %157, %158 : vector<8x128xf32>
    %160 = vector.broadcast %122 : vector<1x128xf32> to vector<8x128xf32>
    %161 = arith.addf %159, %160 : vector<8x128xf32>
    %c48 = arith.constant 48 : index
    %c0_77 = arith.constant 0 : index
    %162 = vector.load %arg23[%c48, %c0_77] : memref<64x128xf32, #tpu.memory_space<vmem>>, vector<8x128xf32>
    tpu.vector_store %arg23[%c48, %c0_77], %161 {strides = array<i32>} : memref<64x128xf32, #tpu.memory_space<vmem>>, vector<8x128xf32>,
    %163 = vector.extract_strided_slice %121 {offsets = [24, 256], sizes = [8, 128], strides = [1, 1]} : vector<32x512xf32> to vector<8x128xf32>
    %164 = vector.broadcast %122 : vector<1x128xf32> to vector<8x128xf32>
    %165 = arith.addf %163, %164 : vector<8x128xf32>
    %c56 = arith.constant 56 : index
    %c0_78 = arith.constant 0 : index
    %166 = vector.load %arg23[%c56, %c0_78] : memref<64x128xf32, #tpu.memory_space<vmem>>, vector<8x128xf32>
    tpu.vector_store %arg23[%c56, %c0_78], %165 {strides = array<i32>} : memref<64x128xf32, #tpu.memory_space<vmem>>, vector<8x128xf32>,
    %c0_79 = arith.constant 0 : index
    %c0_80 = arith.constant 0 : index
    %167 = vector.load %arg23[%c0_79, %c0_80] : memref<64x128xf32, #tpu.memory_space<vmem>>, vector<64x128xf32>
    %c0_81 = arith.constant 0 : index
    %c0_82 = arith.constant 0 : index
    %168 = vector.load %arg15[%c0_81, %c0_82] : memref<1x128xf32, #tpu.memory_space<vmem>>, vector<1x128xf32>
    %c0_83 = arith.constant 0 : index
    %c0_84 = arith.constant 0 : index
    %169 = vector.load %arg16[%c0_83, %c0_84] : memref<1x128xf32, #tpu.memory_space<vmem>>, vector<1x128xf32>
    %cst_85 = arith.constant dense<0.000000e+00> : vector<128xf32>
    %170 = vector.multi_reduction <add>, %167, %cst_85 [0] : vector<64x128xf32> to vector<128xf32>
    %171 = vector.shape_cast %170 : vector<128xf32> to vector<1x128xf32>
    %cst_86 = arith.constant 1.562500e-02 : f32
    %172 = vector.broadcast %cst_86 : f32 to vector<1x128xf32>
    %173 = arith.mulf %171, %172 : vector<1x128xf32>
    %174 = vector.broadcast %173 : vector<1x128xf32> to vector<64x128xf32>
    %175 = arith.subf %167, %174 : vector<64x128xf32>
    %176 = arith.mulf %175, %175 : vector<64x128xf32>
    %cst_87 = arith.constant dense<0.000000e+00> : vector<128xf32>
    %177 = vector.multi_reduction <add>, %176, %cst_87 [0] : vector<64x128xf32> to vector<128xf32>
    %178 = vector.shape_cast %177 : vector<128xf32> to vector<1x128xf32>
    %cst_88 = arith.constant 1.562500e-02 : f32
    %179 = vector.broadcast %cst_88 : f32 to vector<1x128xf32>
    %180 = arith.mulf %178, %179 : vector<1x128xf32>
    %cst_89 = arith.constant 9.99999974E-6 : f32
    %181 = vector.broadcast %cst_89 : f32 to vector<1x128xf32>
    %182 = arith.addf %180, %181 : vector<1x128xf32>
    %183 = math.rsqrt %182 : vector<1x128xf32>
    %184 = vector.broadcast %183 : vector<1x128xf32> to vector<64x128xf32>
    %185 = arith.mulf %175, %184 : vector<64x128xf32>
    %186 = vector.broadcast %168 : vector<1x128xf32> to vector<64x128xf32>
    %187 = arith.mulf %185, %186 : vector<64x128xf32>
    %188 = vector.broadcast %169 : vector<1x128xf32> to vector<64x128xf32>
    %189 = arith.addf %187, %188 : vector<64x128xf32>
    %cst_90 = arith.constant 0.000000e+00 : f32
    %190 = vector.broadcast %cst_90 : f32 to vector<64x128xf32>
    %191 = arith.maximumf %189, %190 : vector<64x128xf32>
    %192 = arith.truncf %191 : vector<64x128xf32> to vector<64x128xbf16>
    %c0_91 = arith.constant 0 : index
    %c0_92 = arith.constant 0 : index
    %193 = vector.load %arg17[%c0_91, %c0_92] : memref<128x512xbf16, #tpu.memory_space<vmem>>, vector<128x512xbf16>
    %cst_93 = arith.constant dense<0.000000e+00> : vector<64x512xf32>
    %194 = tpu.matmul %192, %193, %cst_93 {dimension_numbers = #tpu.dot_dimension_numbers<[1], [0], [0], [1], [0, 0, 1, 1], [], []>} : vector<64x128xbf16>, vector<128x512xbf16>, vector<64x512xf32> -> vector<64x512xf32>
    %c0_94 = arith.constant 0 : index
    %c0_95 = arith.constant 0 : index
    %195 = vector.load %arg18[%c0_94, %c0_95] : memref<1x128xf32, #tpu.memory_space<vmem>>, vector<1x128xf32>
    %196 = vector.extract_strided_slice %194 {offsets = [0, 128], sizes = [8, 128], strides = [1, 1]} : vector<64x512xf32> to vector<8x128xf32>
    %197 = vector.broadcast %195 : vector<1x128xf32> to vector<8x128xf32>
    %198 = arith.addf %196, %197 : vector<8x128xf32>
    %199 = math.tanh %198 : vector<8x128xf32>
    %c0_96 = arith.constant 0 : index
    %c0_97 = arith.constant 0 : index
    %200 = vector.load %arg19[%c0_96, %c0_97] : memref<128x128xf32, #tpu.memory_space<vmem>>, vector<8x128xf32>
    tpu.vector_store %arg19[%c0_96, %c0_97], %199 {strides = array<i32>} : memref<128x128xf32, #tpu.memory_space<vmem>>, vector<8x128xf32>,
    %201 = vector.extract_strided_slice %194 {offsets = [0, 256], sizes = [8, 128], strides = [1, 1]} : vector<64x512xf32> to vector<8x128xf32>
    %202 = vector.extract_strided_slice %194 {offsets = [8, 0], sizes = [8, 128], strides = [1, 1]} : vector<64x512xf32> to vector<8x128xf32>
    %203 = arith.addf %201, %202 : vector<8x128xf32>
    %204 = vector.broadcast %195 : vector<1x128xf32> to vector<8x128xf32>
    %205 = arith.addf %203, %204 : vector<8x128xf32>
    %206 = math.tanh %205 : vector<8x128xf32>
    %c8_98 = arith.constant 8 : index
    %c0_99 = arith.constant 0 : index
    %207 = vector.load %arg19[%c8_98, %c0_99] : memref<128x128xf32, #tpu.memory_space<vmem>>, vector<8x128xf32>
    tpu.vector_store %arg19[%c8_98, %c0_99], %206 {strides = array<i32>} : memref<128x128xf32, #tpu.memory_space<vmem>>, vector<8x128xf32>,
    %208 = vector.extract_strided_slice %194 {offsets = [0, 384], sizes = [8, 128], strides = [1, 1]} : vector<64x512xf32> to vector<8x128xf32>
    %209 = vector.extract_strided_slice %194 {offsets = [8, 128], sizes = [8, 128], strides = [1, 1]} : vector<64x512xf32> to vector<8x128xf32>
    %210 = arith.addf %208, %209 : vector<8x128xf32>
    %211 = vector.broadcast %195 : vector<1x128xf32> to vector<8x128xf32>
    %212 = arith.addf %210, %211 : vector<8x128xf32>
    %213 = math.tanh %212 : vector<8x128xf32>
    %c16_100 = arith.constant 16 : index
    %c0_101 = arith.constant 0 : index
    %214 = vector.load %arg19[%c16_100, %c0_101] : memref<128x128xf32, #tpu.memory_space<vmem>>, vector<8x128xf32>
    tpu.vector_store %arg19[%c16_100, %c0_101], %213 {strides = array<i32>} : memref<128x128xf32, #tpu.memory_space<vmem>>, vector<8x128xf32>,
    %215 = vector.extract_strided_slice %194 {offsets = [8, 256], sizes = [8, 128], strides = [1, 1]} : vector<64x512xf32> to vector<8x128xf32>
    %216 = vector.extract_strided_slice %194 {offsets = [16, 0], sizes = [8, 128], strides = [1, 1]} : vector<64x512xf32> to vector<8x128xf32>
    %217 = arith.addf %215, %216 : vector<8x128xf32>
    %218 = vector.broadcast %195 : vector<1x128xf32> to vector<8x128xf32>
    %219 = arith.addf %217, %218 : vector<8x128xf32>
    %220 = math.tanh %219 : vector<8x128xf32>
    %c24_102 = arith.constant 24 : index
    %c0_103 = arith.constant 0 : index
    %221 = vector.load %arg19[%c24_102, %c0_103] : memref<128x128xf32, #tpu.memory_space<vmem>>, vector<8x128xf32>
    tpu.vector_store %arg19[%c24_102, %c0_103], %220 {strides = array<i32>} : memref<128x128xf32, #tpu.memory_space<vmem>>, vector<8x128xf32>,
    %222 = vector.extract_strided_slice %194 {offsets = [8, 384], sizes = [8, 128], strides = [1, 1]} : vector<64x512xf32> to vector<8x128xf32>
    %223 = vector.extract_strided_slice %194 {offsets = [16, 128], sizes = [8, 128], strides = [1, 1]} : vector<64x512xf32> to vector<8x128xf32>
    %224 = arith.addf %222, %223 : vector<8x128xf32>
    %225 = vector.broadcast %195 : vector<1x128xf32> to vector<8x128xf32>
    %226 = arith.addf %224, %225 : vector<8x128xf32>
    %227 = math.tanh %226 : vector<8x128xf32>
    %c32_104 = arith.constant 32 : index
    %c0_105 = arith.constant 0 : index
    %228 = vector.load %arg19[%c32_104, %c0_105] : memref<128x128xf32, #tpu.memory_space<vmem>>, vector<8x128xf32>
    tpu.vector_store %arg19[%c32_104, %c0_105], %227 {strides = array<i32>} : memref<128x128xf32, #tpu.memory_space<vmem>>, vector<8x128xf32>,
    %229 = vector.extract_strided_slice %194 {offsets = [16, 256], sizes = [8, 128], strides = [1, 1]} : vector<64x512xf32> to vector<8x128xf32>
    %230 = vector.extract_strided_slice %194 {offsets = [24, 0], sizes = [8, 128], strides = [1, 1]} : vector<64x512xf32> to vector<8x128xf32>
    %231 = arith.addf %229, %230 : vector<8x128xf32>
    %232 = vector.broadcast %195 : vector<1x128xf32> to vector<8x128xf32>
    %233 = arith.addf %231, %232 : vector<8x128xf32>
    %234 = math.tanh %233 : vector<8x128xf32>
    %c40_106 = arith.constant 40 : index
    %c0_107 = arith.constant 0 : index
    %235 = vector.load %arg19[%c40_106, %c0_107] : memref<128x128xf32, #tpu.memory_space<vmem>>, vector<8x128xf32>
    tpu.vector_store %arg19[%c40_106, %c0_107], %234 {strides = array<i32>} : memref<128x128xf32, #tpu.memory_space<vmem>>, vector<8x128xf32>,
    %236 = vector.extract_strided_slice %194 {offsets = [16, 384], sizes = [8, 128], strides = [1, 1]} : vector<64x512xf32> to vector<8x128xf32>
    %237 = vector.extract_strided_slice %194 {offsets = [24, 128], sizes = [8, 128], strides = [1, 1]} : vector<64x512xf32> to vector<8x128xf32>
    %238 = arith.addf %236, %237 : vector<8x128xf32>
    %239 = vector.broadcast %195 : vector<1x128xf32> to vector<8x128xf32>
    %240 = arith.addf %238, %239 : vector<8x128xf32>
    %241 = math.tanh %240 : vector<8x128xf32>
    %c48_108 = arith.constant 48 : index
    %c0_109 = arith.constant 0 : index
    %242 = vector.load %arg19[%c48_108, %c0_109] : memref<128x128xf32, #tpu.memory_space<vmem>>, vector<8x128xf32>
    tpu.vector_store %arg19[%c48_108, %c0_109], %241 {strides = array<i32>} : memref<128x128xf32, #tpu.memory_space<vmem>>, vector<8x128xf32>,
    %243 = vector.extract_strided_slice %194 {offsets = [24, 256], sizes = [8, 128], strides = [1, 1]} : vector<64x512xf32> to vector<8x128xf32>
    %244 = vector.extract_strided_slice %194 {offsets = [32, 0], sizes = [8, 128], strides = [1, 1]} : vector<64x512xf32> to vector<8x128xf32>
    %245 = arith.addf %243, %244 : vector<8x128xf32>
    %246 = vector.broadcast %195 : vector<1x128xf32> to vector<8x128xf32>
    %247 = arith.addf %245, %246 : vector<8x128xf32>
    %248 = math.tanh %247 : vector<8x128xf32>
    %c56_110 = arith.constant 56 : index
    %c0_111 = arith.constant 0 : index
    %249 = vector.load %arg19[%c56_110, %c0_111] : memref<128x128xf32, #tpu.memory_space<vmem>>, vector<8x128xf32>
    tpu.vector_store %arg19[%c56_110, %c0_111], %248 {strides = array<i32>} : memref<128x128xf32, #tpu.memory_space<vmem>>, vector<8x128xf32>,
    %250 = vector.extract_strided_slice %194 {offsets = [24, 384], sizes = [8, 128], strides = [1, 1]} : vector<64x512xf32> to vector<8x128xf32>
    %251 = vector.extract_strided_slice %194 {offsets = [32, 128], sizes = [8, 128], strides = [1, 1]} : vector<64x512xf32> to vector<8x128xf32>
    %252 = arith.addf %250, %251 : vector<8x128xf32>
    %253 = vector.broadcast %195 : vector<1x128xf32> to vector<8x128xf32>
    %254 = arith.addf %252, %253 : vector<8x128xf32>
    %255 = math.tanh %254 : vector<8x128xf32>
    %c64 = arith.constant 64 : index
    %c0_112 = arith.constant 0 : index
    %256 = vector.load %arg19[%c64, %c0_112] : memref<128x128xf32, #tpu.memory_space<vmem>>, vector<8x128xf32>
    tpu.vector_store %arg19[%c64, %c0_112], %255 {strides = array<i32>} : memref<128x128xf32, #tpu.memory_space<vmem>>, vector<8x128xf32>,
    %257 = vector.extract_strided_slice %194 {offsets = [32, 256], sizes = [8, 128], strides = [1, 1]} : vector<64x512xf32> to vector<8x128xf32>
    %258 = vector.extract_strided_slice %194 {offsets = [40, 0], sizes = [8, 128], strides = [1, 1]} : vector<64x512xf32> to vector<8x128xf32>
    %259 = arith.addf %257, %258 : vector<8x128xf32>
    %260 = vector.broadcast %195 : vector<1x128xf32> to vector<8x128xf32>
    %261 = arith.addf %259, %260 : vector<8x128xf32>
    %262 = math.tanh %261 : vector<8x128xf32>
    %c72 = arith.constant 72 : index
    %c0_113 = arith.constant 0 : index
    %263 = vector.load %arg19[%c72, %c0_113] : memref<128x128xf32, #tpu.memory_space<vmem>>, vector<8x128xf32>
    tpu.vector_store %arg19[%c72, %c0_113], %262 {strides = array<i32>} : memref<128x128xf32, #tpu.memory_space<vmem>>, vector<8x128xf32>,
    %264 = vector.extract_strided_slice %194 {offsets = [32, 384], sizes = [8, 128], strides = [1, 1]} : vector<64x512xf32> to vector<8x128xf32>
    %265 = vector.extract_strided_slice %194 {offsets = [40, 128], sizes = [8, 128], strides = [1, 1]} : vector<64x512xf32> to vector<8x128xf32>
    %266 = arith.addf %264, %265 : vector<8x128xf32>
    %267 = vector.broadcast %195 : vector<1x128xf32> to vector<8x128xf32>
    %268 = arith.addf %266, %267 : vector<8x128xf32>
    %269 = math.tanh %268 : vector<8x128xf32>
    %c80 = arith.constant 80 : index
    %c0_114 = arith.constant 0 : index
    %270 = vector.load %arg19[%c80, %c0_114] : memref<128x128xf32, #tpu.memory_space<vmem>>, vector<8x128xf32>
    tpu.vector_store %arg19[%c80, %c0_114], %269 {strides = array<i32>} : memref<128x128xf32, #tpu.memory_space<vmem>>, vector<8x128xf32>,
    %271 = vector.extract_strided_slice %194 {offsets = [40, 256], sizes = [8, 128], strides = [1, 1]} : vector<64x512xf32> to vector<8x128xf32>
    %272 = vector.extract_strided_slice %194 {offsets = [48, 0], sizes = [8, 128], strides = [1, 1]} : vector<64x512xf32> to vector<8x128xf32>
    %273 = arith.addf %271, %272 : vector<8x128xf32>
    %274 = vector.broadcast %195 : vector<1x128xf32> to vector<8x128xf32>
    %275 = arith.addf %273, %274 : vector<8x128xf32>
    %276 = math.tanh %275 : vector<8x128xf32>
    %c88 = arith.constant 88 : index
    %c0_115 = arith.constant 0 : index
    %277 = vector.load %arg19[%c88, %c0_115] : memref<128x128xf32, #tpu.memory_space<vmem>>, vector<8x128xf32>
    tpu.vector_store %arg19[%c88, %c0_115], %276 {strides = array<i32>} : memref<128x128xf32, #tpu.memory_space<vmem>>, vector<8x128xf32>,
    %278 = vector.extract_strided_slice %194 {offsets = [40, 384], sizes = [8, 128], strides = [1, 1]} : vector<64x512xf32> to vector<8x128xf32>
    %279 = vector.extract_strided_slice %194 {offsets = [48, 128], sizes = [8, 128], strides = [1, 1]} : vector<64x512xf32> to vector<8x128xf32>
    %280 = arith.addf %278, %279 : vector<8x128xf32>
    %281 = vector.broadcast %195 : vector<1x128xf32> to vector<8x128xf32>
    %282 = arith.addf %280, %281 : vector<8x128xf32>
    %283 = math.tanh %282 : vector<8x128xf32>
    %c96 = arith.constant 96 : index
    %c0_116 = arith.constant 0 : index
    %284 = vector.load %arg19[%c96, %c0_116] : memref<128x128xf32, #tpu.memory_space<vmem>>, vector<8x128xf32>
    tpu.vector_store %arg19[%c96, %c0_116], %283 {strides = array<i32>} : memref<128x128xf32, #tpu.memory_space<vmem>>, vector<8x128xf32>,
    %285 = vector.extract_strided_slice %194 {offsets = [48, 256], sizes = [8, 128], strides = [1, 1]} : vector<64x512xf32> to vector<8x128xf32>
    %286 = vector.extract_strided_slice %194 {offsets = [56, 0], sizes = [8, 128], strides = [1, 1]} : vector<64x512xf32> to vector<8x128xf32>
    %287 = arith.addf %285, %286 : vector<8x128xf32>
    %288 = vector.broadcast %195 : vector<1x128xf32> to vector<8x128xf32>
    %289 = arith.addf %287, %288 : vector<8x128xf32>
    %290 = math.tanh %289 : vector<8x128xf32>
    %c104 = arith.constant 104 : index
    %c0_117 = arith.constant 0 : index
    %291 = vector.load %arg19[%c104, %c0_117] : memref<128x128xf32, #tpu.memory_space<vmem>>, vector<8x128xf32>
    tpu.vector_store %arg19[%c104, %c0_117], %290 {strides = array<i32>} : memref<128x128xf32, #tpu.memory_space<vmem>>, vector<8x128xf32>,
    %292 = vector.extract_strided_slice %194 {offsets = [48, 384], sizes = [8, 128], strides = [1, 1]} : vector<64x512xf32> to vector<8x128xf32>
    %293 = vector.extract_strided_slice %194 {offsets = [56, 128], sizes = [8, 128], strides = [1, 1]} : vector<64x512xf32> to vector<8x128xf32>
    %294 = arith.addf %292, %293 : vector<8x128xf32>
    %295 = vector.broadcast %195 : vector<1x128xf32> to vector<8x128xf32>
    %296 = arith.addf %294, %295 : vector<8x128xf32>
    %297 = math.tanh %296 : vector<8x128xf32>
    %c112 = arith.constant 112 : index
    %c0_118 = arith.constant 0 : index
    %298 = vector.load %arg19[%c112, %c0_118] : memref<128x128xf32, #tpu.memory_space<vmem>>, vector<8x128xf32>
    tpu.vector_store %arg19[%c112, %c0_118], %297 {strides = array<i32>} : memref<128x128xf32, #tpu.memory_space<vmem>>, vector<8x128xf32>,
    %299 = vector.extract_strided_slice %194 {offsets = [56, 256], sizes = [8, 128], strides = [1, 1]} : vector<64x512xf32> to vector<8x128xf32>
    %300 = vector.broadcast %195 : vector<1x128xf32> to vector<8x128xf32>
    %301 = arith.addf %299, %300 : vector<8x128xf32>
    %302 = math.tanh %301 : vector<8x128xf32>
    %c120 = arith.constant 120 : index
    %c0_119 = arith.constant 0 : index
    %303 = vector.load %arg19[%c120, %c0_119] : memref<128x128xf32, #tpu.memory_space<vmem>>, vector<8x128xf32>
    tpu.vector_store %arg19[%c120, %c0_119], %302 {strides = array<i32>} : memref<128x128xf32, #tpu.memory_space<vmem>>, vector<8x128xf32>,
    return
  }
}

</mosaic_0001>

<llo_original>
// kernel: temporal_generator_forward.1
$region0: #{temporal_generator_forward.1}
  #allocation0 [shape = 'u32[]', space=smem, size = 0x4, offset = 0x4, fixed_abs, tag = 'smem constant byte address 0x4 - core index']
  #allocation1 [shape = 'u32[144,128]{1,0:T(1,128)}', space=vmem, size = 0x12000, scoped, tag = 'internal scratch']
  #allocation2 [shape = 'f32[8,512]{1,0:T(8,128)}', space=vmem, size = 0x4000, scoped, tag = 'scratch operand']
  #allocation3 [shape = 'f32[16,256]{1,0:T(8,128)}', space=vmem, size = 0x4000, scoped, tag = 'scratch operand']
  #allocation4 [shape = 'f32[32,128]{1,0:T(8,128)}', space=vmem, size = 0x4000, scoped, tag = 'scratch operand']
  #allocation5 [shape = 'f32[64,128]{1,0:T(8,128)}', space=vmem, size = 0x8000, scoped, tag = 'scratch operand']
  %s0 = inlined_call_operand.vmem [shape: f32[8,128], index: 0, kind: input, shape index: {}]
  %s1 = inlined_call_operand.hbm [shape: bf16[128,512], index: 1, kind: input, shape index: {}]
  %s2 = inlined_call_operand.vmem [shape: f32[1,512], index: 2, kind: input, shape index: {}]
  %s3 = inlined_call_operand.vmem [shape: f32[1,512], index: 3, kind: input, shape index: {}]
  %s4 = inlined_call_operand.vmem [shape: f32[1,512], index: 4, kind: input, shape index: {}]
  %s5 = inlined_call_operand.hbm [shape: bf16[512,512], index: 5, kind: input, shape index: {}]
  %s6 = inlined_call_operand.vmem [shape: f32[1,256], index: 6, kind: input, shape index: {}]
  %s7 = inlined_call_operand.vmem [shape: f32[1,256], index: 7, kind: input, shape index: {}]
  %s8 = inlined_call_operand.vmem [shape: f32[1,256], index: 8, kind: input, shape index: {}]
  %s9 = inlined_call_operand.hbm [shape: bf16[256,512], index: 9, kind: input, shape index: {}]
  %s10 = inlined_call_operand.vmem [shape: f32[1,128], index: 10, kind: input, shape index: {}]
  %s11 = inlined_call_operand.vmem [shape: f32[1,128], index: 11, kind: input, shape index: {}]
  %s12 = inlined_call_operand.vmem [shape: f32[1,128], index: 12, kind: input, shape index: {}]
  %s13 = inlined_call_operand.hbm [shape: bf16[128,512], index: 13, kind: input, shape index: {}]
  %s14 = inlined_call_operand.vmem [shape: f32[1,128], index: 14, kind: input, shape index: {}]
  %s15 = inlined_call_operand.vmem [shape: f32[1,128], index: 15, kind: input, shape index: {}]
  %s16 = inlined_call_operand.vmem [shape: f32[1,128], index: 16, kind: input, shape index: {}]
  %s17 = inlined_call_operand.hbm [shape: bf16[128,512], index: 17, kind: input, shape index: {}]
  %s18 = inlined_call_operand.vmem [shape: f32[1,128], index: 18, kind: input, shape index: {}]
  %s19 = inlined_call_operand.vmem [shape: f32[128,128], index: 19, kind: output, shape index: {}]
  %s20 = sld [smem:[#allocation0]]
  $region106: #{temporal_generator_forward.1} parent=0
    _
  %s22 = ssub.s32 1, %s20
  %s23 = scalar_select 0, %s22, %s20
  $region1: #{temporal_generator_forward.1} parent=0
    #allocation6 [shape = 'u8[131072]{0}', space=vmem, size = 0x20000, scoped, tag = 'input window, operand 1, single buffered']
    #allocation7 [shape = 's32[1]{0}', space=sflag, size = 0x4, scoped, tag = 'scoped memory for temporal_generator_forward.1']
    #allocation8 [shape = 'u8[524288]{0}', space=vmem, size = 0x80000, scoped, tag = 'input window, operand 5, single buffered']
    #allocation9 [shape = 's32[1]{0}', space=sflag, size = 0x4, scoped, tag = 'scoped memory for temporal_generator_forward.1']
    #allocation10 [shape = 'u8[262144]{0}', space=vmem, size = 0x40000, scoped, tag = 'input window, operand 9, single buffered']
    #allocation11 [shape = 'u8[131072]{0}', space=vmem, size = 0x20000, scoped, tag = 'input window, operand 13, single buffered']
    #allocation12 [shape = 's32[1]{0}', space=sflag, size = 0x4, scoped, tag = 'scoped memory for temporal_generator_forward.1']
    #allocation13 [shape = 'u8[131072]{0}', space=vmem, size = 0x20000, scoped, tag = 'input window, operand 17, single buffered']
    %24 = vsyncpa [#allocation7], 0
    %25 = vsyncpa [#allocation9], 0
    %26 = vsyncpa [#allocation12], 0
    // Predicated region
    $region2: #{temporal_generator_forward.1} parent=1 // pred_check
      _
    $region3: #{temporal_generator_forward.1} parent=1 // pred_check_branch
      %28 = sbr.rel (0) target = $region5
    $region4: #{temporal_generator_forward.1} parent=1 // pred_region
      _
    $region5: #{temporal_generator_forward.1} parent=1 // pred_fallthru
      _
    // Predicated region
    $region6: #{temporal_generator_forward.1} parent=1 // pred_check
      _
    $region7: #{temporal_generator_forward.1} parent=1 // pred_check_branch
      %30 = sbr.rel (0) target = $region9
    $region8: #{temporal_generator_forward.1} parent=1 // pred_region
      %s32 = ssub.s32 4096, 4096
      %33 = vsyncadd [#allocation7], %s32
      %s34 = sshll.u32 [#allocation6], 4
      %s35 = int_to_ptr.vmem [resolvable:$true] %s34
      %40 = dma.hbm_to_vmem [thread:$0]  %s1, 4096, %s35, [#allocation7], 256, 256, 16
    $region9: #{temporal_generator_forward.1} parent=1 // pred_fallthru
      _
    // Predicated region
    $region10: #{temporal_generator_forward.1} parent=1 // pred_check
      _
    $region11: #{temporal_generator_forward.1} parent=1 // pred_check_branch
      %42 = sbr.rel (0) target = $region13
    $region12: #{temporal_generator_forward.1} parent=1 // pred_region
      _
    $region13: #{temporal_generator_forward.1} parent=1 // pred_fallthru
      _
    // Predicated region
    $region14: #{temporal_generator_forward.1} parent=1 // pred_check
      _
    $region15: #{temporal_generator_forward.1} parent=1 // pred_check_branch
      %44 = sbr.rel (0) target = $region17
    $region16: #{temporal_generator_forward.1} parent=1 // pred_region
      _
    $region17: #{temporal_generator_forward.1} parent=1 // pred_fallthru
      _
    // Predicated region
    $region18: #{temporal_generator_forward.1} parent=1 // pred_check
      _
    $region19: #{temporal_generator_forward.1} parent=1 // pred_check_branch
      %46 = sbr.rel (0) target = $region21
    $region20: #{temporal_generator_forward.1} parent=1 // pred_region
      _
    $region21: #{temporal_generator_forward.1} parent=1 // pred_fallthru
      _
    // Predicated region
    $region22: #{temporal_generator_forward.1} parent=1 // pred_check
      _
    $region23: #{temporal_generator_forward.1} parent=1 // pred_check_branch
      %48 = sbr.rel (0) target = $region25
    $region24: #{temporal_generator_forward.1} parent=1 // pred_region
      %s50 = ssub.s32 16384, 16384
      %51 = vsyncadd [#allocation9], %s50
      %s52 = sshll.u32 [#allocation8], 4
      %s53 = int_to_ptr.vmem [resolvable:$true] %s52
      %58 = dma.hbm_to_vmem [thread:$0]  %s5, 16384, %s53, [#allocation9], 256, 256, 16
    $region25: #{temporal_generator_forward.1} parent=1 // pred_fallthru
      _
    // Predicated region
    $region26: #{temporal_generator_forward.1} parent=1 // pred_check
      _
    $region27: #{temporal_generator_forward.1} parent=1 // pred_check_branch
      %60 = sbr.rel (0) target = $region29
    $region28: #{temporal_generator_forward.1} parent=1 // pred_region
      _
    $region29: #{temporal_generator_forward.1} parent=1 // pred_fallthru
      _
    // Predicated region
    $region30: #{temporal_generator_forward.1} parent=1 // pred_check
      _
    $region31: #{temporal_generator_forward.1} parent=1 // pred_check_branch
      %62 = sbr.rel (0) target = $region33
    $region32: #{temporal_generator_forward.1} parent=1 // pred_region
      _
    $region33: #{temporal_generator_forward.1} parent=1 // pred_fallthru
      _
    // Predicated region
    $region34: #{temporal_generator_forward.1} parent=1 // pred_check
      _
    $region35: #{temporal_generator_forward.1} parent=1 // pred_check_branch
      %64 = sbr.rel (0) target = $region37
    $region36: #{temporal_generator_forward.1} parent=1 // pred_region
      _
    $region37: #{temporal_generator_forward.1} parent=1 // pred_fallthru
      _
    // Predicated region
    $region38: #{temporal_generator_forward.1} parent=1 // pred_check
      _
    $region39: #{temporal_generator_forward.1} parent=1 // pred_check_branch
      %66 = sbr.rel (0) target = $region41
    $region40: #{temporal_generator_forward.1} parent=1 // pred_region
      %s68 = ssub.s32 8192, 8192
      %69 = vsyncadd [#allocation9], %s68
      %s70 = sshll.u32 [#allocation10], 4
      %s71 = int_to_ptr.vmem [resolvable:$true] %s70
      %76 = dma.hbm_to_vmem [thread:$0]  %s9, 8192, %s71, [#allocation9], 256, 256, 16
    $region41: #{temporal_generator_forward.1} parent=1 // pred_fallthru
      _
    // Predicated region
    $region42: #{temporal_generator_forward.1} parent=1 // pred_check
      _
    $region43: #{temporal_generator_forward.1} parent=1 // pred_check_branch
      %78 = sbr.rel (0) target = $region45
    $region44: #{temporal_generator_forward.1} parent=1 // pred_region
      _
    $region45: #{temporal_generator_forward.1} parent=1 // pred_fallthru
      _
    // Predicated region
    $region46: #{temporal_generator_forward.1} parent=1 // pred_check
      _
    $region47: #{temporal_generator_forward.1} parent=1 // pred_check_branch
      %80 = sbr.rel (0) target = $region49
    $region48: #{temporal_generator_forward.1} parent=1 // pred_region
      _
    $region49: #{temporal_generator_forward.1} parent=1 // pred_fallthru
      _
    // Predicated region
    $region50: #{temporal_generator_forward.1} parent=1 // pred_check
      _
    $region51: #{temporal_generator_forward.1} parent=1 // pred_check_branch
      %82 = sbr.rel (0) target = $region53
    $region52: #{temporal_generator_forward.1} parent=1 // pred_region
      _
    $region53: #{temporal_generator_forward.1} parent=1 // pred_fallthru
      _
    // Predicated region
    $region54: #{temporal_generator_forward.1} parent=1 // pred_check
      _
    $region55: #{temporal_generator_forward.1} parent=1 // pred_check_branch
      %84 = sbr.rel (0) target = $region57
    $region56: #{temporal_generator_forward.1} parent=1 // pred_region
      %s86 = ssub.s32 4096, 4096
      %87 = vsyncadd [#allocation12], %s86
      %s88 = sshll.u32 [#allocation11], 4
      %s89 = int_to_ptr.vmem [resolvable:$true] %s88
      %94 = dma.hbm_to_vmem [thread:$0]  %s13, 4096, %s89, [#allocation12], 256, 256, 16
    $region57: #{temporal_generator_forward.1} parent=1 // pred_fallthru
      _
    // Predicated region
    $region58: #{temporal_generator_forward.1} parent=1 // pred_check
      _
    $region59: #{temporal_generator_forward.1} parent=1 // pred_check_branch
      %96 = sbr.rel (0) target = $region61
    $region60: #{temporal_generator_forward.1} parent=1 // pred_region
      _
    $region61: #{temporal_generator_forward.1} parent=1 // pred_fallthru
      _
    // Predicated region
    $region62: #{temporal_generator_forward.1} parent=1 // pred_check
      _
    $region63: #{temporal_generator_forward.1} parent=1 // pred_check_branch
      %98 = sbr.rel (0) target = $region65
    $region64: #{temporal_generator_forward.1} parent=1 // pred_region
      _
    $region65: #{temporal_generator_forward.1} parent=1 // pred_fallthru
      _
    // Predicated region
    $region66: #{temporal_generator_forward.1} parent=1 // pred_check
      _
    $region67: #{temporal_generator_forward.1} parent=1 // pred_check_branch
      %100 = sbr.rel (0) target = $region69
    $region68: #{temporal_generator_forward.1} parent=1 // pred_region
      _
    $region69: #{temporal_generator_forward.1} parent=1 // pred_fallthru
      _
    // Predicated region
    $region70: #{temporal_generator_forward.1} parent=1 // pred_check
      _
    $region71: #{temporal_generator_forward.1} parent=1 // pred_check_branch
      %102 = sbr.rel (0) target = $region73
    $region72: #{temporal_generator_forward.1} parent=1 // pred_region
      %s104 = ssub.s32 4096, 4096
      %105 = vsyncadd [#allocation12], %s104
      %s106 = sshll.u32 [#allocation13], 4
      %s107 = int_to_ptr.vmem [resolvable:$true] %s106
      %112 = dma.hbm_to_vmem [thread:$0]  %s17, 4096, %s107, [#allocation12], 256, 256, 16
    $region73: #{temporal_generator_forward.1} parent=1 // pred_fallthru
      _
    // Predicated region
    $region74: #{temporal_generator_forward.1} parent=1 // pred_check
      _
    $region75: #{temporal_generator_forward.1} parent=1 // pred_check_branch
      %114 = sbr.rel (0) target = $region77
    $region76: #{temporal_generator_forward.1} parent=1 // pred_region
      _
    $region77: #{temporal_generator_forward.1} parent=1 // pred_fallthru
      _
    // Predicated region
    $region78: #{temporal_generator_forward.1} parent=1 // pred_check
      _
    $region79: #{temporal_generator_forward.1} parent=1 // pred_check_branch
      %116 = sbr.rel (0) target = $region81
    $region80: #{temporal_generator_forward.1} parent=1 // pred_region
      %117 = dma.done [#allocation7], 4096
    $region81: #{temporal_generator_forward.1} parent=1 // pred_fallthru
      _
    // Predicated region
    $region82: #{temporal_generator_forward.1} parent=1 // pred_check
      _
    $region83: #{temporal_generator_forward.1} parent=1 // pred_check_branch
      %119 = sbr.rel (0) target = $region85
    $region84: #{temporal_generator_forward.1} parent=1 // pred_region
      %120 = dma.done [#allocation9], 16384
    $region85: #{temporal_generator_forward.1} parent=1 // pred_fallthru
      _
    // Predicated region
    $region86: #{temporal_generator_forward.1} parent=1 // pred_check
      _
    $region87: #{temporal_generator_forward.1} parent=1 // pred_check_branch
      %122 = sbr.rel (0) target = $region89
    $region88: #{temporal_generator_forward.1} parent=1 // pred_region
      %123 = dma.done [#allocation9], 8192
    $region89: #{temporal_generator_forward.1} parent=1 // pred_fallthru
      _
    // Predicated region
    $region90: #{temporal_generator_forward.1} parent=1 // pred_check
      _
    $region91: #{temporal_generator_forward.1} parent=1 // pred_check_branch
      %125 = sbr.rel (0) target = $region93
    $region92: #{temporal_generator_forward.1} parent=1 // pred_region
      %126 = dma.done [#allocation12], 4096
    $region93: #{temporal_generator_forward.1} parent=1 // pred_fallthru
      _
    // Predicated region
    $region94: #{temporal_generator_forward.1} parent=1 // pred_check
      _
    $region95: #{temporal_generator_forward.1} parent=1 // pred_check_branch
      %128 = sbr.rel (0) target = $region97
    $region96: #{temporal_generator_forward.1} parent=1 // pred_region
      %129 = dma.done [#allocation12], 4096
    $region97: #{temporal_generator_forward.1} parent=1 // pred_fallthru
      _
    %v131 = vld [vmem:[%s0] sm:$0xff]
    %v132 = vpack.c.bf16 %v131, %v131
    %v133 = vld [vmem:[#allocation6] sm:$0xff]
    %v134 = vld [vmem:[#allocation6 + $0x8] sm:$0xff]
    %v135 = vld [vmem:[#allocation6 + $0x10] sm:$0xff]
    %v136 = vld [vmem:[#allocation6 + $0x18] sm:$0xff]
    %v137 = vld [vmem:[#allocation6 + $0x20] sm:$0xff]
    %v138 = vld [vmem:[#allocation6 + $0x28] sm:$0xff]
    %v139 = vld [vmem:[#allocation6 + $0x30] sm:$0xff]
    %v140 = vld [vmem:[#allocation6 + $0x38] sm:$0xff]
    %v141 = vld [vmem:[#allocation6 + $0x40] sm:$0xff]
    %v142 = vld [vmem:[#allocation6 + $0x48] sm:$0xff]
    %v143 = vld [vmem:[#allocation6 + $0x50] sm:$0xff]
    %v144 = vld [vmem:[#allocation6 + $0x58] sm:$0xff]
    %v145 = vld [vmem:[#allocation6 + $0x60] sm:$0xff]
    %v146 = vld [vmem:[#allocation6 + $0x68] sm:$0xff]
    %v147 = vld [vmem:[#allocation6 + $0x70] sm:$0xff]
    %v148 = vld [vmem:[#allocation6 + $0x78] sm:$0xff]
    %v149 = vld [vmem:[#allocation6 + $0x80] sm:$0xff]
    %v150 = vld [vmem:[#allocation6 + $0x88] sm:$0xff]
    %v151 = vld [vmem:[#allocation6 + $0x90] sm:$0xff]
    %v152 = vld [vmem:[#allocation6 + $0x98] sm:$0xff]
    %v153 = vld [vmem:[#allocation6 + $0xa0] sm:$0xff]
    %v154 = vld [vmem:[#allocation6 + $0xa8] sm:$0xff]
    %v155 = vld [vmem:[#allocation6 + $0xb0] sm:$0xff]
    %v156 = vld [vmem:[#allocation6 + $0xb8] sm:$0xff]
    %v157 = vld [vmem:[#allocation6 + $0xc0] sm:$0xff]
    %v158 = vld [vmem:[#allocation6 + $0xc8] sm:$0xff]
    %v159 = vld [vmem:[#allocation6 + $0xd0] sm:$0xff]
    %v160 = vld [vmem:[#allocation6 + $0xd8] sm:$0xff]
    %v161 = vld [vmem:[#allocation6 + $0xe0] sm:$0xff]
    %v162 = vld [vmem:[#allocation6 + $0xe8] sm:$0xff]
    %v163 = vld [vmem:[#allocation6 + $0xf0] sm:$0xff]
    %v164 = vld [vmem:[#allocation6 + $0xf8] sm:$0xff]
    %v165 = vld [vmem:[%s2] sm:$0xf]
    %v167 = vlaneseq
    %v168 = vshrl.u32 %v167, 7
    %v169 = vsub.s32 0, %v168
    %v170 = vrot.slane %v165, %v169
    %v171 = vlaneseq
    %v172 = vshrl.u32 %v171, 7
    %v173 = vsub.s32 1, %v172
    %v174 = vrot.slane %v165, %v173
    %v175 = vlaneseq
    %v176 = vshrl.u32 %v175, 7
    %v177 = vsub.s32 2, %v176
    %v178 = vrot.slane %v165, %v177
    %v179 = vlaneseq
    %v180 = vshrl.u32 %v179, 7
    %v181 = vsub.s32 3, %v180
    %v182 = vrot.slane %v165, %v181
    %v219 = vunpack.c.l.b16 %v133
    %v220 = vunpack.c.h.b16 %v133
    %v221 = vunpack.c.l.b16 %v134
    %v222 = vunpack.c.h.b16 %v134
    %v223 = vunpack.c.l.b16 %v135
    %v224 = vunpack.c.h.b16 %v135
    %v225 = vunpack.c.l.b16 %v136
    %v226 = vunpack.c.h.b16 %v136
    %v227 = vunpack.c.l.b16 %v137
    %v228 = vunpack.c.h.b16 %v137
    %v229 = vunpack.c.l.b16 %v138
    %v230 = vunpack.c.h.b16 %v138
    %v231 = vunpack.c.l.b16 %v139
    %v232 = vunpack.c.h.b16 %v139
    %v233 = vunpack.c.l.b16 %v140
    %v234 = vunpack.c.h.b16 %v140
    %v235 = vunpack.c.l.b16 %v141
    %v236 = vunpack.c.h.b16 %v141
    %v237 = vunpack.c.l.b16 %v142
    %v238 = vunpack.c.h.b16 %v142
    %v239 = vunpack.c.l.b16 %v143
    %v240 = vunpack.c.h.b16 %v143
    %v241 = vunpack.c.l.b16 %v144
    %v242 = vunpack.c.h.b16 %v144
    %v243 = vunpack.c.l.b16 %v145
    %v244 = vunpack.c.h.b16 %v145
    %v245 = vunpack.c.l.b16 %v146
    %v246 = vunpack.c.h.b16 %v146
    %v247 = vunpack.c.l.b16 %v147
    %v248 = vunpack.c.h.b16 %v147
    %v249 = vunpack.c.l.b16 %v148
    %v250 = vunpack.c.h.b16 %v148
    %v251 = vunpack.c.l.b16 %v149
    %v252 = vunpack.c.h.b16 %v149
    %v253 = vunpack.c.l.b16 %v150
    %v254 = vunpack.c.h.b16 %v150
    %v255 = vunpack.c.l.b16 %v151
    %v256 = vunpack.c.h.b16 %v151
    %v257 = vunpack.c.l.b16 %v152
    %v258 = vunpack.c.h.b16 %v152
    %v259 = vunpack.c.l.b16 %v153
    %v260 = vunpack.c.h.b16 %v153
    %v261 = vunpack.c.l.b16 %v154
    %v262 = vunpack.c.h.b16 %v154
    %v263 = vunpack.c.l.b16 %v155
    %v264 = vunpack.c.h.b16 %v155
    %v265 = vunpack.c.l.b16 %v156
    %v266 = vunpack.c.h.b16 %v156
    %v267 = vunpack.c.l.b16 %v157
    %v268 = vunpack.c.h.b16 %v157
    %v269 = vunpack.c.l.b16 %v158
    %v270 = vunpack.c.h.b16 %v158
    %v271 = vunpack.c.l.b16 %v159
    %v272 = vunpack.c.h.b16 %v159
    %v273 = vunpack.c.l.b16 %v160
    %v274 = vunpack.c.h.b16 %v160
    %v275 = vunpack.c.l.b16 %v161
    %v276 = vunpack.c.h.b16 %v161
    %v277 = vunpack.c.l.b16 %v162
    %v278 = vunpack.c.h.b16 %v162
    %v279 = vunpack.c.l.b16 %v163
    %v280 = vunpack.c.h.b16 %v163
    %v281 = vunpack.c.l.b16 %v164
    %v282 = vunpack.c.h.b16 %v164
    %v283 = vpack.c.b16 %v223, %v219
    %v284 = vpack.c.b16 %v224, %v220
    %v285 = vpack.c.b16 %v225, %v221
    %v286 = vpack.c.b16 %v226, %v222
    %v287 = vpack.c.b16 %v231, %v227
    %v288 = vpack.c.b16 %v232, %v228
    %v289 = vpack.c.b16 %v233, %v229
    %v290 = vpack.c.b16 %v234, %v230
    %v291 = vpack.c.b16 %v239, %v235
    %v292 = vpack.c.b16 %v240, %v236
    %v293 = vpack.c.b16 %v241, %v237
    %v294 = vpack.c.b16 %v242, %v238
    %v295 = vpack.c.b16 %v247, %v243
    %v296 = vpack.c.b16 %v248, %v244
    %v297 = vpack.c.b16 %v249, %v245
    %v298 = vpack.c.b16 %v250, %v246
    %v299 = vpack.c.b16 %v255, %v251
    %v300 = vpack.c.b16 %v256, %v252
    %v301 = vpack.c.b16 %v257, %v253
    %v302 = vpack.c.b16 %v258, %v254
    %v303 = vpack.c.b16 %v263, %v259
    %v304 = vpack.c.b16 %v264, %v260
    %v305 = vpack.c.b16 %v265, %v261
    %v306 = vpack.c.b16 %v266, %v262
    %v307 = vpack.c.b16 %v271, %v267
    %v308 = vpack.c.b16 %v272, %v268
    %v309 = vpack.c.b16 %v273, %v269
    %v310 = vpack.c.b16 %v274, %v270
    %v311 = vpack.c.b16 %v279, %v275
    %v312 = vpack.c.b16 %v280, %v276
    %v313 = vpack.c.b16 %v281, %v277
    %v314 = vpack.c.b16 %v282, %v278
    %347 = vmatprep.subr.bf16.mxu0 %v284
    %348 = vmatpush1.bf16.msra.mxu0 %v283
    %349 = vmatprep.subr.bf16.mxu0 %v288
    %350 = vmatpush1.bf16.msra.mxu0 %v287
    %351 = vmatprep.subr.bf16.mxu0 %v292
    %352 = vmatpush1.bf16.msra.mxu0 %v291
    %353 = vmatprep.subr.bf16.mxu0 %v296
    %354 = vmatpush1.bf16.msra.mxu0 %v295
    %355 = vmatprep.subr.bf16.mxu0 %v300
    %356 = vmatpush1.bf16.msra.mxu0 %v299
    %357 = vmatprep.subr.bf16.mxu0 %v304
    %358 = vmatpush1.bf16.msra.mxu0 %v303
    %359 = vmatprep.subr.bf16.mxu0 %v308
    %360 = vmatpush1.bf16.msra.mxu0 %v307
    %361 = vmatprep.subr.bf16.mxu0 %v312
    %362 = vmatpush1.bf16.msra.mxu0 %v311
    %363 = vmatprep.subr.bf16.mxu0 0
    %364 = vmatpush1.bf16.msra.mxu0 0
    %365 = vmatprep.subr.bf16.mxu0 0
    %366 = vmatpush1.bf16.msra.mxu0 0
    %367 = vmatprep.subr.bf16.mxu0 0
    %368 = vmatpush1.bf16.msra.mxu0 0
    %369 = vmatprep.subr.bf16.mxu0 0
    %370 = vmatpush1.bf16.msra.mxu0 0
    %371 = vmatprep.subr.bf16.mxu0 0
    %372 = vmatpush1.bf16.msra.mxu0 0
    %373 = vmatprep.subr.bf16.mxu0 0
    %374 = vmatpush1.bf16.msra.mxu0 0
    %375 = vmatprep.subr.bf16.mxu0 0
    %376 = vmatpush1.bf16.msra.mxu0 0
    %377 = vmatprep.subr.bf16.mxu0 0
    %378 = vmatpush1.bf16.msra.mxu0 0
    %379 = vmatprep.mubr.bf16.mxu0 0
    %380 = vmatmul.mubr.bf16.gmra.mrb[0].mxu0 %v132
    %v381 = vpop.f32.mrb[0].mxu0
    %v382 = vadd.f32 %v170, %v381
    %v383 = vpop.f32.mrb[0].mxu0
    %v384 = vadd.f32 %v174, %v383
    %v385 = vpop.f32.mrb[0].mxu0
    %v386 = vpop.f32.mrb[0].mxu0
    %387 = vdwg.mxu0
    %388 = vmatprep.subr.bf16.mxu0 %v286
    %389 = vmatpush1.bf16.msra.mxu0 %v285
    %390 = vmatprep.subr.bf16.mxu0 %v290
    %391 = vmatpush1.bf16.msra.mxu0 %v289
    %392 = vmatprep.subr.bf16.mxu0 %v294
    %393 = vmatpush1.bf16.msra.mxu0 %v293
    %394 = vmatprep.subr.bf16.mxu0 %v298
    %395 = vmatpush1.bf16.msra.mxu0 %v297
    %396 = vmatprep.subr.bf16.mxu0 %v302
    %397 = vmatpush1.bf16.msra.mxu0 %v301
    %398 = vmatprep.subr.bf16.mxu0 %v306
    %399 = vmatpush1.bf16.msra.mxu0 %v305
    %400 = vmatprep.subr.bf16.mxu0 %v310
    %401 = vmatpush1.bf16.msra.mxu0 %v309
    %402 = vmatprep.subr.bf16.mxu0 %v314
    %403 = vmatpush1.bf16.msra.mxu0 %v313
    %404 = vmatprep.subr.bf16.mxu0 0
    %405 = vmatpush1.bf16.msra.mxu0 0
    %406 = vmatprep.subr.bf16.mxu0 0
    %407 = vmatpush1.bf16.msra.mxu0 0
    %408 = vmatprep.subr.bf16.mxu0 0
    %409 = vmatpush1.bf16.msra.mxu0 0
    %410 = vmatprep.subr.bf16.mxu0 0
    %411 = vmatpush1.bf16.msra.mxu0 0
    %412 = vmatprep.subr.bf16.mxu0 0
    %413 = vmatpush1.bf16.msra.mxu0 0
    %414 = vmatprep.subr.bf16.mxu0 0
    %415 = vmatpush1.bf16.msra.mxu0 0
    %416 = vmatprep.subr.bf16.mxu0 0
    %417 = vmatpush1.bf16.msra.mxu0 0
    %418 = vmatprep.subr.bf16.mxu0 0
    %419 = vmatpush1.bf16.msra.mxu0 0
    %420 = vmatprep.mubr.bf16.mxu0 0
    %421 = vmatmul.mubr.bf16.gmra.mrb[0].mxu0 %v132
    %v422 = vpop.f32.mrb[0].mxu0
    %v423 = vadd.f32 %v178, %v422
    %v424 = vpop.f32.mrb[0].mxu0
    %v425 = vadd.f32 %v182, %v424
    %v426 = vpop.f32.mrb[0].mxu0
    %v427 = vpop.f32.mrb[0].mxu0
    %428 = vdwg.mxu0
    %429 = vst [vmem:[#allocation2] sm:$0xff] %v382
    %430 = vst [vmem:[#allocation2 + $0x8] sm:$0xff] %v384
    %431 = vst [vmem:[#allocation2 + $0x10] sm:$0xff] %v423
    %432 = vst [vmem:[#allocation2 + $0x18] sm:$0xff] %v425
    %v433 = vld [vmem:[#allocation2] sm:$0xff]
    %v434 = vld [vmem:[#allocation2 + $0x8] sm:$0xff]
    %v435 = vld [vmem:[#allocation2 + $0x10] sm:$0xff]
    %v436 = vld [vmem:[#allocation2 + $0x18] sm:$0xff]
    %v437 = vld [vmem:[%s3] sm:$0xf]
    %v438 = vld [vmem:[%s4] sm:$0xf]
    %v439 = vrot.slane %v433, 4
    %v440 = vadd.f32 %v433, %v439
    %v441 = vrot.slane %v440, 2
    %v442 = vadd.f32 %v440, %v441
    %v443 = vrot.slane %v442, 1
    %v444 = vadd.f32 %v442, %v443
    %v445 = vrot.slane %v434, 4
    %v446 = vadd.f32 %v434, %v445
    %v447 = vrot.slane %v446, 2
    %v448 = vadd.f32 %v446, %v447
    %v449 = vrot.slane %v448, 1
    %v450 = vadd.f32 %v448, %v449
    %v451 = vrot.slane %v435, 4
    %v452 = vadd.f32 %v435, %v451
    %v453 = vrot.slane %v452, 2
    %v454 = vadd.f32 %v452, %v453
    %v455 = vrot.slane %v454, 1
    %v456 = vadd.f32 %v454, %v455
    %v457 = vrot.slane %v436, 4
    %v458 = vadd.f32 %v436, %v457
    %v459 = vrot.slane %v458, 2
    %v460 = vadd.f32 %v458, %v459
    %v461 = vrot.slane %v460, 1
    %v462 = vadd.f32 %v460, %v461
    %v463 = vmul.f32 %v444, 0.125
    %v464 = vmul.f32 %v450, 0.125
    %v465 = vmul.f32 %v456, 0.125
    %v466 = vmul.f32 %v462, 0.125
    %v467 = vsub.f32 %v433, %v463
    %v468 = vsub.f32 %v434, %v464
    %v469 = vsub.f32 %v435, %v465
    %v470 = vsub.f32 %v436, %v466
    %v471 = vmul.f32 %v467, %v467
    %v472 = vmul.f32 %v468, %v468
    %v473 = vmul.f32 %v469, %v469
    %v474 = vmul.f32 %v470, %v470
    %v475 = vrot.slane %v471, 4
    %v476 = vadd.f32 %v471, %v475
    %v477 = vrot.slane %v476, 2
    %v478 = vadd.f32 %v476, %v477
    %v479 = vrot.slane %v478, 1
    %v480 = vadd.f32 %v478, %v479
    %v481 = vrot.slane %v472, 4
    %v482 = vadd.f32 %v472, %v481
    %v483 = vrot.slane %v482, 2
    %v484 = vadd.f32 %v482, %v483
    %v485 = vrot.slane %v484, 1
    %v486 = vadd.f32 %v484, %v485
    %v487 = vrot.slane %v473, 4
    %v488 = vadd.f32 %v473, %v487
    %v489 = vrot.slane %v488, 2
    %v490 = vadd.f32 %v488, %v489
    %v491 = vrot.slane %v490, 1
    %v492 = vadd.f32 %v490, %v491
    %v493 = vrot.slane %v474, 4
    %v494 = vadd.f32 %v474, %v493
    %v495 = vrot.slane %v494, 2
    %v496 = vadd.f32 %v494, %v495
    %v497 = vrot.slane %v496, 1
    %v498 = vadd.f32 %v496, %v497
    %v499 = vmul.f32 %v480, 0.125
    %v500 = vmul.f32 %v486, 0.125
    %v501 = vmul.f32 %v492, 0.125
    %v502 = vmul.f32 %v498, 0.125
    %v503 = vadd.f32 %v499, 1e-05
    %v504 = vadd.f32 %v500, 1e-05
    %v505 = vadd.f32 %v501, 1e-05
    %v506 = vadd.f32 %v502, 1e-05
    %v507 = vrsqrt.pop %v503
    %v508 = vrsqrt.pop %v504
    %v509 = vrsqrt.pop %v505
    %v510 = vrsqrt.pop %v506
    %v511 = vmul.f32 %v467, %v507
    %v512 = vmul.f32 %v468, %v508
    %v513 = vmul.f32 %v469, %v509
    %v514 = vmul.f32 %v470, %v510
    %v516 = vlaneseq
    %v517 = vshrl.u32 %v516, 7
    %v518 = vsub.s32 0, %v517
    %v519 = vrot.slane %v437, %v518
    %v520 = vlaneseq
    %v521 = vshrl.u32 %v520, 7
    %v522 = vsub.s32 1, %v521
    %v523 = vrot.slane %v437, %v522
    %v524 = vlaneseq
    %v525 = vshrl.u32 %v524, 7
    %v526 = vsub.s32 2, %v525
    %v527 = vrot.slane %v437, %v526
    %v528 = vlaneseq
    %v529 = vshrl.u32 %v528, 7
    %v530 = vsub.s32 3, %v529
    %v531 = vrot.slane %v437, %v530
    %v536 = vmul.f32 %v511, %v519
    %v537 = vmul.f32 %v512, %v523
    %v538 = vmul.f32 %v513, %v527
    %v539 = vmul.f32 %v514, %v531
    %v541 = vlaneseq
    %v542 = vshrl.u32 %v541, 7
    %v543 = vsub.s32 0, %v542
    %v544 = vrot.slane %v438, %v543
    %v545 = vlaneseq
    %v546 = vshrl.u32 %v545, 7
    %v547 = vsub.s32 1, %v546
    %v548 = vrot.slane %v438, %v547
    %v549 = vlaneseq
    %v550 = vshrl.u32 %v549, 7
    %v551 = vsub.s32 2, %v550
    %v552 = vrot.slane %v438, %v551
    %v553 = vlaneseq
    %v554 = vshrl.u32 %v553, 7
    %v555 = vsub.s32 3, %v554
    %v556 = vrot.slane %v438, %v555
    %v561 = vadd.f32 %v536, %v544
    %v562 = vadd.f32 %v537, %v548
    %v563 = vadd.f32 %v538, %v552
    %v564 = vadd.f32 %v539, %v556
    %v565 = vmax.f32 %v561, 0.0
    %v566 = vmax.f32 %v562, 0.0
    %v567 = vmax.f32 %v563, 0.0
    %v568 = vmax.f32 %v564, 0.0
    %v569 = vpack.c.bf16 %v565, %v565
    %v570 = vpack.c.bf16 %v566, %v566
    %v571 = vpack.c.bf16 %v567, %v567
    %v572 = vpack.c.bf16 %v568, %v568
    %v573 = vld [vmem:[#allocation8] sm:$0xff]
    %v574 = vld [vmem:[#allocation8 + $0x8] sm:$0xff]
    %v575 = vld [vmem:[#allocation8 + $0x10] sm:$0xff]
    %v576 = vld [vmem:[#allocation8 + $0x18] sm:$0xff]
    %v577 = vld [vmem:[#allocation8 + $0x20] sm:$0xff]
    %v578 = vld [vmem:[#allocation8 + $0x28] sm:$0xff]
    %v579 = vld [vmem:[#allocation8 + $0x30] sm:$0xff]
    %v580 = vld [vmem:[#allocation8 + $0x38] sm:$0xff]
    %v581 = vld [vmem:[#allocation8 + $0x40] sm:$0xff]
    %v582 = vld [vmem:[#allocation8 + $0x48] sm:$0xff]
    %v583 = vld [vmem:[#allocation8 + $0x50] sm:$0xff]
    %v584 = vld [vmem:[#allocation8 + $0x58] sm:$0xff]
    %v585 = vld [vmem:[#allocation8 + $0x60] sm:$0xff]
    %v586 = vld [vmem:[#allocation8 + $0x68] sm:$0xff]
    %v587 = vld [vmem:[#allocation8 + $0x70] sm:$0xff]
    %v588 = vld [vmem:[#allocation8 + $0x78] sm:$0xff]
    %v589 = vld [vmem:[#allocation8 + $0x80] sm:$0xff]
    %v590 = vld [vmem:[#allocation8 + $0x88] sm:$0xff]
    %v591 = vld [vmem:[#allocation8 + $0x90] sm:$0xff]
    %v592 = vld [vmem:[#allocation8 + $0x98] sm:$0xff]
    %v593 = vld [vmem:[#allocation8 + $0xa0] sm:$0xff]
    %v594 = vld [vmem:[#allocation8 + $0xa8] sm:$0xff]
    %v595 = vld [vmem:[#allocation8 + $0xb0] sm:$0xff]
    %v596 = vld [vmem:[#allocation8 + $0xb8] sm:$0xff]
    %v597 = vld [vmem:[#allocation8 + $0xc0] sm:$0xff]
    %v598 = vld [vmem:[#allocation8 + $0xc8] sm:$0xff]
    %v599 = vld [vmem:[#allocation8 + $0xd0] sm:$0xff]
    %v600 = vld [vmem:[#allocation8 + $0xd8] sm:$0xff]
    %v601 = vld [vmem:[#allocation8 + $0xe0] sm:$0xff]
    %v602 = vld [vmem:[#allocation8 + $0xe8] sm:$0xff]
    %v603 = vld [vmem:[#allocation8 + $0xf0] sm:$0xff]
    %v604 = vld [vmem:[#allocation8 + $0xf8] sm:$0xff]
    %v605 = vld [vmem:[#allocation8 + $0x100] sm:$0xff]
    %v606 = vld [vmem:[#allocation8 + $0x108] sm:$0xff]
    %v607 = vld [vmem:[#allocation8 + $0x110] sm:$0xff]
    %v608 = vld [vmem:[#allocation8 + $0x118] sm:$0xff]
    %v609 = vld [vmem:[#allocation8 + $0x120] sm:$0xff]
    %v610 = vld [vmem:[#allocation8 + $0x128] sm:$0xff]
    %v611 = vld [vmem:[#allocation8 + $0x130] sm:$0xff]
    %v612 = vld [vmem:[#allocation8 + $0x138] sm:$0xff]
    %v613 = vld [vmem:[#allocation8 + $0x140] sm:$0xff]
    %v614 = vld [vmem:[#allocation8 + $0x148] sm:$0xff]
    %v615 = vld [vmem:[#allocation8 + $0x150] sm:$0xff]
    %v616 = vld [vmem:[#allocation8 + $0x158] sm:$0xff]
    %v617 = vld [vmem:[#allocation8 + $0x160] sm:$0xff]
    %v618 = vld [vmem:[#allocation8 + $0x168] sm:$0xff]
    %v619 = vld [vmem:[#allocation8 + $0x170] sm:$0xff]
    %v620 = vld [vmem:[#allocation8 + $0x178] sm:$0xff]
    %v621 = vld [vmem:[#allocation8 + $0x180] sm:$0xff]
    %v622 = vld [vmem:[#allocation8 + $0x188] sm:$0xff]
    %v623 = vld [vmem:[#allocation8 + $0x190] sm:$0xff]
    %v624 = vld [vmem:[#allocation8 + $0x198] sm:$0xff]
    %v625 = vld [vmem:[#allocation8 + $0x1a0] sm:$0xff]
    %v626 = vld [vmem:[#allocation8 + $0x1a8] sm:$0xff]
    %v627 = vld [vmem:[#allocation8 + $0x1b0] sm:$0xff]
    %v628 = vld [vmem:[#allocation8 + $0x1b8] sm:$0xff]
    %v629 = vld [vmem:[#allocation8 + $0x1c0] sm:$0xff]
    %v630 = vld [vmem:[#allocation8 + $0x1c8] sm:$0xff]
    %v631 = vld [vmem:[#allocation8 + $0x1d0] sm:$0xff]
    %v632 = vld [vmem:[#allocation8 + $0x1d8] sm:$0xff]
    %v633 = vld [vmem:[#allocation8 + $0x1e0] sm:$0xff]
    %v634 = vld [vmem:[#allocation8 + $0x1e8] sm:$0xff]
    %v635 = vld [vmem:[#allocation8 + $0x1f0] sm:$0xff]
    %v636 = vld [vmem:[#allocation8 + $0x1f8] sm:$0xff]
    %v637 = vld [vmem:[#allocation8 + $0x200] sm:$0xff]
    %v638 = vld [vmem:[#allocation8 + $0x208] sm:$0xff]
    %v639 = vld [vmem:[#allocation8 + $0x210] sm:$0xff]
    %v640 = vld [vmem:[#allocation8 + $0x218] sm:$0xff]
    %v641 = vld [vmem:[#allocation8 + $0x220] sm:$0xff]
    %v642 = vld [vmem:[#allocation8 + $0x228] sm:$0xff]
    %v643 = vld [vmem:[#allocation8 + $0x230] sm:$0xff]
    %v644 = vld [vmem:[#allocation8 + $0x238] sm:$0xff]
    %v645 = vld [vmem:[#allocation8 + $0x240] sm:$0xff]
    %v646 = vld [vmem:[#allocation8 + $0x248] sm:$0xff]
    %v647 = vld [vmem:[#allocation8 + $0x250] sm:$0xff]
    %v648 = vld [vmem:[#allocation8 + $0x258] sm:$0xff]
    %v649 = vld [vmem:[#allocation8 + $0x260] sm:$0xff]
    %v650 = vld [vmem:[#allocation8 + $0x268] sm:$0xff]
    %v651 = vld [vmem:[#allocation8 + $0x270] sm:$0xff]
    %v652 = vld [vmem:[#allocation8 + $0x278] sm:$0xff]
    %v653 = vld [vmem:[#allocation8 + $0x280] sm:$0xff]
    %v654 = vld [vmem:[#allocation8 + $0x288] sm:$0xff]
    %v655 = vld [vmem:[#allocation8 + $0x290] sm:$0xff]
    %v656 = vld [vmem:[#allocation8 + $0x298] sm:$0xff]
    %v657 = vld [vmem:[#allocation8 + $0x2a0] sm:$0xff]
    %v658 = vld [vmem:[#allocation8 + $0x2a8] sm:$0xff]
    %v659 = vld [vmem:[#allocation8 + $0x2b0] sm:$0xff]
    %v660 = vld [vmem:[#allocation8 + $0x2b8] sm:$0xff]
    %v661 = vld [vmem:[#allocation8 + $0x2c0] sm:$0xff]
    %v662 = vld [vmem:[#allocation8 + $0x2c8] sm:$0xff]
    %v663 = vld [vmem:[#allocation8 + $0x2d0] sm:$0xff]
    %v664 = vld [vmem:[#allocation8 + $0x2d8] sm:$0xff]
    %v665 = vld [vmem:[#allocation8 + $0x2e0] sm:$0xff]
    %v666 = vld [vmem:[#allocation8 + $0x2e8] sm:$0xff]
    %v667 = vld [vmem:[#allocation8 + $0x2f0] sm:$0xff]
    %v668 = vld [vmem:[#allocation8 + $0x2f8] sm:$0xff]
    %v669 = vld [vmem:[#allocation8 + $0x300] sm:$0xff]
    %v670 = vld [vmem:[#allocation8 + $0x308] sm:$0xff]
    %v671 = vld [vmem:[#allocation8 + $0x310] sm:$0xff]
    %v672 = vld [vmem:[#allocation8 + $0x318] sm:$0xff]
    %v673 = vld [vmem:[#allocation8 + $0x320] sm:$0xff]
    %v674 = vld [vmem:[#allocation8 + $0x328] sm:$0xff]
    %v675 = vld [vmem:[#allocation8 + $0x330] sm:$0xff]
    %v676 = vld [vmem:[#allocation8 + $0x338] sm:$0xff]
    %v677 = vld [vmem:[#allocation8 + $0x340] sm:$0xff]
    %v678 = vld [vmem:[#allocation8 + $0x348] sm:$0xff]
    %v679 = vld [vmem:[#allocation8 + $0x350] sm:$0xff]
    %v680 = vld [vmem:[#allocation8 + $0x358] sm:$0xff]
    %v681 = vld [vmem:[#allocation8 + $0x360] sm:$0xff]
    %v682 = vld [vmem:[#allocation8 + $0x368] sm:$0xff]
    %v683 = vld [vmem:[#allocation8 + $0x370] sm:$0xff]
    %v684 = vld [vmem:[#allocation8 + $0x378] sm:$0xff]
    %v685 = vld [vmem:[#allocation8 + $0x380] sm:$0xff]
    %v686 = vld [vmem:[#allocation8 + $0x388] sm:$0xff]
    %v687 = vld [vmem:[#allocation8 + $0x390] sm:$0xff]
    %v688 = vld [vmem:[#allocation8 + $0x398] sm:$0xff]
    %v689 = vld [vmem:[#allocation8 + $0x3a0] sm:$0xff]
    %v690 = vld [vmem:[#allocation8 + $0x3a8] sm:$0xff]
    %v691 = vld [vmem:[#allocation8 + $0x3b0] sm:$0xff]
    %v692 = vld [vmem:[#allocation8 + $0x3b8] sm:$0xff]
    %v693 = vld [vmem:[#allocation8 + $0x3c0] sm:$0xff]
    %v694 = vld [vmem:[#allocation8 + $0x3c8] sm:$0xff]
    %v695 = vld [vmem:[#allocation8 + $0x3d0] sm:$0xff]
    %v696 = vld [vmem:[#allocation8 + $0x3d8] sm:$0xff]
    %v697 = vld [vmem:[#allocation8 + $0x3e0] sm:$0xff]
    %v698 = vld [vmem:[#allocation8 + $0x3e8] sm:$0xff]
    %v699 = vld [vmem:[#allocation8 + $0x3f0] sm:$0xff]
    %v700 = vld [vmem:[#allocation8 + $0x3f8] sm:$0xff]
    %v829 = vunpack.c.l.b16 %v573
    %v830 = vunpack.c.h.b16 %v573
    %v831 = vunpack.c.l.b16 %v574
    %v832 = vunpack.c.h.b16 %v574
    %v833 = vunpack.c.l.b16 %v575
    %v834 = vunpack.c.h.b16 %v575
    %v835 = vunpack.c.l.b16 %v576
    %v836 = vunpack.c.h.b16 %v576
    %v837 = vunpack.c.l.b16 %v577
    %v838 = vunpack.c.h.b16 %v577
    %v839 = vunpack.c.l.b16 %v578
    %v840 = vunpack.c.h.b16 %v578
    %v841 = vunpack.c.l.b16 %v579
    %v842 = vunpack.c.h.b16 %v579
    %v843 = vunpack.c.l.b16 %v580
    %v844 = vunpack.c.h.b16 %v580
    %v845 = vunpack.c.l.b16 %v581
    %v846 = vunpack.c.h.b16 %v581
    %v847 = vunpack.c.l.b16 %v582
    %v848 = vunpack.c.h.b16 %v582
    %v849 = vunpack.c.l.b16 %v583
    %v850 = vunpack.c.h.b16 %v583
    %v851 = vunpack.c.l.b16 %v584
    %v852 = vunpack.c.h.b16 %v584
    %v853 = vunpack.c.l.b16 %v585
    %v854 = vunpack.c.h.b16 %v585
    %v855 = vunpack.c.l.b16 %v586
    %v856 = vunpack.c.h.b16 %v586
    %v857 = vunpack.c.l.b16 %v587
    %v858 = vunpack.c.h.b16 %v587
    %v859 = vunpack.c.l.b16 %v588
    %v860 = vunpack.c.h.b16 %v588
    %v861 = vunpack.c.l.b16 %v589
    %v862 = vunpack.c.h.b16 %v589
    %v863 = vunpack.c.l.b16 %v590
    %v864 = vunpack.c.h.b16 %v590
    %v865 = vunpack.c.l.b16 %v591
    %v866 = vunpack.c.h.b16 %v591
    %v867 = vunpack.c.l.b16 %v592
    %v868 = vunpack.c.h.b16 %v592
    %v869 = vunpack.c.l.b16 %v593
    %v870 = vunpack.c.h.b16 %v593
    %v871 = vunpack.c.l.b16 %v594
    %v872 = vunpack.c.h.b16 %v594
    %v873 = vunpack.c.l.b16 %v595
    %v874 = vunpack.c.h.b16 %v595
    %v875 = vunpack.c.l.b16 %v596
    %v876 = vunpack.c.h.b16 %v596
    %v877 = vunpack.c.l.b16 %v597
    %v878 = vunpack.c.h.b16 %v597
    %v879 = vunpack.c.l.b16 %v598
    %v880 = vunpack.c.h.b16 %v598
    %v881 = vunpack.c.l.b16 %v599
    %v882 = vunpack.c.h.b16 %v599
    %v883 = vunpack.c.l.b16 %v600
    %v884 = vunpack.c.h.b16 %v600
    %v885 = vunpack.c.l.b16 %v601
    %v886 = vunpack.c.h.b16 %v601
    %v887 = vunpack.c.l.b16 %v602
    %v888 = vunpack.c.h.b16 %v602
    %v889 = vunpack.c.l.b16 %v603
    %v890 = vunpack.c.h.b16 %v603
    %v891 = vunpack.c.l.b16 %v604
    %v892 = vunpack.c.h.b16 %v604
    %v893 = vunpack.c.l.b16 %v605
    %v894 = vunpack.c.h.b16 %v605
    %v895 = vunpack.c.l.b16 %v606
    %v896 = vunpack.c.h.b16 %v606
    %v897 = vunpack.c.l.b16 %v607
    %v898 = vunpack.c.h.b16 %v607
    %v899 = vunpack.c.l.b16 %v608
    %v900 = vunpack.c.h.b16 %v608
    %v901 = vunpack.c.l.b16 %v609
    %v902 = vunpack.c.h.b16 %v609
    %v903 = vunpack.c.l.b16 %v610
    %v904 = vunpack.c.h.b16 %v610
    %v905 = vunpack.c.l.b16 %v611
    %v906 = vunpack.c.h.b16 %v611
    %v907 = vunpack.c.l.b16 %v612
    %v908 = vunpack.c.h.b16 %v612
    %v909 = vunpack.c.l.b16 %v613
    %v910 = vunpack.c.h.b16 %v613
    %v911 = vunpack.c.l.b16 %v614
    %v912 = vunpack.c.h.b16 %v614
    %v913 = vunpack.c.l.b16 %v615
    %v914 = vunpack.c.h.b16 %v615
    %v915 = vunpack.c.l.b16 %v616
    %v916 = vunpack.c.h.b16 %v616
    %v917 = vunpack.c.l.b16 %v617
    %v918 = vunpack.c.h.b16 %v617
    %v919 = vunpack.c.l.b16 %v618
    %v920 = vunpack.c.h.b16 %v618
    %v921 = vunpack.c.l.b16 %v619
    %v922 = vunpack.c.h.b16 %v619
    %v923 = vunpack.c.l.b16 %v620
    %v924 = vunpack.c.h.b16 %v620
    %v925 = vunpack.c.l.b16 %v621
    %v926 = vunpack.c.h.b16 %v621
    %v927 = vunpack.c.l.b16 %v622
    %v928 = vunpack.c.h.b16 %v622
    %v929 = vunpack.c.l.b16 %v623
    %v930 = vunpack.c.h.b16 %v623
    %v931 = vunpack.c.l.b16 %v624
    %v932 = vunpack.c.h.b16 %v624
    %v933 = vunpack.c.l.b16 %v625
    %v934 = vunpack.c.h.b16 %v625
    %v935 = vunpack.c.l.b16 %v626
    %v936 = vunpack.c.h.b16 %v626
    %v937 = vunpack.c.l.b16 %v627
    %v938 = vunpack.c.h.b16 %v627
    %v939 = vunpack.c.l.b16 %v628
    %v940 = vunpack.c.h.b16 %v628
    %v941 = vunpack.c.l.b16 %v629
    %v942 = vunpack.c.h.b16 %v629
    %v943 = vunpack.c.l.b16 %v630
    %v944 = vunpack.c.h.b16 %v630
    %v945 = vunpack.c.l.b16 %v631
    %v946 = vunpack.c.h.b16 %v631
    %v947 = vunpack.c.l.b16 %v632
    %v948 = vunpack.c.h.b16 %v632
    %v949 = vunpack.c.l.b16 %v633
    %v950 = vunpack.c.h.b16 %v633
    %v951 = vunpack.c.l.b16 %v634
    %v952 = vunpack.c.h.b16 %v634
    %v953 = vunpack.c.l.b16 %v635
    %v954 = vunpack.c.h.b16 %v635
    %v955 = vunpack.c.l.b16 %v636
    %v956 = vunpack.c.h.b16 %v636
    %v957 = vunpack.c.l.b16 %v637
    %v958 = vunpack.c.h.b16 %v637
    %v959 = vunpack.c.l.b16 %v638
    %v960 = vunpack.c.h.b16 %v638
    %v961 = vunpack.c.l.b16 %v639
    %v962 = vunpack.c.h.b16 %v639
    %v963 = vunpack.c.l.b16 %v640
    %v964 = vunpack.c.h.b16 %v640
    %v965 = vunpack.c.l.b16 %v641
    %v966 = vunpack.c.h.b16 %v641
    %v967 = vunpack.c.l.b16 %v642
    %v968 = vunpack.c.h.b16 %v642
    %v969 = vunpack.c.l.b16 %v643
    %v970 = vunpack.c.h.b16 %v643
    %v971 = vunpack.c.l.b16 %v644
    %v972 = vunpack.c.h.b16 %v644
    %v973 = vunpack.c.l.b16 %v645
    %v974 = vunpack.c.h.b16 %v645
    %v975 = vunpack.c.l.b16 %v646
    %v976 = vunpack.c.h.b16 %v646
    %v977 = vunpack.c.l.b16 %v647
    %v978 = vunpack.c.h.b16 %v647
    %v979 = vunpack.c.l.b16 %v648
    %v980 = vunpack.c.h.b16 %v648
    %v981 = vunpack.c.l.b16 %v649
    %v982 = vunpack.c.h.b16 %v649
    %v983 = vunpack.c.l.b16 %v650
    %v984 = vunpack.c.h.b16 %v650
    %v985 = vunpack.c.l.b16 %v651
    %v986 = vunpack.c.h.b16 %v651
    %v987 = vunpack.c.l.b16 %v652
    %v988 = vunpack.c.h.b16 %v652
    %v989 = vunpack.c.l.b16 %v653
    %v990 = vunpack.c.h.b16 %v653
    %v991 = vunpack.c.l.b16 %v654
    %v992 = vunpack.c.h.b16 %v654
    %v993 = vunpack.c.l.b16 %v655
    %v994 = vunpack.c.h.b16 %v655
    %v995 = vunpack.c.l.b16 %v656
    %v996 = vunpack.c.h.b16 %v656
    %v997 = vunpack.c.l.b16 %v657
    %v998 = vunpack.c.h.b16 %v657
    %v999 = vunpack.c.l.b16 %v658
    %v1000 = vunpack.c.h.b16 %v658
    %v1001 = vunpack.c.l.b16 %v659
    %v1002 = vunpack.c.h.b16 %v659
    %v1003 = vunpack.c.l.b16 %v660
    %v1004 = vunpack.c.h.b16 %v660
    %v1005 = vunpack.c.l.b16 %v661
    %v1006 = vunpack.c.h.b16 %v661
    %v1007 = vunpack.c.l.b16 %v662
    %v1008 = vunpack.c.h.b16 %v662
    %v1009 = vunpack.c.l.b16 %v663
    %v1010 = vunpack.c.h.b16 %v663
    %v1011 = vunpack.c.l.b16 %v664
    %v1012 = vunpack.c.h.b16 %v664
    %v1013 = vunpack.c.l.b16 %v665
    %v1014 = vunpack.c.h.b16 %v665
    %v1015 = vunpack.c.l.b16 %v666
    %v1016 = vunpack.c.h.b16 %v666
    %v1017 = vunpack.c.l.b16 %v667
    %v1018 = vunpack.c.h.b16 %v667
    %v1019 = vunpack.c.l.b16 %v668
    %v1020 = vunpack.c.h.b16 %v668
    %v1021 = vunpack.c.l.b16 %v669
    %v1022 = vunpack.c.h.b16 %v669
    %v1023 = vunpack.c.l.b16 %v670
    %v1024 = vunpack.c.h.b16 %v670
    %v1025 = vunpack.c.l.b16 %v671
    %v1026 = vunpack.c.h.b16 %v671
    %v1027 = vunpack.c.l.b16 %v672
    %v1028 = vunpack.c.h.b16 %v672
    %v1029 = vunpack.c.l.b16 %v673
    %v1030 = vunpack.c.h.b16 %v673
    %v1031 = vunpack.c.l.b16 %v674
    %v1032 = vunpack.c.h.b16 %v674
    %v1033 = vunpack.c.l.b16 %v675
    %v1034 = vunpack.c.h.b16 %v675
    %v1035 = vunpack.c.l.b16 %v676
    %v1036 = vunpack.c.h.b16 %v676
    %v1037 = vunpack.c.l.b16 %v677
    %v1038 = vunpack.c.h.b16 %v677
    %v1039 = vunpack.c.l.b16 %v678
    %v1040 = vunpack.c.h.b16 %v678
    %v1041 = vunpack.c.l.b16 %v679
    %v1042 = vunpack.c.h.b16 %v679
    %v1043 = vunpack.c.l.b16 %v680
    %v1044 = vunpack.c.h.b16 %v680
    %v1045 = vunpack.c.l.b16 %v681
    %v1046 = vunpack.c.h.b16 %v681
    %v1047 = vunpack.c.l.b16 %v682
    %v1048 = vunpack.c.h.b16 %v682
    %v1049 = vunpack.c.l.b16 %v683
    %v1050 = vunpack.c.h.b16 %v683
    %v1051 = vunpack.c.l.b16 %v684
    %v1052 = vunpack.c.h.b16 %v684
    %v1053 = vunpack.c.l.b16 %v685
    %v1054 = vunpack.c.h.b16 %v685
    %v1055 = vunpack.c.l.b16 %v686
    %v1056 = vunpack.c.h.b16 %v686
    %v1057 = vunpack.c.l.b16 %v687
    %v1058 = vunpack.c.h.b16 %v687
    %v1059 = vunpack.c.l.b16 %v688
    %v1060 = vunpack.c.h.b16 %v688
    %v1061 = vunpack.c.l.b16 %v689
    %v1062 = vunpack.c.h.b16 %v689
    %v1063 = vunpack.c.l.b16 %v690
    %v1064 = vunpack.c.h.b16 %v690
    %v1065 = vunpack.c.l.b16 %v691
    %v1066 = vunpack.c.h.b16 %v691
    %v1067 = vunpack.c.l.b16 %v692
    %v1068 = vunpack.c.h.b16 %v692
    %v1069 = vunpack.c.l.b16 %v693
    %v1070 = vunpack.c.h.b16 %v693
    %v1071 = vunpack.c.l.b16 %v694
    %v1072 = vunpack.c.h.b16 %v694
    %v1073 = vunpack.c.l.b16 %v695
    %v1074 = vunpack.c.h.b16 %v695
    %v1075 = vunpack.c.l.b16 %v696
    %v1076 = vunpack.c.h.b16 %v696
    %v1077 = vunpack.c.l.b16 %v697
    %v1078 = vunpack.c.h.b16 %v697
    %v1079 = vunpack.c.l.b16 %v698
    %v1080 = vunpack.c.h.b16 %v698
    %v1081 = vunpack.c.l.b16 %v699
    %v1082 = vunpack.c.h.b16 %v699
    %v1083 = vunpack.c.l.b16 %v700
    %v1084 = vunpack.c.h.b16 %v700
    %v1085 = vpack.c.b16 %v833, %v829
    %v1086 = vpack.c.b16 %v834, %v830
    %v1087 = vpack.c.b16 %v835, %v831
    %v1088 = vpack.c.b16 %v836, %v832
    %v1089 = vpack.c.b16 %v841, %v837
    %v1090 = vpack.c.b16 %v842, %v838
    %v1091 = vpack.c.b16 %v843, %v839
    %v1092 = vpack.c.b16 %v844, %v840
    %v1093 = vpack.c.b16 %v849, %v845
    %v1094 = vpack.c.b16 %v850, %v846
    %v1095 = vpack.c.b16 %v851, %v847
    %v1096 = vpack.c.b16 %v852, %v848
    %v1097 = vpack.c.b16 %v857, %v853
    %v1098 = vpack.c.b16 %v858, %v854
    %v1099 = vpack.c.b16 %v859, %v855
    %v1100 = vpack.c.b16 %v860, %v856
    %v1101 = vpack.c.b16 %v865, %v861
    %v1102 = vpack.c.b16 %v866, %v862
    %v1103 = vpack.c.b16 %v867, %v863
    %v1104 = vpack.c.b16 %v868, %v864
    %v1105 = vpack.c.b16 %v873, %v869
    %v1106 = vpack.c.b16 %v874, %v870
    %v1107 = vpack.c.b16 %v875, %v871
    %v1108 = vpack.c.b16 %v876, %v872
    %v1109 = vpack.c.b16 %v881, %v877
    %v1110 = vpack.c.b16 %v882, %v878
    %v1111 = vpack.c.b16 %v883, %v879
    %v1112 = vpack.c.b16 %v884, %v880
    %v1113 = vpack.c.b16 %v889, %v885
    %v1114 = vpack.c.b16 %v890, %v886
    %v1115 = vpack.c.b16 %v891, %v887
    %v1116 = vpack.c.b16 %v892, %v888
    %v1117 = vpack.c.b16 %v897, %v893
    %v1118 = vpack.c.b16 %v898, %v894
    %v1119 = vpack.c.b16 %v899, %v895
    %v1120 = vpack.c.b16 %v900, %v896
    %v1121 = vpack.c.b16 %v905, %v901
    %v1122 = vpack.c.b16 %v906, %v902
    %v1123 = vpack.c.b16 %v907, %v903
    %v1124 = vpack.c.b16 %v908, %v904
    %v1125 = vpack.c.b16 %v913, %v909
    %v1126 = vpack.c.b16 %v914, %v910
    %v1127 = vpack.c.b16 %v915, %v911
    %v1128 = vpack.c.b16 %v916, %v912
    %v1129 = vpack.c.b16 %v921, %v917
    %v1130 = vpack.c.b16 %v922, %v918
    %v1131 = vpack.c.b16 %v923, %v919
    %v1132 = vpack.c.b16 %v924, %v920
    %v1133 = vpack.c.b16 %v929, %v925
    %v1134 = vpack.c.b16 %v930, %v926
    %v1135 = vpack.c.b16 %v931, %v927
    %v1136 = vpack.c.b16 %v932, %v928
    %v1137 = vpack.c.b16 %v937, %v933
    %v1138 = vpack.c.b16 %v938, %v934
    %v1139 = vpack.c.b16 %v939, %v935
    %v1140 = vpack.c.b16 %v940, %v936
    %v1141 = vpack.c.b16 %v945, %v941
    %v1142 = vpack.c.b16 %v946, %v942
    %v1143 = vpack.c.b16 %v947, %v943
    %v1144 = vpack.c.b16 %v948, %v944
    %v1145 = vpack.c.b16 %v953, %v949
    %v1146 = vpack.c.b16 %v954, %v950
    %v1147 = vpack.c.b16 %v955, %v951
    %v1148 = vpack.c.b16 %v956, %v952
    %v1149 = vpack.c.b16 %v961, %v957
    %v1150 = vpack.c.b16 %v962, %v958
    %v1151 = vpack.c.b16 %v963, %v959
    %v1152 = vpack.c.b16 %v964, %v960
    %v1153 = vpack.c.b16 %v969, %v965
    %v1154 = vpack.c.b16 %v970, %v966
    %v1155 = vpack.c.b16 %v971, %v967
    %v1156 = vpack.c.b16 %v972, %v968
    %v1157 = vpack.c.b16 %v977, %v973
    %v1158 = vpack.c.b16 %v978, %v974
    %v1159 = vpack.c.b16 %v979, %v975
    %v1160 = vpack.c.b16 %v980, %v976
    %v1161 = vpack.c.b16 %v985, %v981
    %v1162 = vpack.c.b16 %v986, %v982
    %v1163 = vpack.c.b16 %v987, %v983
    %v1164 = vpack.c.b16 %v988, %v984
    %v1165 = vpack.c.b16 %v993, %v989
    %v1166 = vpack.c.b16 %v994, %v990
    %v1167 = vpack.c.b16 %v995, %v991
    %v1168 = vpack.c.b16 %v996, %v992
    %v1169 = vpack.c.b16 %v1001, %v997
    %v1170 = vpack.c.b16 %v1002, %v998
    %v1171 = vpack.c.b16 %v1003, %v999
    %v1172 = vpack.c.b16 %v1004, %v1000
    %v1173 = vpack.c.b16 %v1009, %v1005
    %v1174 = vpack.c.b16 %v1010, %v1006
    %v1175 = vpack.c.b16 %v1011, %v1007
    %v1176 = vpack.c.b16 %v1012, %v1008
    %v1177 = vpack.c.b16 %v1017, %v1013
    %v1178 = vpack.c.b16 %v1018, %v1014
    %v1179 = vpack.c.b16 %v1019, %v1015
    %v1180 = vpack.c.b16 %v1020, %v1016
    %v1181 = vpack.c.b16 %v1025, %v1021
    %v1182 = vpack.c.b16 %v1026, %v1022
    %v1183 = vpack.c.b16 %v1027, %v1023
    %v1184 = vpack.c.b16 %v1028, %v1024
    %v1185 = vpack.c.b16 %v1033, %v1029
    %v1186 = vpack.c.b16 %v1034, %v1030
    %v1187 = vpack.c.b16 %v1035, %v1031
    %v1188 = vpack.c.b16 %v1036, %v1032
    %v1189 = vpack.c.b16 %v1041, %v1037
    %v1190 = vpack.c.b16 %v1042, %v1038
    %v1191 = vpack.c.b16 %v1043, %v1039
    %v1192 = vpack.c.b16 %v1044, %v1040
    %v1193 = vpack.c.b16 %v1049, %v1045
    %v1194 = vpack.c.b16 %v1050, %v1046
    %v1195 = vpack.c.b16 %v1051, %v1047
    %v1196 = vpack.c.b16 %v1052, %v1048
    %v1197 = vpack.c.b16 %v1057, %v1053
    %v1198 = vpack.c.b16 %v1058, %v1054
    %v1199 = vpack.c.b16 %v1059, %v1055
    %v1200 = vpack.c.b16 %v1060, %v1056
    %v1201 = vpack.c.b16 %v1065, %v1061
    %v1202 = vpack.c.b16 %v1066, %v1062
    %v1203 = vpack.c.b16 %v1067, %v1063
    %v1204 = vpack.c.b16 %v1068, %v1064
    %v1205 = vpack.c.b16 %v1073, %v1069
    %v1206 = vpack.c.b16 %v1074, %v1070
    %v1207 = vpack.c.b16 %v1075, %v1071
    %v1208 = vpack.c.b16 %v1076, %v1072
    %v1209 = vpack.c.b16 %v1081, %v1077
    %v1210 = vpack.c.b16 %v1082, %v1078
    %v1211 = vpack.c.b16 %v1083, %v1079
    %v1212 = vpack.c.b16 %v1084, %v1080
    %1341 = vmatprep.subr.bf16.mxu0 %v1086
    %1342 = vmatpush1.bf16.msra.mxu0 %v1085
    %1343 = vmatprep.subr.bf16.mxu0 %v1090
    %1344 = vmatpush1.bf16.msra.mxu0 %v1089
    %1345 = vmatprep.subr.bf16.mxu0 %v1094
    %1346 = vmatpush1.bf16.msra.mxu0 %v1093
    %1347 = vmatprep.subr.bf16.mxu0 %v1098
    %1348 = vmatpush1.bf16.msra.mxu0 %v1097
    %1349 = vmatprep.subr.bf16.mxu0 %v1102
    %1350 = vmatpush1.bf16.msra.mxu0 %v1101
    %1351 = vmatprep.subr.bf16.mxu0 %v1106
    %1352 = vmatpush1.bf16.msra.mxu0 %v1105
    %1353 = vmatprep.subr.bf16.mxu0 %v1110
    %1354 = vmatpush1.bf16.msra.mxu0 %v1109
    %1355 = vmatprep.subr.bf16.mxu0 %v1114
    %1356 = vmatpush1.bf16.msra.mxu0 %v1113
    %1357 = vmatprep.subr.bf16.mxu0 %v1118
    %1358 = vmatpush1.bf16.msra.mxu0 %v1117
    %1359 = vmatprep.subr.bf16.mxu0 %v1122
    %1360 = vmatpush1.bf16.msra.mxu0 %v1121
    %1361 = vmatprep.subr.bf16.mxu0 %v1126
    %1362 = vmatpush1.bf16.msra.mxu0 %v1125
    %1363 = vmatprep.subr.bf16.mxu0 %v1130
    %1364 = vmatpush1.bf16.msra.mxu0 %v1129
    %1365 = vmatprep.subr.bf16.mxu0 %v1134
    %1366 = vmatpush1.bf16.msra.mxu0 %v1133
    %1367 = vmatprep.subr.bf16.mxu0 %v1138
    %1368 = vmatpush1.bf16.msra.mxu0 %v1137
    %1369 = vmatprep.subr.bf16.mxu0 %v1142
    %1370 = vmatpush1.bf16.msra.mxu0 %v1141
    %1371 = vmatprep.subr.bf16.mxu0 %v1146
    %1372 = vmatpush1.bf16.msra.mxu0 %v1145
    %1373 = vmatprep.mubr.bf16.mxu0 %v570
    %1374 = vmatmul.mubr.bf16.gmra.mrb[0].mxu0 %v569
    %v1375 = vpop.f32.mrb[0].mxu0
    %v1376 = vadd.f32 0.0, %v1375
    %v1377 = vpop.f32.mrb[0].mxu0
    %v1378 = vadd.f32 0.0, %v1377
    %v1379 = vpop.f32.mrb[0].mxu0
    %v1380 = vpop.f32.mrb[0].mxu0
    %1381 = vdwg.mxu0
    %1382 = vmatprep.subr.bf16.mxu0 %v1150
    %1383 = vmatpush1.bf16.msra.mxu0 %v1149
    %1384 = vmatprep.subr.bf16.mxu0 %v1154
    %1385 = vmatpush1.bf16.msra.mxu0 %v1153
    %1386 = vmatprep.subr.bf16.mxu0 %v1158
    %1387 = vmatpush1.bf16.msra.mxu0 %v1157
    %1388 = vmatprep.subr.bf16.mxu0 %v1162
    %1389 = vmatpush1.bf16.msra.mxu0 %v1161
    %1390 = vmatprep.subr.bf16.mxu0 %v1166
    %1391 = vmatpush1.bf16.msra.mxu0 %v1165
    %1392 = vmatprep.subr.bf16.mxu0 %v1170
    %1393 = vmatpush1.bf16.msra.mxu0 %v1169
    %1394 = vmatprep.subr.bf16.mxu0 %v1174
    %1395 = vmatpush1.bf16.msra.mxu0 %v1173
    %1396 = vmatprep.subr.bf16.mxu0 %v1178
    %1397 = vmatpush1.bf16.msra.mxu0 %v1177
    %1398 = vmatprep.subr.bf16.mxu0 %v1182
    %1399 = vmatpush1.bf16.msra.mxu0 %v1181
    %1400 = vmatprep.subr.bf16.mxu0 %v1186
    %1401 = vmatpush1.bf16.msra.mxu0 %v1185
    %1402 = vmatprep.subr.bf16.mxu0 %v1190
    %1403 = vmatpush1.bf16.msra.mxu0 %v1189
    %1404 = vmatprep.subr.bf16.mxu0 %v1194
    %1405 = vmatpush1.bf16.msra.mxu0 %v1193
    %1406 = vmatprep.subr.bf16.mxu0 %v1198
    %1407 = vmatpush1.bf16.msra.mxu0 %v1197
    %1408 = vmatprep.subr.bf16.mxu0 %v1202
    %1409 = vmatpush1.bf16.msra.mxu0 %v1201
    %1410 = vmatprep.subr.bf16.mxu0 %v1206
    %1411 = vmatpush1.bf16.msra.mxu0 %v1205
    %1412 = vmatprep.subr.bf16.mxu0 %v1210
    %1413 = vmatpush1.bf16.msra.mxu0 %v1209
    %1414 = vmatprep.mubr.bf16.mxu0 %v572
    %1415 = vmatmul.mubr.bf16.gmra.mrb[0].mxu0 %v571
    %v1416 = vpop.f32.mrb[0].mxu0
    %v1417 = vadd.f32 %v1376, %v1416
    %v1418 = vpop.f32.mrb[0].mxu0
    %v1419 = vadd.f32 %v1378, %v1418
    %v1420 = vpop.f32.mrb[0].mxu0
    %v1421 = vpop.f32.mrb[0].mxu0
    %1422 = vdwg.mxu0
    %1423 = vmatprep.subr.bf16.mxu0 %v1088
    %1424 = vmatpush1.bf16.msra.mxu0 %v1087
    %1425 = vmatprep.subr.bf16.mxu0 %v1092
    %1426 = vmatpush1.bf16.msra.mxu0 %v1091
    %1427 = vmatprep.subr.bf16.mxu0 %v1096
    %1428 = vmatpush1.bf16.msra.mxu0 %v1095
    %1429 = vmatprep.subr.bf16.mxu0 %v1100
    %1430 = vmatpush1.bf16.msra.mxu0 %v1099
    %1431 = vmatprep.subr.bf16.mxu0 %v1104
    %1432 = vmatpush1.bf16.msra.mxu0 %v1103
    %1433 = vmatprep.subr.bf16.mxu0 %v1108
    %1434 = vmatpush1.bf16.msra.mxu0 %v1107
    %1435 = vmatprep.subr.bf16.mxu0 %v1112
    %1436 = vmatpush1.bf16.msra.mxu0 %v1111
    %1437 = vmatprep.subr.bf16.mxu0 %v1116
    %1438 = vmatpush1.bf16.msra.mxu0 %v1115
    %1439 = vmatprep.subr.bf16.mxu0 %v1120
    %1440 = vmatpush1.bf16.msra.mxu0 %v1119
    %1441 = vmatprep.subr.bf16.mxu0 %v1124
    %1442 = vmatpush1.bf16.msra.mxu0 %v1123
    %1443 = vmatprep.subr.bf16.mxu0 %v1128
    %1444 = vmatpush1.bf16.msra.mxu0 %v1127
    %1445 = vmatprep.subr.bf16.mxu0 %v1132
    %1446 = vmatpush1.bf16.msra.mxu0 %v1131
    %1447 = vmatprep.subr.bf16.mxu0 %v1136
    %1448 = vmatpush1.bf16.msra.mxu0 %v1135
    %1449 = vmatprep.subr.bf16.mxu0 %v1140
    %1450 = vmatpush1.bf16.msra.mxu0 %v1139
    %1451 = vmatprep.subr.bf16.mxu0 %v1144
    %1452 = vmatpush1.bf16.msra.mxu0 %v1143
    %1453 = vmatprep.subr.bf16.mxu0 %v1148
    %1454 = vmatpush1.bf16.msra.mxu0 %v1147
    %1455 = vmatprep.mubr.bf16.mxu0 %v570
    %1456 = vmatmul.mubr.bf16.gmra.mrb[0].mxu0 %v569
    %v1457 = vpop.f32.mrb[0].mxu0
    %v1458 = vadd.f32 0.0, %v1457
    %v1459 = vpop.f32.mrb[0].mxu0
    %v1460 = vadd.f32 0.0, %v1459
    %v1461 = vpop.f32.mrb[0].mxu0
    %v1462 = vpop.f32.mrb[0].mxu0
    %1463 = vdwg.mxu0
    %1464 = vmatprep.subr.bf16.mxu0 %v1152
    %1465 = vmatpush1.bf16.msra.mxu0 %v1151
    %1466 = vmatprep.subr.bf16.mxu0 %v1156
    %1467 = vmatpush1.bf16.msra.mxu0 %v1155
    %1468 = vmatprep.subr.bf16.mxu0 %v1160
    %1469 = vmatpush1.bf16.msra.mxu0 %v1159
    %1470 = vmatprep.subr.bf16.mxu0 %v1164
    %1471 = vmatpush1.bf16.msra.mxu0 %v1163
    %1472 = vmatprep.subr.bf16.mxu0 %v1168
    %1473 = vmatpush1.bf16.msra.mxu0 %v1167
    %1474 = vmatprep.subr.bf16.mxu0 %v1172
    %1475 = vmatpush1.bf16.msra.mxu0 %v1171
    %1476 = vmatprep.subr.bf16.mxu0 %v1176
    %1477 = vmatpush1.bf16.msra.mxu0 %v1175
    %1478 = vmatprep.subr.bf16.mxu0 %v1180
    %1479 = vmatpush1.bf16.msra.mxu0 %v1179
    %1480 = vmatprep.subr.bf16.mxu0 %v1184
    %1481 = vmatpush1.bf16.msra.mxu0 %v1183
    %1482 = vmatprep.subr.bf16.mxu0 %v1188
    %1483 = vmatpush1.bf16.msra.mxu0 %v1187
    %1484 = vmatprep.subr.bf16.mxu0 %v1192
    %1485 = vmatpush1.bf16.msra.mxu0 %v1191
    %1486 = vmatprep.subr.bf16.mxu0 %v1196
    %1487 = vmatpush1.bf16.msra.mxu0 %v1195
    %1488 = vmatprep.subr.bf16.mxu0 %v1200
    %1489 = vmatpush1.bf16.msra.mxu0 %v1199
    %1490 = vmatprep.subr.bf16.mxu0 %v1204
    %1491 = vmatpush1.bf16.msra.mxu0 %v1203
    %1492 = vmatprep.subr.bf16.mxu0 %v1208
    %1493 = vmatpush1.bf16.msra.mxu0 %v1207
    %1494 = vmatprep.subr.bf16.mxu0 %v1212
    %1495 = vmatpush1.bf16.msra.mxu0 %v1211
    %1496 = vmatprep.mubr.bf16.mxu0 %v572
    %1497 = vmatmul.mubr.bf16.gmra.mrb[0].mxu0 %v571
    %v1498 = vpop.f32.mrb[0].mxu0
    %v1499 = vadd.f32 %v1458, %v1498
    %v1500 = vpop.f32.mrb[0].mxu0
    %v1501 = vadd.f32 %v1460, %v1500
    %v1502 = vpop.f32.mrb[0].mxu0
    %v1503 = vpop.f32.mrb[0].mxu0
    %1504 = vdwg.mxu0
    %v1505 = vld [vmem:[%s6] sm:$0x3]
    %v1507 = vlaneseq
    %v1508 = vshrl.u32 %v1507, 7
    %v1509 = vsub.s32 0, %v1508
    %v1510 = vrot.slane %v1505, %v1509
    %v1511 = vlaneseq
    %v1512 = vshrl.u32 %v1511, 7
    %v1513 = vsub.s32 1, %v1512
    %v1514 = vrot.slane %v1505, %v1513
    %v1517 = vadd.f32 %v1417, %v1510
    %v1518 = vadd.f32 %v1419, %v1514
    %1519 = vst [vmem:[#allocation3] sm:$0xff] %v1517
    %1520 = vst [vmem:[#allocation3 + $0x8] sm:$0xff] %v1518
    %v1521 = vadd.f32 %v1499, %v1510
    %v1522 = vadd.f32 %v1501, %v1514
    %1523 = vst [vmem:[#allocation3 + $0x10] sm:$0xff] %v1521
    %1524 = vst [vmem:[#allocation3 + $0x18] sm:$0xff] %v1522
    %v1525 = vld [vmem:[#allocation3] sm:$0xff]
    %v1526 = vld [vmem:[#allocation3 + $0x8] sm:$0xff]
    %v1527 = vld [vmem:[#allocation3 + $0x10] sm:$0xff]
    %v1528 = vld [vmem:[#allocation3 + $0x18] sm:$0xff]
    %v1529 = vld [vmem:[%s7] sm:$0x3]
    %v1530 = vld [vmem:[%s8] sm:$0x3]
    %v1531 = vadd.f32 %v1525, %v1527
    %v1532 = vrot.slane %v1531, 4
    %v1533 = vadd.f32 %v1531, %v1532
    %v1534 = vrot.slane %v1533, 2
    %v1535 = vadd.f32 %v1533, %v1534
    %v1536 = vrot.slane %v1535, 1
    %v1537 = vadd.f32 %v1535, %v1536
    %v1538 = vadd.f32 %v1526, %v1528
    %v1539 = vrot.slane %v1538, 4
    %v1540 = vadd.f32 %v1538, %v1539
    %v1541 = vrot.slane %v1540, 2
    %v1542 = vadd.f32 %v1540, %v1541
    %v1543 = vrot.slane %v1542, 1
    %v1544 = vadd.f32 %v1542, %v1543
    %v1545 = vmul.f32 %v1537, 0.0625
    %v1546 = vmul.f32 %v1544, 0.0625
    %v1547 = vsub.f32 %v1525, %v1545
    %v1548 = vsub.f32 %v1526, %v1546
    %v1549 = vsub.f32 %v1527, %v1545
    %v1550 = vsub.f32 %v1528, %v1546
    %v1551 = vmul.f32 %v1547, %v1547
    %v1552 = vmul.f32 %v1548, %v1548
    %v1553 = vmul.f32 %v1549, %v1549
    %v1554 = vmul.f32 %v1550, %v1550
    %v1555 = vadd.f32 %v1551, %v1553
    %v1556 = vrot.slane %v1555, 4
    %v1557 = vadd.f32 %v1555, %v1556
    %v1558 = vrot.slane %v1557, 2
    %v1559 = vadd.f32 %v1557, %v1558
    %v1560 = vrot.slane %v1559, 1
    %v1561 = vadd.f32 %v1559, %v1560
    %v1562 = vadd.f32 %v1552, %v1554
    %v1563 = vrot.slane %v1562, 4
    %v1564 = vadd.f32 %v1562, %v1563
    %v1565 = vrot.slane %v1564, 2
    %v1566 = vadd.f32 %v1564, %v1565
    %v1567 = vrot.slane %v1566, 1
    %v1568 = vadd.f32 %v1566, %v1567
    %v1569 = vmul.f32 %v1561, 0.0625
    %v1570 = vmul.f32 %v1568, 0.0625
    %v1571 = vadd.f32 %v1569, 1e-05
    %v1572 = vadd.f32 %v1570, 1e-05
    %v1573 = vrsqrt.pop %v1571
    %v1574 = vrsqrt.pop %v1572
    %v1575 = vmul.f32 %v1547, %v1573
    %v1576 = vmul.f32 %v1548, %v1574
    %v1577 = vmul.f32 %v1549, %v1573
    %v1578 = vmul.f32 %v1550, %v1574
    %v1580 = vlaneseq
    %v1581 = vshrl.u32 %v1580, 7
    %v1582 = vsub.s32 0, %v1581
    %v1583 = vrot.slane %v1529, %v1582
    %v1584 = vlaneseq
    %v1585 = vshrl.u32 %v1584, 7
    %v1586 = vsub.s32 1, %v1585
    %v1587 = vrot.slane %v1529, %v1586
    %v1590 = vmul.f32 %v1575, %v1583
    %v1591 = vmul.f32 %v1576, %v1587
    %v1592 = vmul.f32 %v1577, %v1583
    %v1593 = vmul.f32 %v1578, %v1587
    %v1595 = vlaneseq
    %v1596 = vshrl.u32 %v1595, 7
    %v1597 = vsub.s32 0, %v1596
    %v1598 = vrot.slane %v1530, %v1597
    %v1599 = vlaneseq
    %v1600 = vshrl.u32 %v1599, 7
    %v1601 = vsub.s32 1, %v1600
    %v1602 = vrot.slane %v1530, %v1601
    %v1605 = vadd.f32 %v1590, %v1598
    %v1606 = vadd.f32 %v1591, %v1602
    %v1607 = vadd.f32 %v1592, %v1598
    %v1608 = vadd.f32 %v1593, %v1602
    %v1609 = vmax.f32 %v1605, 0.0
    %v1610 = vmax.f32 %v1606, 0.0
    %v1611 = vmax.f32 %v1607, 0.0
    %v1612 = vmax.f32 %v1608, 0.0
    %v1613 = vpack.c.bf16 %v1611, %v1609
    %v1614 = vpack.c.bf16 %v1612, %v1610
    %v1615 = vld [vmem:[#allocation10] sm:$0xff]
    %v1616 = vld [vmem:[#allocation10 + $0x8] sm:$0xff]
    %v1617 = vld [vmem:[#allocation10 + $0x10] sm:$0xff]
    %v1618 = vld [vmem:[#allocation10 + $0x18] sm:$0xff]
    %v1619 = vld [vmem:[#allocation10 + $0x20] sm:$0xff]
    %v1620 = vld [vmem:[#allocation10 + $0x28] sm:$0xff]
    %v1621 = vld [vmem:[#allocation10 + $0x30] sm:$0xff]
    %v1622 = vld [vmem:[#allocation10 + $0x38] sm:$0xff]
    %v1623 = vld [vmem:[#allocation10 + $0x40] sm:$0xff]
    %v1624 = vld [vmem:[#allocation10 + $0x48] sm:$0xff]
    %v1625 = vld [vmem:[#allocation10 + $0x50] sm:$0xff]
    %v1626 = vld [vmem:[#allocation10 + $0x58] sm:$0xff]
    %v1627 = vld [vmem:[#allocation10 + $0x60] sm:$0xff]
    %v1628 = vld [vmem:[#allocation10 + $0x68] sm:$0xff]
    %v1629 = vld [vmem:[#allocation10 + $0x70] sm:$0xff]
    %v1630 = vld [vmem:[#allocation10 + $0x78] sm:$0xff]
    %v1631 = vld [vmem:[#allocation10 + $0x80] sm:$0xff]
    %v1632 = vld [vmem:[#allocation10 + $0x88] sm:$0xff]
    %v1633 = vld [vmem:[#allocation10 + $0x90] sm:$0xff]
    %v1634 = vld [vmem:[#allocation10 + $0x98] sm:$0xff]
    %v1635 = vld [vmem:[#allocation10 + $0xa0] sm:$0xff]
    %v1636 = vld [vmem:[#allocation10 + $0xa8] sm:$0xff]
    %v1637 = vld [vmem:[#allocation10 + $0xb0] sm:$0xff]
    %v1638 = vld [vmem:[#allocation10 + $0xb8] sm:$0xff]
    %v1639 = vld [vmem:[#allocation10 + $0xc0] sm:$0xff]
    %v1640 = vld [vmem:[#allocation10 + $0xc8] sm:$0xff]
    %v1641 = vld [vmem:[#allocation10 + $0xd0] sm:$0xff]
    %v1642 = vld [vmem:[#allocation10 + $0xd8] sm:$0xff]
    %v1643 = vld [vmem:[#allocation10 + $0xe0] sm:$0xff]
    %v1644 = vld [vmem:[#allocation10 + $0xe8] sm:$0xff]
    %v1645 = vld [vmem:[#allocation10 + $0xf0] sm:$0xff]
    %v1646 = vld [vmem:[#allocation10 + $0xf8] sm:$0xff]
    %v1647 = vld [vmem:[#allocation10 + $0x100] sm:$0xff]
    %v1648 = vld [vmem:[#allocation10 + $0x108] sm:$0xff]
    %v1649 = vld [vmem:[#allocation10 + $0x110] sm:$0xff]
    %v1650 = vld [vmem:[#allocation10 + $0x118] sm:$0xff]
    %v1651 = vld [vmem:[#allocation10 + $0x120] sm:$0xff]
    %v1652 = vld [vmem:[#allocation10 + $0x128] sm:$0xff]
    %v1653 = vld [vmem:[#allocation10 + $0x130] sm:$0xff]
    %v1654 = vld [vmem:[#allocation10 + $0x138] sm:$0xff]
    %v1655 = vld [vmem:[#allocation10 + $0x140] sm:$0xff]
    %v1656 = vld [vmem:[#allocation10 + $0x148] sm:$0xff]
    %v1657 = vld [vmem:[#allocation10 + $0x150] sm:$0xff]
    %v1658 = vld [vmem:[#allocation10 + $0x158] sm:$0xff]
    %v1659 = vld [vmem:[#allocation10 + $0x160] sm:$0xff]
    %v1660 = vld [vmem:[#allocation10 + $0x168] sm:$0xff]
    %v1661 = vld [vmem:[#allocation10 + $0x170] sm:$0xff]
    %v1662 = vld [vmem:[#allocation10 + $0x178] sm:$0xff]
    %v1663 = vld [vmem:[#allocation10 + $0x180] sm:$0xff]
    %v1664 = vld [vmem:[#allocation10 + $0x188] sm:$0xff]
    %v1665 = vld [vmem:[#allocation10 + $0x190] sm:$0xff]
    %v1666 = vld [vmem:[#allocation10 + $0x198] sm:$0xff]
    %v1667 = vld [vmem:[#allocation10 + $0x1a0] sm:$0xff]
    %v1668 = vld [vmem:[#allocation10 + $0x1a8] sm:$0xff]
    %v1669 = vld [vmem:[#allocation10 + $0x1b0] sm:$0xff]
    %v1670 = vld [vmem:[#allocation10 + $0x1b8] sm:$0xff]
    %v1671 = vld [vmem:[#allocation10 + $0x1c0] sm:$0xff]
    %v1672 = vld [vmem:[#allocation10 + $0x1c8] sm:$0xff]
    %v1673 = vld [vmem:[#allocation10 + $0x1d0] sm:$0xff]
    %v1674 = vld [vmem:[#allocation10 + $0x1d8] sm:$0xff]
    %v1675 = vld [vmem:[#allocation10 + $0x1e0] sm:$0xff]
    %v1676 = vld [vmem:[#allocation10 + $0x1e8] sm:$0xff]
    %v1677 = vld [vmem:[#allocation10 + $0x1f0] sm:$0xff]
    %v1678 = vld [vmem:[#allocation10 + $0x1f8] sm:$0xff]
    %v1743 = vunpack.c.l.b16 %v1615
    %v1744 = vunpack.c.h.b16 %v1615
    %v1745 = vunpack.c.l.b16 %v1616
    %v1746 = vunpack.c.h.b16 %v1616
    %v1747 = vunpack.c.l.b16 %v1617
    %v1748 = vunpack.c.h.b16 %v1617
    %v1749 = vunpack.c.l.b16 %v1618
    %v1750 = vunpack.c.h.b16 %v1618
    %v1751 = vunpack.c.l.b16 %v1619
    %v1752 = vunpack.c.h.b16 %v1619
    %v1753 = vunpack.c.l.b16 %v1620
    %v1754 = vunpack.c.h.b16 %v1620
    %v1755 = vunpack.c.l.b16 %v1621
    %v1756 = vunpack.c.h.b16 %v1621
    %v1757 = vunpack.c.l.b16 %v1622
    %v1758 = vunpack.c.h.b16 %v1622
    %v1759 = vunpack.c.l.b16 %v1623
    %v1760 = vunpack.c.h.b16 %v1623
    %v1761 = vunpack.c.l.b16 %v1624
    %v1762 = vunpack.c.h.b16 %v1624
    %v1763 = vunpack.c.l.b16 %v1625
    %v1764 = vunpack.c.h.b16 %v1625
    %v1765 = vunpack.c.l.b16 %v1626
    %v1766 = vunpack.c.h.b16 %v1626
    %v1767 = vunpack.c.l.b16 %v1627
    %v1768 = vunpack.c.h.b16 %v1627
    %v1769 = vunpack.c.l.b16 %v1628
    %v1770 = vunpack.c.h.b16 %v1628
    %v1771 = vunpack.c.l.b16 %v1629
    %v1772 = vunpack.c.h.b16 %v1629
    %v1773 = vunpack.c.l.b16 %v1630
    %v1774 = vunpack.c.h.b16 %v1630
    %v1775 = vunpack.c.l.b16 %v1631
    %v1776 = vunpack.c.h.b16 %v1631
    %v1777 = vunpack.c.l.b16 %v1632
    %v1778 = vunpack.c.h.b16 %v1632
    %v1779 = vunpack.c.l.b16 %v1633
    %v1780 = vunpack.c.h.b16 %v1633
    %v1781 = vunpack.c.l.b16 %v1634
    %v1782 = vunpack.c.h.b16 %v1634
    %v1783 = vunpack.c.l.b16 %v1635
    %v1784 = vunpack.c.h.b16 %v1635
    %v1785 = vunpack.c.l.b16 %v1636
    %v1786 = vunpack.c.h.b16 %v1636
    %v1787 = vunpack.c.l.b16 %v1637
    %v1788 = vunpack.c.h.b16 %v1637
    %v1789 = vunpack.c.l.b16 %v1638
    %v1790 = vunpack.c.h.b16 %v1638
    %v1791 = vunpack.c.l.b16 %v1639
    %v1792 = vunpack.c.h.b16 %v1639
    %v1793 = vunpack.c.l.b16 %v1640
    %v1794 = vunpack.c.h.b16 %v1640
    %v1795 = vunpack.c.l.b16 %v1641
    %v1796 = vunpack.c.h.b16 %v1641
    %v1797 = vunpack.c.l.b16 %v1642
    %v1798 = vunpack.c.h.b16 %v1642
    %v1799 = vunpack.c.l.b16 %v1643
    %v1800 = vunpack.c.h.b16 %v1643
    %v1801 = vunpack.c.l.b16 %v1644
    %v1802 = vunpack.c.h.b16 %v1644
    %v1803 = vunpack.c.l.b16 %v1645
    %v1804 = vunpack.c.h.b16 %v1645
    %v1805 = vunpack.c.l.b16 %v1646
    %v1806 = vunpack.c.h.b16 %v1646
    %v1807 = vunpack.c.l.b16 %v1647
    %v1808 = vunpack.c.h.b16 %v1647
    %v1809 = vunpack.c.l.b16 %v1648
    %v1810 = vunpack.c.h.b16 %v1648
    %v1811 = vunpack.c.l.b16 %v1649
    %v1812 = vunpack.c.h.b16 %v1649
    %v1813 = vunpack.c.l.b16 %v1650
    %v1814 = vunpack.c.h.b16 %v1650
    %v1815 = vunpack.c.l.b16 %v1651
    %v1816 = vunpack.c.h.b16 %v1651
    %v1817 = vunpack.c.l.b16 %v1652
    %v1818 = vunpack.c.h.b16 %v1652
    %v1819 = vunpack.c.l.b16 %v1653
    %v1820 = vunpack.c.h.b16 %v1653
    %v1821 = vunpack.c.l.b16 %v1654
    %v1822 = vunpack.c.h.b16 %v1654
    %v1823 = vunpack.c.l.b16 %v1655
    %v1824 = vunpack.c.h.b16 %v1655
    %v1825 = vunpack.c.l.b16 %v1656
    %v1826 = vunpack.c.h.b16 %v1656
    %v1827 = vunpack.c.l.b16 %v1657
    %v1828 = vunpack.c.h.b16 %v1657
    %v1829 = vunpack.c.l.b16 %v1658
    %v1830 = vunpack.c.h.b16 %v1658
    %v1831 = vunpack.c.l.b16 %v1659
    %v1832 = vunpack.c.h.b16 %v1659
    %v1833 = vunpack.c.l.b16 %v1660
    %v1834 = vunpack.c.h.b16 %v1660
    %v1835 = vunpack.c.l.b16 %v1661
    %v1836 = vunpack.c.h.b16 %v1661
    %v1837 = vunpack.c.l.b16 %v1662
    %v1838 = vunpack.c.h.b16 %v1662
    %v1839 = vunpack.c.l.b16 %v1663
    %v1840 = vunpack.c.h.b16 %v1663
    %v1841 = vunpack.c.l.b16 %v1664
    %v1842 = vunpack.c.h.b16 %v1664
    %v1843 = vunpack.c.l.b16 %v1665
    %v1844 = vunpack.c.h.b16 %v1665
    %v1845 = vunpack.c.l.b16 %v1666
    %v1846 = vunpack.c.h.b16 %v1666
    %v1847 = vunpack.c.l.b16 %v1667
    %v1848 = vunpack.c.h.b16 %v1667
    %v1849 = vunpack.c.l.b16 %v1668
    %v1850 = vunpack.c.h.b16 %v1668
    %v1851 = vunpack.c.l.b16 %v1669
    %v1852 = vunpack.c.h.b16 %v1669
    %v1853 = vunpack.c.l.b16 %v1670
    %v1854 = vunpack.c.h.b16 %v1670
    %v1855 = vunpack.c.l.b16 %v1671
    %v1856 = vunpack.c.h.b16 %v1671
    %v1857 = vunpack.c.l.b16 %v1672
    %v1858 = vunpack.c.h.b16 %v1672
    %v1859 = vunpack.c.l.b16 %v1673
    %v1860 = vunpack.c.h.b16 %v1673
    %v1861 = vunpack.c.l.b16 %v1674
    %v1862 = vunpack.c.h.b16 %v1674
    %v1863 = vunpack.c.l.b16 %v1675
    %v1864 = vunpack.c.h.b16 %v1675
    %v1865 = vunpack.c.l.b16 %v1676
    %v1866 = vunpack.c.h.b16 %v1676
    %v1867 = vunpack.c.l.b16 %v1677
    %v1868 = vunpack.c.h.b16 %v1677
    %v1869 = vunpack.c.l.b16 %v1678
    %v1870 = vunpack.c.h.b16 %v1678
    %v1871 = vpack.c.b16 %v1747, %v1743
    %v1872 = vpack.c.b16 %v1748, %v1744
    %v1873 = vpack.c.b16 %v1749, %v1745
    %v1874 = vpack.c.b16 %v1750, %v1746
    %v1875 = vpack.c.b16 %v1755, %v1751
    %v1876 = vpack.c.b16 %v1756, %v1752
    %v1877 = vpack.c.b16 %v1757, %v1753
    %v1878 = vpack.c.b16 %v1758, %v1754
    %v1879 = vpack.c.b16 %v1763, %v1759
    %v1880 = vpack.c.b16 %v1764, %v1760
    %v1881 = vpack.c.b16 %v1765, %v1761
    %v1882 = vpack.c.b16 %v1766, %v1762
    %v1883 = vpack.c.b16 %v1771, %v1767
    %v1884 = vpack.c.b16 %v1772, %v1768
    %v1885 = vpack.c.b16 %v1773, %v1769
    %v1886 = vpack.c.b16 %v1774, %v1770
    %v1887 = vpack.c.b16 %v1779, %v1775
    %v1888 = vpack.c.b16 %v1780, %v1776
    %v1889 = vpack.c.b16 %v1781, %v1777
    %v1890 = vpack.c.b16 %v1782, %v1778
    %v1891 = vpack.c.b16 %v1787, %v1783
    %v1892 = vpack.c.b16 %v1788, %v1784
    %v1893 = vpack.c.b16 %v1789, %v1785
    %v1894 = vpack.c.b16 %v1790, %v1786
    %v1895 = vpack.c.b16 %v1795, %v1791
    %v1896 = vpack.c.b16 %v1796, %v1792
    %v1897 = vpack.c.b16 %v1797, %v1793
    %v1898 = vpack.c.b16 %v1798, %v1794
    %v1899 = vpack.c.b16 %v1803, %v1799
    %v1900 = vpack.c.b16 %v1804, %v1800
    %v1901 = vpack.c.b16 %v1805, %v1801
    %v1902 = vpack.c.b16 %v1806, %v1802
    %v1903 = vpack.c.b16 %v1811, %v1807
    %v1904 = vpack.c.b16 %v1812, %v1808
    %v1905 = vpack.c.b16 %v1813, %v1809
    %v1906 = vpack.c.b16 %v1814, %v1810
    %v1907 = vpack.c.b16 %v1819, %v1815
    %v1908 = vpack.c.b16 %v1820, %v1816
    %v1909 = vpack.c.b16 %v1821, %v1817
    %v1910 = vpack.c.b16 %v1822, %v1818
    %v1911 = vpack.c.b16 %v1827, %v1823
    %v1912 = vpack.c.b16 %v1828, %v1824
    %v1913 = vpack.c.b16 %v1829, %v1825
    %v1914 = vpack.c.b16 %v1830, %v1826
    %v1915 = vpack.c.b16 %v1835, %v1831
    %v1916 = vpack.c.b16 %v1836, %v1832
    %v1917 = vpack.c.b16 %v1837, %v1833
    %v1918 = vpack.c.b16 %v1838, %v1834
    %v1919 = vpack.c.b16 %v1843, %v1839
    %v1920 = vpack.c.b16 %v1844, %v1840
    %v1921 = vpack.c.b16 %v1845, %v1841
    %v1922 = vpack.c.b16 %v1846, %v1842
    %v1923 = vpack.c.b16 %v1851, %v1847
    %v1924 = vpack.c.b16 %v1852, %v1848
    %v1925 = vpack.c.b16 %v1853, %v1849
    %v1926 = vpack.c.b16 %v1854, %v1850
    %v1927 = vpack.c.b16 %v1859, %v1855
    %v1928 = vpack.c.b16 %v1860, %v1856
    %v1929 = vpack.c.b16 %v1861, %v1857
    %v1930 = vpack.c.b16 %v1862, %v1858
    %v1931 = vpack.c.b16 %v1867, %v1863
    %v1932 = vpack.c.b16 %v1868, %v1864
    %v1933 = vpack.c.b16 %v1869, %v1865
    %v1934 = vpack.c.b16 %v1870, %v1866
    %1999 = vmatprep.subr.bf16.mxu0 %v1872
    %2000 = vmatpush1.bf16.msra.mxu0 %v1871
    %2001 = vmatprep.subr.bf16.mxu0 %v1876
    %2002 = vmatpush1.bf16.msra.mxu0 %v1875
    %2003 = vmatprep.subr.bf16.mxu0 %v1880
    %2004 = vmatpush1.bf16.msra.mxu0 %v1879
    %2005 = vmatprep.subr.bf16.mxu0 %v1884
    %2006 = vmatpush1.bf16.msra.mxu0 %v1883
    %2007 = vmatprep.subr.bf16.mxu0 %v1888
    %2008 = vmatpush1.bf16.msra.mxu0 %v1887
    %2009 = vmatprep.subr.bf16.mxu0 %v1892
    %2010 = vmatpush1.bf16.msra.mxu0 %v1891
    %2011 = vmatprep.subr.bf16.mxu0 %v1896
    %2012 = vmatpush1.bf16.msra.mxu0 %v1895
    %2013 = vmatprep.subr.bf16.mxu0 %v1900
    %2014 = vmatpush1.bf16.msra.mxu0 %v1899
    %2015 = vmatprep.subr.bf16.mxu0 %v1904
    %2016 = vmatpush1.bf16.msra.mxu0 %v1903
    %2017 = vmatprep.subr.bf16.mxu0 %v1908
    %2018 = vmatpush1.bf16.msra.mxu0 %v1907
    %2019 = vmatprep.subr.bf16.mxu0 %v1912
    %2020 = vmatpush1.bf16.msra.mxu0 %v1911
    %2021 = vmatprep.subr.bf16.mxu0 %v1916
    %2022 = vmatpush1.bf16.msra.mxu0 %v1915
    %2023 = vmatprep.subr.bf16.mxu0 %v1920
    %2024 = vmatpush1.bf16.msra.mxu0 %v1919
    %2025 = vmatprep.subr.bf16.mxu0 %v1924
    %2026 = vmatpush1.bf16.msra.mxu0 %v1923
    %2027 = vmatprep.subr.bf16.mxu0 %v1928
    %2028 = vmatpush1.bf16.msra.mxu0 %v1927
    %2029 = vmatprep.subr.bf16.mxu0 %v1932
    %2030 = vmatpush1.bf16.msra.mxu0 %v1931
    %2031 = vmatprep.mubr.bf16.mxu0 %v1614
    %2032 = vmatmul.mubr.bf16.gmra.mrb[0].mxu0 %v1613
    %v2033 = vpop.f32.mrb[0].mxu0
    %v2034 = vpop.f32.mrb[0].mxu0
    %v2035 = vadd.f32 0.0, %v2034
    %v2036 = vpop.f32.mrb[0].mxu0
    %v2037 = vadd.f32 0.0, %v2036
    %v2038 = vpop.f32.mrb[0].mxu0
    %v2039 = vadd.f32 0.0, %v2038
    %2040 = vdwg.mxu0
    %2041 = vmatprep.subr.bf16.mxu0 %v1874
    %2042 = vmatpush1.bf16.msra.mxu0 %v1873
    %2043 = vmatprep.subr.bf16.mxu0 %v1878
    %2044 = vmatpush1.bf16.msra.mxu0 %v1877
    %2045 = vmatprep.subr.bf16.mxu0 %v1882
    %2046 = vmatpush1.bf16.msra.mxu0 %v1881
    %2047 = vmatprep.subr.bf16.mxu0 %v1886
    %2048 = vmatpush1.bf16.msra.mxu0 %v1885
    %2049 = vmatprep.subr.bf16.mxu0 %v1890
    %2050 = vmatpush1.bf16.msra.mxu0 %v1889
    %2051 = vmatprep.subr.bf16.mxu0 %v1894
    %2052 = vmatpush1.bf16.msra.mxu0 %v1893
    %2053 = vmatprep.subr.bf16.mxu0 %v1898
    %2054 = vmatpush1.bf16.msra.mxu0 %v1897
    %2055 = vmatprep.subr.bf16.mxu0 %v1902
    %2056 = vmatpush1.bf16.msra.mxu0 %v1901
    %2057 = vmatprep.subr.bf16.mxu0 %v1906
    %2058 = vmatpush1.bf16.msra.mxu0 %v1905
    %2059 = vmatprep.subr.bf16.mxu0 %v1910
    %2060 = vmatpush1.bf16.msra.mxu0 %v1909
    %2061 = vmatprep.subr.bf16.mxu0 %v1914
    %2062 = vmatpush1.bf16.msra.mxu0 %v1913
    %2063 = vmatprep.subr.bf16.mxu0 %v1918
    %2064 = vmatpush1.bf16.msra.mxu0 %v1917
    %2065 = vmatprep.subr.bf16.mxu0 %v1922
    %2066 = vmatpush1.bf16.msra.mxu0 %v1921
    %2067 = vmatprep.subr.bf16.mxu0 %v1926
    %2068 = vmatpush1.bf16.msra.mxu0 %v1925
    %2069 = vmatprep.subr.bf16.mxu0 %v1930
    %2070 = vmatpush1.bf16.msra.mxu0 %v1929
    %2071 = vmatprep.subr.bf16.mxu0 %v1934
    %2072 = vmatpush1.bf16.msra.mxu0 %v1933
    %2073 = vmatprep.mubr.bf16.mxu0 %v1614
    %2074 = vmatmul.mubr.bf16.gmra.mrb[0].mxu0 %v1613
    %v2075 = vpop.f32.mrb[0].mxu0
    %v2076 = vadd.f32 0.0, %v2075
    %v2077 = vpop.f32.mrb[0].mxu0
    %v2078 = vadd.f32 0.0, %v2077
    %v2079 = vpop.f32.mrb[0].mxu0
    %v2080 = vadd.f32 0.0, %v2079
    %v2081 = vpop.f32.mrb[0].mxu0
    %2082 = vdwg.mxu0
    %v2083 = vld [vmem:[%s10] sm:$0x1]
    %v2085 = vlaneseq
    %v2086 = vshrl.u32 %v2085, 7
    %v2087 = vsub.s32 0, %v2086
    %v2088 = vrot.slane %v2083, %v2087
    %v2090 = vadd.f32 %v2035, %v2088
    %2091 = vst [vmem:[#allocation4] sm:$0xff] %v2090
    %v2092 = vadd.f32 %v2076, %v2037
    %v2093 = vadd.f32 %v2092, %v2088
    %2094 = vst [vmem:[#allocation4 + $0x8] sm:$0xff] %v2093
    %v2095 = vadd.f32 %v2078, %v2039
    %v2096 = vadd.f32 %v2095, %v2088
    %2097 = vst [vmem:[#allocation4 + $0x10] sm:$0xff] %v2096
    %v2098 = vadd.f32 %v2080, %v2088
    %2099 = vst [vmem:[#allocation4 + $0x18] sm:$0xff] %v2098
    %v2100 = vld [vmem:[#allocation4] sm:$0xff]
    %v2101 = vld [vmem:[#allocation4 + $0x8] sm:$0xff]
    %v2102 = vld [vmem:[#allocation4 + $0x10] sm:$0xff]
    %v2103 = vld [vmem:[#allocation4 + $0x18] sm:$0xff]
    %v2104 = vld [vmem:[%s11] sm:$0x1]
    %v2105 = vld [vmem:[%s12] sm:$0x1]
    %v2106 = vadd.f32 %v2100, %v2101
    %v2107 = vadd.f32 %v2106, %v2102
    %v2108 = vadd.f32 %v2107, %v2103
    %v2109 = vrot.slane %v2108, 4
    %v2110 = vadd.f32 %v2108, %v2109
    %v2111 = vrot.slane %v2110, 2
    %v2112 = vadd.f32 %v2110, %v2111
    %v2113 = vrot.slane %v2112, 1
    %v2114 = vadd.f32 %v2112, %v2113
    %v2115 = vmul.f32 %v2114, 0.03125
    %v2116 = vsub.f32 %v2100, %v2115
    %v2117 = vsub.f32 %v2101, %v2115
    %v2118 = vsub.f32 %v2102, %v2115
    %v2119 = vsub.f32 %v2103, %v2115
    %v2120 = vmul.f32 %v2116, %v2116
    %v2121 = vmul.f32 %v2117, %v2117
    %v2122 = vmul.f32 %v2118, %v2118
    %v2123 = vmul.f32 %v2119, %v2119
    %v2124 = vadd.f32 %v2120, %v2121
    %v2125 = vadd.f32 %v2124, %v2122
    %v2126 = vadd.f32 %v2125, %v2123
    %v2127 = vrot.slane %v2126, 4
    %v2128 = vadd.f32 %v2126, %v2127
    %v2129 = vrot.slane %v2128, 2
    %v2130 = vadd.f32 %v2128, %v2129
    %v2131 = vrot.slane %v2130, 1
    %v2132 = vadd.f32 %v2130, %v2131
    %v2133 = vmul.f32 %v2132, 0.03125
    %v2134 = vadd.f32 %v2133, 1e-05
    %v2135 = vrsqrt.pop %v2134
    %v2136 = vmul.f32 %v2116, %v2135
    %v2137 = vmul.f32 %v2117, %v2135
    %v2138 = vmul.f32 %v2118, %v2135
    %v2139 = vmul.f32 %v2119, %v2135
    %v2141 = vlaneseq
    %v2142 = vshrl.u32 %v2141, 7
    %v2143 = vsub.s32 0, %v2142
    %v2144 = vrot.slane %v2104, %v2143
    %v2146 = vmul.f32 %v2136, %v2144
    %v2147 = vmul.f32 %v2137, %v2144
    %v2148 = vmul.f32 %v2138, %v2144
    %v2149 = vmul.f32 %v2139, %v2144
    %v2151 = vlaneseq
    %v2152 = vshrl.u32 %v2151, 7
    %v2153 = vsub.s32 0, %v2152
    %v2154 = vrot.slane %v2105, %v2153
    %v2156 = vadd.f32 %v2146, %v2154
    %v2157 = vadd.f32 %v2147, %v2154
    %v2158 = vadd.f32 %v2148, %v2154
    %v2159 = vadd.f32 %v2149, %v2154
    %v2160 = vmax.f32 %v2156, 0.0
    %v2161 = vmax.f32 %v2157, 0.0
    %v2162 = vmax.f32 %v2158, 0.0
    %v2163 = vmax.f32 %v2159, 0.0
    %v2164 = vpack.c.bf16 %v2161, %v2160
    %v2165 = vpack.c.bf16 %v2163, %v2162
    %v2166 = vld [vmem:[#allocation11] sm:$0xff]
    %v2167 = vld [vmem:[#allocation11 + $0x8] sm:$0xff]
    %v2168 = vld [vmem:[#allocation11 + $0x10] sm:$0xff]
    %v2169 = vld [vmem:[#allocation11 + $0x18] sm:$0xff]
    %v2170 = vld [vmem:[#allocation11 + $0x20] sm:$0xff]
    %v2171 = vld [vmem:[#allocation11 + $0x28] sm:$0xff]
    %v2172 = vld [vmem:[#allocation11 + $0x30] sm:$0xff]
    %v2173 = vld [vmem:[#allocation11 + $0x38] sm:$0xff]
    %v2174 = vld [vmem:[#allocation11 + $0x40] sm:$0xff]
    %v2175 = vld [vmem:[#allocation11 + $0x48] sm:$0xff]
    %v2176 = vld [vmem:[#allocation11 + $0x50] sm:$0xff]
    %v2177 = vld [vmem:[#allocation11 + $0x58] sm:$0xff]
    %v2178 = vld [vmem:[#allocation11 + $0x60] sm:$0xff]
    %v2179 = vld [vmem:[#allocation11 + $0x68] sm:$0xff]
    %v2180 = vld [vmem:[#allocation11 + $0x70] sm:$0xff]
    %v2181 = vld [vmem:[#allocation11 + $0x78] sm:$0xff]
    %v2182 = vld [vmem:[#allocation11 + $0x80] sm:$0xff]
    %v2183 = vld [vmem:[#allocation11 + $0x88] sm:$0xff]
    %v2184 = vld [vmem:[#allocation11 + $0x90] sm:$0xff]
    %v2185 = vld [vmem:[#allocation11 + $0x98] sm:$0xff]
    %v2186 = vld [vmem:[#allocation11 + $0xa0] sm:$0xff]
    %v2187 = vld [vmem:[#allocation11 + $0xa8] sm:$0xff]
    %v2188 = vld [vmem:[#allocation11 + $0xb0] sm:$0xff]
    %v2189 = vld [vmem:[#allocation11 + $0xb8] sm:$0xff]
    %v2190 = vld [vmem:[#allocation11 + $0xc0] sm:$0xff]
    %v2191 = vld [vmem:[#allocation11 + $0xc8] sm:$0xff]
    %v2192 = vld [vmem:[#allocation11 + $0xd0] sm:$0xff]
    %v2193 = vld [vmem:[#allocation11 + $0xd8] sm:$0xff]
    %v2194 = vld [vmem:[#allocation11 + $0xe0] sm:$0xff]
    %v2195 = vld [vmem:[#allocation11 + $0xe8] sm:$0xff]
    %v2196 = vld [vmem:[#allocation11 + $0xf0] sm:$0xff]
    %v2197 = vld [vmem:[#allocation11 + $0xf8] sm:$0xff]
    %v2230 = vunpack.c.l.b16 %v2166
    %v2231 = vunpack.c.h.b16 %v2166
    %v2232 = vunpack.c.l.b16 %v2167
    %v2233 = vunpack.c.h.b16 %v2167
    %v2234 = vunpack.c.l.b16 %v2168
    %v2235 = vunpack.c.h.b16 %v2168
    %v2236 = vunpack.c.l.b16 %v2169
    %v2237 = vunpack.c.h.b16 %v2169
    %v2238 = vunpack.c.l.b16 %v2170
    %v2239 = vunpack.c.h.b16 %v2170
    %v2240 = vunpack.c.l.b16 %v2171
    %v2241 = vunpack.c.h.b16 %v2171
    %v2242 = vunpack.c.l.b16 %v2172
    %v2243 = vunpack.c.h.b16 %v2172
    %v2244 = vunpack.c.l.b16 %v2173
    %v2245 = vunpack.c.h.b16 %v2173
    %v2246 = vunpack.c.l.b16 %v2174
    %v2247 = vunpack.c.h.b16 %v2174
    %v2248 = vunpack.c.l.b16 %v2175
    %v2249 = vunpack.c.h.b16 %v2175
    %v2250 = vunpack.c.l.b16 %v2176
    %v2251 = vunpack.c.h.b16 %v2176
    %v2252 = vunpack.c.l.b16 %v2177
    %v2253 = vunpack.c.h.b16 %v2177
    %v2254 = vunpack.c.l.b16 %v2178
    %v2255 = vunpack.c.h.b16 %v2178
    %v2256 = vunpack.c.l.b16 %v2179
    %v2257 = vunpack.c.h.b16 %v2179
    %v2258 = vunpack.c.l.b16 %v2180
    %v2259 = vunpack.c.h.b16 %v2180
    %v2260 = vunpack.c.l.b16 %v2181
    %v2261 = vunpack.c.h.b16 %v2181
    %v2262 = vunpack.c.l.b16 %v2182
    %v2263 = vunpack.c.h.b16 %v2182
    %v2264 = vunpack.c.l.b16 %v2183
    %v2265 = vunpack.c.h.b16 %v2183
    %v2266 = vunpack.c.l.b16 %v2184
    %v2267 = vunpack.c.h.b16 %v2184
    %v2268 = vunpack.c.l.b16 %v2185
    %v2269 = vunpack.c.h.b16 %v2185
    %v2270 = vunpack.c.l.b16 %v2186
    %v2271 = vunpack.c.h.b16 %v2186
    %v2272 = vunpack.c.l.b16 %v2187
    %v2273 = vunpack.c.h.b16 %v2187
    %v2274 = vunpack.c.l.b16 %v2188
    %v2275 = vunpack.c.h.b16 %v2188
    %v2276 = vunpack.c.l.b16 %v2189
    %v2277 = vunpack.c.h.b16 %v2189
    %v2278 = vunpack.c.l.b16 %v2190
    %v2279 = vunpack.c.h.b16 %v2190
    %v2280 = vunpack.c.l.b16 %v2191
    %v2281 = vunpack.c.h.b16 %v2191
    %v2282 = vunpack.c.l.b16 %v2192
    %v2283 = vunpack.c.h.b16 %v2192
    %v2284 = vunpack.c.l.b16 %v2193
    %v2285 = vunpack.c.h.b16 %v2193
    %v2286 = vunpack.c.l.b16 %v2194
    %v2287 = vunpack.c.h.b16 %v2194
    %v2288 = vunpack.c.l.b16 %v2195
    %v2289 = vunpack.c.h.b16 %v2195
    %v2290 = vunpack.c.l.b16 %v2196
    %v2291 = vunpack.c.h.b16 %v2196
    %v2292 = vunpack.c.l.b16 %v2197
    %v2293 = vunpack.c.h.b16 %v2197
    %v2294 = vpack.c.b16 %v2234, %v2230
    %v2295 = vpack.c.b16 %v2235, %v2231
    %v2296 = vpack.c.b16 %v2236, %v2232
    %v2297 = vpack.c.b16 %v2237, %v2233
    %v2298 = vpack.c.b16 %v2242, %v2238
    %v2299 = vpack.c.b16 %v2243, %v2239
    %v2300 = vpack.c.b16 %v2244, %v2240
    %v2301 = vpack.c.b16 %v2245, %v2241
    %v2302 = vpack.c.b16 %v2250, %v2246
    %v2303 = vpack.c.b16 %v2251, %v2247
    %v2304 = vpack.c.b16 %v2252, %v2248
    %v2305 = vpack.c.b16 %v2253, %v2249
    %v2306 = vpack.c.b16 %v2258, %v2254
    %v2307 = vpack.c.b16 %v2259, %v2255
    %v2308 = vpack.c.b16 %v2260, %v2256
    %v2309 = vpack.c.b16 %v2261, %v2257
    %v2310 = vpack.c.b16 %v2266, %v2262
    %v2311 = vpack.c.b16 %v2267, %v2263
    %v2312 = vpack.c.b16 %v2268, %v2264
    %v2313 = vpack.c.b16 %v2269, %v2265
    %v2314 = vpack.c.b16 %v2274, %v2270
    %v2315 = vpack.c.b16 %v2275, %v2271
    %v2316 = vpack.c.b16 %v2276, %v2272
    %v2317 = vpack.c.b16 %v2277, %v2273
    %v2318 = vpack.c.b16 %v2282, %v2278
    %v2319 = vpack.c.b16 %v2283, %v2279
    %v2320 = vpack.c.b16 %v2284, %v2280
    %v2321 = vpack.c.b16 %v2285, %v2281
    %v2322 = vpack.c.b16 %v2290, %v2286
    %v2323 = vpack.c.b16 %v2291, %v2287
    %v2324 = vpack.c.b16 %v2292, %v2288
    %v2325 = vpack.c.b16 %v2293, %v2289
    %2358 = vmatprep.subr.bf16.mxu0 %v2295
    %2359 = vmatpush1.bf16.msra.mxu0 %v2294
    %2360 = vmatprep.subr.bf16.mxu0 %v2299
    %2361 = vmatpush1.bf16.msra.mxu0 %v2298
    %2362 = vmatprep.subr.bf16.mxu0 %v2303
    %2363 = vmatpush1.bf16.msra.mxu0 %v2302
    %2364 = vmatprep.subr.bf16.mxu0 %v2307
    %2365 = vmatpush1.bf16.msra.mxu0 %v2306
    %2366 = vmatprep.subr.bf16.mxu0 %v2311
    %2367 = vmatpush1.bf16.msra.mxu0 %v2310
    %2368 = vmatprep.subr.bf16.mxu0 %v2315
    %2369 = vmatpush1.bf16.msra.mxu0 %v2314
    %2370 = vmatprep.subr.bf16.mxu0 %v2319
    %2371 = vmatpush1.bf16.msra.mxu0 %v2318
    %2372 = vmatprep.subr.bf16.mxu0 %v2323
    %2373 = vmatpush1.bf16.msra.mxu0 %v2322
    %2374 = vmatprep.subr.bf16.mxu0 0
    %2375 = vmatpush1.bf16.msra.mxu0 0
    %2376 = vmatprep.subr.bf16.mxu0 0
    %2377 = vmatpush1.bf16.msra.mxu0 0
    %2378 = vmatprep.subr.bf16.mxu0 0
    %2379 = vmatpush1.bf16.msra.mxu0 0
    %2380 = vmatprep.subr.bf16.mxu0 0
    %2381 = vmatpush1.bf16.msra.mxu0 0
    %2382 = vmatprep.subr.bf16.mxu0 0
    %2383 = vmatpush1.bf16.msra.mxu0 0
    %2384 = vmatprep.subr.bf16.mxu0 0
    %2385 = vmatpush1.bf16.msra.mxu0 0
    %2386 = vmatprep.subr.bf16.mxu0 0
    %2387 = vmatpush1.bf16.msra.mxu0 0
    %2388 = vmatprep.subr.bf16.mxu0 0
    %2389 = vmatpush1.bf16.msra.mxu0 0
    %2390 = vmatprep.mubr.bf16.mxu0 0
    %2391 = vmatmul.mubr.bf16.gmra.mrb[0].mxu0 %v2164
    %v2392 = vpop.f32.mrb[0].mxu0
    %v2393 = vpop.f32.mrb[0].mxu0
    %v2394 = vadd.f32 0.0, %v2393
    %v2395 = vpop.f32.mrb[0].mxu0
    %v2396 = vadd.f32 0.0, %v2395
    %v2397 = vpop.f32.mrb[0].mxu0
    %v2398 = vadd.f32 0.0, %v2397
    %2399 = vmatprep.mubr.bf16.mxu0 0
    %2400 = vmatmul.mubr.bf16.gmra.mrb[0].mxu0 %v2165
    %v2401 = vpop.f32.mrb[0].mxu0
    %v2402 = vadd.f32 0.0, %v2401
    %v2403 = vpop.f32.mrb[0].mxu0
    %v2404 = vadd.f32 0.0, %v2403
    %v2405 = vpop.f32.mrb[0].mxu0
    %v2406 = vadd.f32 0.0, %v2405
    %v2407 = vpop.f32.mrb[0].mxu0
    %v2408 = vadd.f32 0.0, %v2407
    %2409 = vdwg.mxu0
    %2410 = vmatprep.subr.bf16.mxu0 %v2297
    %2411 = vmatpush1.bf16.msra.mxu0 %v2296
    %2412 = vmatprep.subr.bf16.mxu0 %v2301
    %2413 = vmatpush1.bf16.msra.mxu0 %v2300
    %2414 = vmatprep.subr.bf16.mxu0 %v2305
    %2415 = vmatpush1.bf16.msra.mxu0 %v2304
    %2416 = vmatprep.subr.bf16.mxu0 %v2309
    %2417 = vmatpush1.bf16.msra.mxu0 %v2308
    %2418 = vmatprep.subr.bf16.mxu0 %v2313
    %2419 = vmatpush1.bf16.msra.mxu0 %v2312
    %2420 = vmatprep.subr.bf16.mxu0 %v2317
    %2421 = vmatpush1.bf16.msra.mxu0 %v2316
    %2422 = vmatprep.subr.bf16.mxu0 %v2321
    %2423 = vmatpush1.bf16.msra.mxu0 %v2320
    %2424 = vmatprep.subr.bf16.mxu0 %v2325
    %2425 = vmatpush1.bf16.msra.mxu0 %v2324
    %2426 = vmatprep.subr.bf16.mxu0 0
    %2427 = vmatpush1.bf16.msra.mxu0 0
    %2428 = vmatprep.subr.bf16.mxu0 0
    %2429 = vmatpush1.bf16.msra.mxu0 0
    %2430 = vmatprep.subr.bf16.mxu0 0
    %2431 = vmatpush1.bf16.msra.mxu0 0
    %2432 = vmatprep.subr.bf16.mxu0 0
    %2433 = vmatpush1.bf16.msra.mxu0 0
    %2434 = vmatprep.subr.bf16.mxu0 0
    %2435 = vmatpush1.bf16.msra.mxu0 0
    %2436 = vmatprep.subr.bf16.mxu0 0
    %2437 = vmatpush1.bf16.msra.mxu0 0
    %2438 = vmatprep.subr.bf16.mxu0 0
    %2439 = vmatpush1.bf16.msra.mxu0 0
    %2440 = vmatprep.subr.bf16.mxu0 0
    %2441 = vmatpush1.bf16.msra.mxu0 0
    %2442 = vmatprep.mubr.bf16.mxu0 0
    %2443 = vmatmul.mubr.bf16.gmra.mrb[0].mxu0 %v2164
    %v2444 = vpop.f32.mrb[0].mxu0
    %v2445 = vadd.f32 0.0, %v2444
    %v2446 = vpop.f32.mrb[0].mxu0
    %v2447 = vadd.f32 0.0, %v2446
    %v2448 = vpop.f32.mrb[0].mxu0
    %v2449 = vadd.f32 0.0, %v2448
    %v2450 = vpop.f32.mrb[0].mxu0
    %v2451 = vadd.f32 0.0, %v2450
    %2452 = vmatprep.mubr.bf16.mxu0 0
    %2453 = vmatmul.mubr.bf16.gmra.mrb[0].mxu0 %v2165
    %v2454 = vpop.f32.mrb[0].mxu0
    %v2455 = vadd.f32 0.0, %v2454
    %v2456 = vpop.f32.mrb[0].mxu0
    %v2457 = vadd.f32 0.0, %v2456
    %v2458 = vpop.f32.mrb[0].mxu0
    %v2459 = vadd.f32 0.0, %v2458
    %v2460 = vpop.f32.mrb[0].mxu0
    %2461 = vdwg.mxu0
    %v2462 = vld [vmem:[%s14] sm:$0x1]
    %v2464 = vlaneseq
    %v2465 = vshrl.u32 %v2464, 7
    %v2466 = vsub.s32 0, %v2465
    %v2467 = vrot.slane %v2462, %v2466
    %v2469 = vadd.f32 %v2394, %v2467
    %2470 = vst [vmem:[#allocation5] sm:$0xff] %v2469
    %v2471 = vadd.f32 %v2445, %v2396
    %v2472 = vadd.f32 %v2471, %v2467
    %2473 = vst [vmem:[#allocation5 + $0x8] sm:$0xff] %v2472
    %v2474 = vadd.f32 %v2447, %v2398
    %v2475 = vadd.f32 %v2474, %v2467
    %2476 = vst [vmem:[#allocation5 + $0x10] sm:$0xff] %v2475
    %v2477 = vadd.f32 %v2449, %v2402
    %v2478 = vadd.f32 %v2477, %v2467
    %2479 = vst [vmem:[#allocation5 + $0x18] sm:$0xff] %v2478
    %v2480 = vadd.f32 %v2451, %v2404
    %v2481 = vadd.f32 %v2480, %v2467
    %2482 = vst [vmem:[#allocation5 + $0x20] sm:$0xff] %v2481
    %v2483 = vadd.f32 %v2455, %v2406
    %v2484 = vadd.f32 %v2483, %v2467
    %2485 = vst [vmem:[#allocation5 + $0x28] sm:$0xff] %v2484
    %v2486 = vadd.f32 %v2457, %v2408
    %v2487 = vadd.f32 %v2486, %v2467
    %2488 = vst [vmem:[#allocation5 + $0x30] sm:$0xff] %v2487
    %v2489 = vadd.f32 %v2459, %v2467
    %2490 = vst [vmem:[#allocation5 + $0x38] sm:$0xff] %v2489
    %v2491 = vld [vmem:[#allocation5] sm:$0xff]
    %v2492 = vld [vmem:[#allocation5 + $0x8] sm:$0xff]
    %v2493 = vld [vmem:[#allocation5 + $0x10] sm:$0xff]
    %v2494 = vld [vmem:[#allocation5 + $0x18] sm:$0xff]
    %v2495 = vld [vmem:[#allocation5 + $0x20] sm:$0xff]
    %v2496 = vld [vmem:[#allocation5 + $0x28] sm:$0xff]
    %v2497 = vld [vmem:[#allocation5 + $0x30] sm:$0xff]
    %v2498 = vld [vmem:[#allocation5 + $0x38] sm:$0xff]
    %v2499 = vld [vmem:[%s15] sm:$0x1]
    %v2500 = vld [vmem:[%s16] sm:$0x1]
    %v2501 = vadd.f32 %v2491, %v2492
    %v2502 = vadd.f32 %v2501, %v2493
    %v2503 = vadd.f32 %v2502, %v2494
    %v2504 = vadd.f32 %v2503, %v2495
    %v2505 = vadd.f32 %v2504, %v2496
    %v2506 = vadd.f32 %v2505, %v2497
    %v2507 = vadd.f32 %v2506, %v2498
    %v2508 = vrot.slane %v2507, 4
    %v2509 = vadd.f32 %v2507, %v2508
    %v2510 = vrot.slane %v2509, 2
    %v2511 = vadd.f32 %v2509, %v2510
    %v2512 = vrot.slane %v2511, 1
    %v2513 = vadd.f32 %v2511, %v2512
    %v2514 = vmul.f32 %v2513, 0.015625
    %v2515 = vsub.f32 %v2491, %v2514
    %v2516 = vsub.f32 %v2492, %v2514
    %v2517 = vsub.f32 %v2493, %v2514
    %v2518 = vsub.f32 %v2494, %v2514
    %v2519 = vsub.f32 %v2495, %v2514
    %v2520 = vsub.f32 %v2496, %v2514
    %v2521 = vsub.f32 %v2497, %v2514
    %v2522 = vsub.f32 %v2498, %v2514
    %v2523 = vmul.f32 %v2515, %v2515
    %v2524 = vmul.f32 %v2516, %v2516
    %v2525 = vmul.f32 %v2517, %v2517
    %v2526 = vmul.f32 %v2518, %v2518
    %v2527 = vmul.f32 %v2519, %v2519
    %v2528 = vmul.f32 %v2520, %v2520
    %v2529 = vmul.f32 %v2521, %v2521
    %v2530 = vmul.f32 %v2522, %v2522
    %v2531 = vadd.f32 %v2523, %v2524
    %v2532 = vadd.f32 %v2531, %v2525
    %v2533 = vadd.f32 %v2532, %v2526
    %v2534 = vadd.f32 %v2533, %v2527
    %v2535 = vadd.f32 %v2534, %v2528
    %v2536 = vadd.f32 %v2535, %v2529
    %v2537 = vadd.f32 %v2536, %v2530
    %v2538 = vrot.slane %v2537, 4
    %v2539 = vadd.f32 %v2537, %v2538
    %v2540 = vrot.slane %v2539, 2
    %v2541 = vadd.f32 %v2539, %v2540
    %v2542 = vrot.slane %v2541, 1
    %v2543 = vadd.f32 %v2541, %v2542
    %v2544 = vmul.f32 %v2543, 0.015625
    %v2545 = vadd.f32 %v2544, 1e-05
    %v2546 = vrsqrt.pop %v2545
    %v2547 = vmul.f32 %v2515, %v2546
    %v2548 = vmul.f32 %v2516, %v2546
    %v2549 = vmul.f32 %v2517, %v2546
    %v2550 = vmul.f32 %v2518, %v2546
    %v2551 = vmul.f32 %v2519, %v2546
    %v2552 = vmul.f32 %v2520, %v2546
    %v2553 = vmul.f32 %v2521, %v2546
    %v2554 = vmul.f32 %v2522, %v2546
    %v2556 = vlaneseq
    %v2557 = vshrl.u32 %v2556, 7
    %v2558 = vsub.s32 0, %v2557
    %v2559 = vrot.slane %v2499, %v2558
    %v2561 = vmul.f32 %v2547, %v2559
    %v2562 = vmul.f32 %v2548, %v2559
    %v2563 = vmul.f32 %v2549, %v2559
    %v2564 = vmul.f32 %v2550, %v2559
    %v2565 = vmul.f32 %v2551, %v2559
    %v2566 = vmul.f32 %v2552, %v2559
    %v2567 = vmul.f32 %v2553, %v2559
    %v2568 = vmul.f32 %v2554, %v2559
    %v2570 = vlaneseq
    %v2571 = vshrl.u32 %v2570, 7
    %v2572 = vsub.s32 0, %v2571
    %v2573 = vrot.slane %v2500, %v2572
    %v2575 = vadd.f32 %v2561, %v2573
    %v2576 = vadd.f32 %v2562, %v2573
    %v2577 = vadd.f32 %v2563, %v2573
    %v2578 = vadd.f32 %v2564, %v2573
    %v2579 = vadd.f32 %v2565, %v2573
    %v2580 = vadd.f32 %v2566, %v2573
    %v2581 = vadd.f32 %v2567, %v2573
    %v2582 = vadd.f32 %v2568, %v2573
    %v2583 = vmax.f32 %v2575, 0.0
    %v2584 = vmax.f32 %v2576, 0.0
    %v2585 = vmax.f32 %v2577, 0.0
    %v2586 = vmax.f32 %v2578, 0.0
    %v2587 = vmax.f32 %v2579, 0.0
    %v2588 = vmax.f32 %v2580, 0.0
    %v2589 = vmax.f32 %v2581, 0.0
    %v2590 = vmax.f32 %v2582, 0.0
    %v2591 = vpack.c.bf16 %v2584, %v2583
    %v2592 = vpack.c.bf16 %v2586, %v2585
    %v2593 = vpack.c.bf16 %v2588, %v2587
    %v2594 = vpack.c.bf16 %v2590, %v2589
    %v2595 = vld [vmem:[#allocation13] sm:$0xff]
    %v2596 = vld [vmem:[#allocation13 + $0x8] sm:$0xff]
    %v2597 = vld [vmem:[#allocation13 + $0x10] sm:$0xff]
    %v2598 = vld [vmem:[#allocation13 + $0x18] sm:$0xff]
    %v2599 = vld [vmem:[#allocation13 + $0x20] sm:$0xff]
    %v2600 = vld [vmem:[#allocation13 + $0x28] sm:$0xff]
    %v2601 = vld [vmem:[#allocation13 + $0x30] sm:$0xff]
    %v2602 = vld [vmem:[#allocation13 + $0x38] sm:$0xff]
    %v2603 = vld [vmem:[#allocation13 + $0x40] sm:$0xff]
    %v2604 = vld [vmem:[#allocation13 + $0x48] sm:$0xff]
    %v2605 = vld [vmem:[#allocation13 + $0x50] sm:$0xff]
    %v2606 = vld [vmem:[#allocation13 + $0x58] sm:$0xff]
    %v2607 = vld [vmem:[#allocation13 + $0x60] sm:$0xff]
    %v2608 = vld [vmem:[#allocation13 + $0x68] sm:$0xff]
    %v2609 = vld [vmem:[#allocation13 + $0x70] sm:$0xff]
    %v2610 = vld [vmem:[#allocation13 + $0x78] sm:$0xff]
    %v2611 = vld [vmem:[#allocation13 + $0x80] sm:$0xff]
    %v2612 = vld [vmem:[#allocation13 + $0x88] sm:$0xff]
    %v2613 = vld [vmem:[#allocation13 + $0x90] sm:$0xff]
    %v2614 = vld [vmem:[#allocation13 + $0x98] sm:$0xff]
    %v2615 = vld [vmem:[#allocation13 + $0xa0] sm:$0xff]
    %v2616 = vld [vmem:[#allocation13 + $0xa8] sm:$0xff]
    %v2617 = vld [vmem:[#allocation13 + $0xb0] sm:$0xff]
    %v2618 = vld [vmem:[#allocation13 + $0xb8] sm:$0xff]
    %v2619 = vld [vmem:[#allocation13 + $0xc0] sm:$0xff]
    %v2620 = vld [vmem:[#allocation13 + $0xc8] sm:$0xff]
    %v2621 = vld [vmem:[#allocation13 + $0xd0] sm:$0xff]
    %v2622 = vld [vmem:[#allocation13 + $0xd8] sm:$0xff]
    %v2623 = vld [vmem:[#allocation13 + $0xe0] sm:$0xff]
    %v2624 = vld [vmem:[#allocation13 + $0xe8] sm:$0xff]
    %v2625 = vld [vmem:[#allocation13 + $0xf0] sm:$0xff]
    %v2626 = vld [vmem:[#allocation13 + $0xf8] sm:$0xff]
    %v2659 = vunpack.c.l.b16 %v2595
    %v2660 = vunpack.c.h.b16 %v2595
    %v2661 = vunpack.c.l.b16 %v2596
    %v2662 = vunpack.c.h.b16 %v2596
    %v2663 = vunpack.c.l.b16 %v2597
    %v2664 = vunpack.c.h.b16 %v2597
    %v2665 = vunpack.c.l.b16 %v2598
    %v2666 = vunpack.c.h.b16 %v2598
    %v2667 = vunpack.c.l.b16 %v2599
    %v2668 = vunpack.c.h.b16 %v2599
    %v2669 = vunpack.c.l.b16 %v2600
    %v2670 = vunpack.c.h.b16 %v2600
    %v2671 = vunpack.c.l.b16 %v2601
    %v2672 = vunpack.c.h.b16 %v2601
    %v2673 = vunpack.c.l.b16 %v2602
    %v2674 = vunpack.c.h.b16 %v2602
    %v2675 = vunpack.c.l.b16 %v2603
    %v2676 = vunpack.c.h.b16 %v2603
    %v2677 = vunpack.c.l.b16 %v2604
    %v2678 = vunpack.c.h.b16 %v2604
    %v2679 = vunpack.c.l.b16 %v2605
    %v2680 = vunpack.c.h.b16 %v2605
    %v2681 = vunpack.c.l.b16 %v2606
    %v2682 = vunpack.c.h.b16 %v2606
    %v2683 = vunpack.c.l.b16 %v2607
    %v2684 = vunpack.c.h.b16 %v2607
    %v2685 = vunpack.c.l.b16 %v2608
    %v2686 = vunpack.c.h.b16 %v2608
    %v2687 = vunpack.c.l.b16 %v2609
    %v2688 = vunpack.c.h.b16 %v2609
    %v2689 = vunpack.c.l.b16 %v2610
    %v2690 = vunpack.c.h.b16 %v2610
    %v2691 = vunpack.c.l.b16 %v2611
    %v2692 = vunpack.c.h.b16 %v2611
    %v2693 = vunpack.c.l.b16 %v2612
    %v2694 = vunpack.c.h.b16 %v2612
    %v2695 = vunpack.c.l.b16 %v2613
    %v2696 = vunpack.c.h.b16 %v2613
    %v2697 = vunpack.c.l.b16 %v2614
    %v2698 = vunpack.c.h.b16 %v2614
    %v2699 = vunpack.c.l.b16 %v2615
    %v2700 = vunpack.c.h.b16 %v2615
    %v2701 = vunpack.c.l.b16 %v2616
    %v2702 = vunpack.c.h.b16 %v2616
    %v2703 = vunpack.c.l.b16 %v2617
    %v2704 = vunpack.c.h.b16 %v2617
    %v2705 = vunpack.c.l.b16 %v2618
    %v2706 = vunpack.c.h.b16 %v2618
    %v2707 = vunpack.c.l.b16 %v2619
    %v2708 = vunpack.c.h.b16 %v2619
    %v2709 = vunpack.c.l.b16 %v2620
    %v2710 = vunpack.c.h.b16 %v2620
    %v2711 = vunpack.c.l.b16 %v2621
    %v2712 = vunpack.c.h.b16 %v2621
    %v2713 = vunpack.c.l.b16 %v2622
    %v2714 = vunpack.c.h.b16 %v2622
    %v2715 = vunpack.c.l.b16 %v2623
    %v2716 = vunpack.c.h.b16 %v2623
    %v2717 = vunpack.c.l.b16 %v2624
    %v2718 = vunpack.c.h.b16 %v2624
    %v2719 = vunpack.c.l.b16 %v2625
    %v2720 = vunpack.c.h.b16 %v2625
    %v2721 = vunpack.c.l.b16 %v2626
    %v2722 = vunpack.c.h.b16 %v2626
    %v2723 = vpack.c.b16 %v2663, %v2659
    %v2724 = vpack.c.b16 %v2664, %v2660
    %v2725 = vpack.c.b16 %v2665, %v2661
    %v2726 = vpack.c.b16 %v2666, %v2662
    %v2727 = vpack.c.b16 %v2671, %v2667
    %v2728 = vpack.c.b16 %v2672, %v2668
    %v2729 = vpack.c.b16 %v2673, %v2669
    %v2730 = vpack.c.b16 %v2674, %v2670
    %v2731 = vpack.c.b16 %v2679, %v2675
    %v2732 = vpack.c.b16 %v2680, %v2676
    %v2733 = vpack.c.b16 %v2681, %v2677
    %v2734 = vpack.c.b16 %v2682, %v2678
    %v2735 = vpack.c.b16 %v2687, %v2683
    %v2736 = vpack.c.b16 %v2688, %v2684
    %v2737 = vpack.c.b16 %v2689, %v2685
    %v2738 = vpack.c.b16 %v2690, %v2686
    %v2739 = vpack.c.b16 %v2695, %v2691
    %v2740 = vpack.c.b16 %v2696, %v2692
    %v2741 = vpack.c.b16 %v2697, %v2693
    %v2742 = vpack.c.b16 %v2698, %v2694
    %v2743 = vpack.c.b16 %v2703, %v2699
    %v2744 = vpack.c.b16 %v2704, %v2700
    %v2745 = vpack.c.b16 %v2705, %v2701
    %v2746 = vpack.c.b16 %v2706, %v2702
    %v2747 = vpack.c.b16 %v2711, %v2707
    %v2748 = vpack.c.b16 %v2712, %v2708
    %v2749 = vpack.c.b16 %v2713, %v2709
    %v2750 = vpack.c.b16 %v2714, %v2710
    %v2751 = vpack.c.b16 %v2719, %v2715
    %v2752 = vpack.c.b16 %v2720, %v2716
    %v2753 = vpack.c.b16 %v2721, %v2717
    %v2754 = vpack.c.b16 %v2722, %v2718
    %2787 = vmatprep.subr.bf16.mxu0 %v2724
    %2788 = vmatpush1.bf16.msra.mxu0 %v2723
    %2789 = vmatprep.subr.bf16.mxu0 %v2728
    %2790 = vmatpush1.bf16.msra.mxu0 %v2727
    %2791 = vmatprep.subr.bf16.mxu0 %v2732
    %2792 = vmatpush1.bf16.msra.mxu0 %v2731
    %2793 = vmatprep.subr.bf16.mxu0 %v2736
    %2794 = vmatpush1.bf16.msra.mxu0 %v2735
    %2795 = vmatprep.subr.bf16.mxu0 %v2740
    %2796 = vmatpush1.bf16.msra.mxu0 %v2739
    %2797 = vmatprep.subr.bf16.mxu0 %v2744
    %2798 = vmatpush1.bf16.msra.mxu0 %v2743
    %2799 = vmatprep.subr.bf16.mxu0 %v2748
    %2800 = vmatpush1.bf16.msra.mxu0 %v2747
    %2801 = vmatprep.subr.bf16.mxu0 %v2752
    %2802 = vmatpush1.bf16.msra.mxu0 %v2751
    %2803 = vmatprep.subr.bf16.mxu0 0
    %2804 = vmatpush1.bf16.msra.mxu0 0
    %2805 = vmatprep.subr.bf16.mxu0 0
    %2806 = vmatpush1.bf16.msra.mxu0 0
    %2807 = vmatprep.subr.bf16.mxu0 0
    %2808 = vmatpush1.bf16.msra.mxu0 0
    %2809 = vmatprep.subr.bf16.mxu0 0
    %2810 = vmatpush1.bf16.msra.mxu0 0
    %2811 = vmatprep.subr.bf16.mxu0 0
    %2812 = vmatpush1.bf16.msra.mxu0 0
    %2813 = vmatprep.subr.bf16.mxu0 0
    %2814 = vmatpush1.bf16.msra.mxu0 0
    %2815 = vmatprep.subr.bf16.mxu0 0
    %2816 = vmatpush1.bf16.msra.mxu0 0
    %2817 = vmatprep.subr.bf16.mxu0 0
    %2818 = vmatpush1.bf16.msra.mxu0 0
    %2819 = vmatprep.mubr.bf16.mxu0 0
    %2820 = vmatmul.mubr.bf16.gmra.mrb[0].mxu0 %v2591
    %v2821 = vpop.f32.mrb[0].mxu0
    %v2822 = vpop.f32.mrb[0].mxu0
    %v2823 = vadd.f32 0.0, %v2822
    %v2824 = vpop.f32.mrb[0].mxu0
    %v2825 = vadd.f32 0.0, %v2824
    %v2826 = vpop.f32.mrb[0].mxu0
    %v2827 = vadd.f32 0.0, %v2826
    %2828 = vmatprep.mubr.bf16.mxu0 0
    %2829 = vmatmul.mubr.bf16.gmra.mrb[0].mxu0 %v2592
    %v2830 = vpop.f32.mrb[0].mxu0
    %v2831 = vadd.f32 0.0, %v2830
    %v2832 = vpop.f32.mrb[0].mxu0
    %v2833 = vadd.f32 0.0, %v2832
    %v2834 = vpop.f32.mrb[0].mxu0
    %v2835 = vadd.f32 0.0, %v2834
    %v2836 = vpop.f32.mrb[0].mxu0
    %v2837 = vadd.f32 0.0, %v2836
    %2838 = vmatprep.mubr.bf16.mxu0 0
    %2839 = vmatmul.mubr.bf16.gmra.mrb[0].mxu0 %v2593
    %v2840 = vpop.f32.mrb[0].mxu0
    %v2841 = vadd.f32 0.0, %v2840
    %v2842 = vpop.f32.mrb[0].mxu0
    %v2843 = vadd.f32 0.0, %v2842
    %v2844 = vpop.f32.mrb[0].mxu0
    %v2845 = vadd.f32 0.0, %v2844
    %v2846 = vpop.f32.mrb[0].mxu0
    %v2847 = vadd.f32 0.0, %v2846
    %2848 = vmatprep.mubr.bf16.mxu0 0
    %2849 = vmatmul.mubr.bf16.gmra.mrb[0].mxu0 %v2594
    %v2850 = vpop.f32.mrb[0].mxu0
    %v2851 = vadd.f32 0.0, %v2850
    %v2852 = vpop.f32.mrb[0].mxu0
    %v2853 = vadd.f32 0.0, %v2852
    %v2854 = vpop.f32.mrb[0].mxu0
    %v2855 = vadd.f32 0.0, %v2854
    %v2856 = vpop.f32.mrb[0].mxu0
    %v2857 = vadd.f32 0.0, %v2856
    %2858 = vdwg.mxu0
    %2859 = vmatprep.subr.bf16.mxu0 %v2726
    %2860 = vmatpush1.bf16.msra.mxu0 %v2725
    %2861 = vmatprep.subr.bf16.mxu0 %v2730
    %2862 = vmatpush1.bf16.msra.mxu0 %v2729
    %2863 = vmatprep.subr.bf16.mxu0 %v2734
    %2864 = vmatpush1.bf16.msra.mxu0 %v2733
    %2865 = vmatprep.subr.bf16.mxu0 %v2738
    %2866 = vmatpush1.bf16.msra.mxu0 %v2737
    %2867 = vmatprep.subr.bf16.mxu0 %v2742
    %2868 = vmatpush1.bf16.msra.mxu0 %v2741
    %2869 = vmatprep.subr.bf16.mxu0 %v2746
    %2870 = vmatpush1.bf16.msra.mxu0 %v2745
    %2871 = vmatprep.subr.bf16.mxu0 %v2750
    %2872 = vmatpush1.bf16.msra.mxu0 %v2749
    %2873 = vmatprep.subr.bf16.mxu0 %v2754
    %2874 = vmatpush1.bf16.msra.mxu0 %v2753
    %2875 = vmatprep.subr.bf16.mxu0 0
    %2876 = vmatpush1.bf16.msra.mxu0 0
    %2877 = vmatprep.subr.bf16.mxu0 0
    %2878 = vmatpush1.bf16.msra.mxu0 0
    %2879 = vmatprep.subr.bf16.mxu0 0
    %2880 = vmatpush1.bf16.msra.mxu0 0
    %2881 = vmatprep.subr.bf16.mxu0 0
    %2882 = vmatpush1.bf16.msra.mxu0 0
    %2883 = vmatprep.subr.bf16.mxu0 0
    %2884 = vmatpush1.bf16.msra.mxu0 0
    %2885 = vmatprep.subr.bf16.mxu0 0
    %2886 = vmatpush1.bf16.msra.mxu0 0
    %2887 = vmatprep.subr.bf16.mxu0 0
    %2888 = vmatpush1.bf16.msra.mxu0 0
    %2889 = vmatprep.subr.bf16.mxu0 0
    %2890 = vmatpush1.bf16.msra.mxu0 0
    %2891 = vmatprep.mubr.bf16.mxu0 0
    %2892 = vmatmul.mubr.bf16.gmra.mrb[0].mxu0 %v2591
    %v2893 = vpop.f32.mrb[0].mxu0
    %v2894 = vadd.f32 0.0, %v2893
    %v2895 = vpop.f32.mrb[0].mxu0
    %v2896 = vadd.f32 0.0, %v2895
    %v2897 = vpop.f32.mrb[0].mxu0
    %v2898 = vadd.f32 0.0, %v2897
    %v2899 = vpop.f32.mrb[0].mxu0
    %v2900 = vadd.f32 0.0, %v2899
    %2901 = vmatprep.mubr.bf16.mxu0 0
    %2902 = vmatmul.mubr.bf16.gmra.mrb[0].mxu0 %v2592
    %v2903 = vpop.f32.mrb[0].mxu0
    %v2904 = vadd.f32 0.0, %v2903
    %v2905 = vpop.f32.mrb[0].mxu0
    %v2906 = vadd.f32 0.0, %v2905
    %v2907 = vpop.f32.mrb[0].mxu0
    %v2908 = vadd.f32 0.0, %v2907
    %v2909 = vpop.f32.mrb[0].mxu0
    %v2910 = vadd.f32 0.0, %v2909
    %2911 = vmatprep.mubr.bf16.mxu0 0
    %2912 = vmatmul.mubr.bf16.gmra.mrb[0].mxu0 %v2593
    %v2913 = vpop.f32.mrb[0].mxu0
    %v2914 = vadd.f32 0.0, %v2913
    %v2915 = vpop.f32.mrb[0].mxu0
    %v2916 = vadd.f32 0.0, %v2915
    %v2917 = vpop.f32.mrb[0].mxu0
    %v2918 = vadd.f32 0.0, %v2917
    %v2919 = vpop.f32.mrb[0].mxu0
    %v2920 = vadd.f32 0.0, %v2919
    %2921 = vmatprep.mubr.bf16.mxu0 0
    %2922 = vmatmul.mubr.bf16.gmra.mrb[0].mxu0 %v2594
    %v2923 = vpop.f32.mrb[0].mxu0
    %v2924 = vadd.f32 0.0, %v2923
    %v2925 = vpop.f32.mrb[0].mxu0
    %v2926 = vadd.f32 0.0, %v2925
    %v2927 = vpop.f32.mrb[0].mxu0
    %v2928 = vadd.f32 0.0, %v2927
    %v2929 = vpop.f32.mrb[0].mxu0
    %2930 = vdwg.mxu0
    %v2931 = vld [vmem:[%s18] sm:$0x1]
    %v2933 = vlaneseq
    %v2934 = vshrl.u32 %v2933, 7
    %v2935 = vsub.s32 0, %v2934
    %v2936 = vrot.slane %v2931, %v2935
    %v2938 = vadd.f32 %v2823, %v2936
    %v2939 = vtanh.pop %v2938
    %2940 = vst [vmem:[%s19] sm:$0xff] %v2939
    %v2941 = vadd.f32 %v2894, %v2825
    %v2942 = vadd.f32 %v2941, %v2936
    %v2943 = vtanh.pop %v2942
    %2944 = vst [vmem:[%s19 + $0x8] sm:$0xff] %v2943
    %v2945 = vadd.f32 %v2896, %v2827
    %v2946 = vadd.f32 %v2945, %v2936
    %v2947 = vtanh.pop %v2946
    %2948 = vst [vmem:[%s19 + $0x10] sm:$0xff] %v2947
    %v2949 = vadd.f32 %v2898, %v2831
    %v2950 = vadd.f32 %v2949, %v2936
    %v2951 = vtanh.pop %v2950
    %2952 = vst [vmem:[%s19 + $0x18] sm:$0xff] %v2951
    %v2953 = vadd.f32 %v2900, %v2833
    %v2954 = vadd.f32 %v2953, %v2936
    %v2955 = vtanh.pop %v2954
    %2956 = vst [vmem:[%s19 + $0x20] sm:$0xff] %v2955
    %v2957 = vadd.f32 %v2904, %v2835
    %v2958 = vadd.f32 %v2957, %v2936
    %v2959 = vtanh.pop %v2958
    %2960 = vst [vmem:[%s19 + $0x28] sm:$0xff] %v2959
    %v2961 = vadd.f32 %v2906, %v2837
    %v2962 = vadd.f32 %v2961, %v2936
    %v2963 = vtanh.pop %v2962
    %2964 = vst [vmem:[%s19 + $0x30] sm:$0xff] %v2963
    %v2965 = vadd.f32 %v2908, %v2841
    %v2966 = vadd.f32 %v2965, %v2936
    %v2967 = vtanh.pop %v2966
    %2968 = vst [vmem:[%s19 + $0x38] sm:$0xff] %v2967
    %v2969 = vadd.f32 %v2910, %v2843
    %v2970 = vadd.f32 %v2969, %v2936
    %v2971 = vtanh.pop %v2970
    %2972 = vst [vmem:[%s19 + $0x40] sm:$0xff] %v2971
    %v2973 = vadd.f32 %v2914, %v2845
    %v2974 = vadd.f32 %v2973, %v2936
    %v2975 = vtanh.pop %v2974
    %2976 = vst [vmem:[%s19 + $0x48] sm:$0xff] %v2975
    %v2977 = vadd.f32 %v2916, %v2847
    %v2978 = vadd.f32 %v2977, %v2936
    %v2979 = vtanh.pop %v2978
    %2980 = vst [vmem:[%s19 + $0x50] sm:$0xff] %v2979
    %v2981 = vadd.f32 %v2918, %v2851
    %v2982 = vadd.f32 %v2981, %v2936
    %v2983 = vtanh.pop %v2982
    %2984 = vst [vmem:[%s19 + $0x58] sm:$0xff] %v2983
    %v2985 = vadd.f32 %v2920, %v2853
    %v2986 = vadd.f32 %v2985, %v2936
    %v2987 = vtanh.pop %v2986
    %2988 = vst [vmem:[%s19 + $0x60] sm:$0xff] %v2987
    %v2989 = vadd.f32 %v2924, %v2855
    %v2990 = vadd.f32 %v2989, %v2936
    %v2991 = vtanh.pop %v2990
    %2992 = vst [vmem:[%s19 + $0x68] sm:$0xff] %v2991
    %v2993 = vadd.f32 %v2926, %v2857
    %v2994 = vadd.f32 %v2993, %v2936
    %v2995 = vtanh.pop %v2994
    %2996 = vst [vmem:[%s19 + $0x70] sm:$0xff] %v2995
    %v2997 = vadd.f32 %v2928, %v2936
    %v2998 = vtanh.pop %v2997
    %2999 = vst [vmem:[%s19 + $0x78] sm:$0xff] %v2998
    // Predicated region
    $region98: #{temporal_generator_forward.1} parent=1 // pred_check
      _
    $region99: #{temporal_generator_forward.1} parent=1 // pred_check_branch
      %3001 = sbr.rel (0) target = $region101
    $region100: #{temporal_generator_forward.1} parent=1 // pred_region
      _
    $region101: #{temporal_generator_forward.1} parent=1 // pred_fallthru
      _
    // Predicated region
    $region102: #{temporal_generator_forward.1} parent=1 // pred_check
      _
    $region103: #{temporal_generator_forward.1} parent=1 // pred_check_branch
      %3003 = sbr.rel (0) target = $region105
    $region104: #{temporal_generator_forward.1} parent=1 // pred_region
      _
    $region105: #{temporal_generator_forward.1} parent=1 // pred_fallthru
      _
    %3004 = vsyncpa [#allocation7], 1
    %3005 = vsyncpa [#allocation9], 1
    %3006 = vsyncpa [#allocation12], 1

</llo_original>
